<compile_context>
chip_gen: v7x
topology: tpu7x:2x2x1
jax: 0.10.0
libtpu: 0.0.40
codegen_flags: <defaults>
</compile_context>

<pallas_src>
import jax
import jax.numpy as jnp
from jax import lax
from jax.experimental import pallas as pl
from jax.experimental.pallas import tpu as pltpu

RES_LAYER_NUM = 7
DILATIONS = (1, 1, 1, 2, 2, 4, 4)
N_ADJ = 4
KSIZE = 2 * N_ADJ + 1
FUSION_DIM = 256
BN_EPS = 1e-5


def _snake_kernel(x_ref,
                  hw_ref, hb_ref, hg_ref, hbe_ref,
                  rw_ref, rb_ref, rg_ref, rbe_ref,
                  fw_ref, fb_ref,
                  w1g_ref, w1s_ref, b1_ref, w2_ref, b2_ref, w3_ref, b3_ref,
                  sel_ref,
                  o_ref, st_scratch):
    B, _, L = x_ref.shape
    S = hw_ref.shape[0]
    BL = B * L
    inv_n = 1.0 / float(BL)

    def tap_stack(x_halves, dilation):
        # x_halves: list (len B) of (Cin, L) f32 -> (K*Cin, B*L)
        cols = []
        for xb in x_halves:
            rows = []
            for k in range(KSIZE):
                shift = ((N_ADJ - k) * dilation) % L
                rows.append(xb if shift == 0 else pltpu.roll(xb, shift, 1))
            cols.append(jnp.concatenate(rows, axis=0))            # (K*Cin, L)
        return jnp.concatenate(cols, axis=1)                      # (K*Cin, B*L)

    def block(x_halves, w, b, gamma, beta, dilation):
        # conv (single fused-tap matmul) -> ReLU -> BatchNorm1d (training stats)
        taps = tap_stack(x_halves, dilation)
        z = jnp.dot(w, taps, preferred_element_type=jnp.float32) + b
        z = jnp.maximum(z, 0.0)
        mean = jnp.sum(z, axis=1, keepdims=True) * inv_n
        msq = jnp.sum(z * z, axis=1, keepdims=True) * inv_n
        var = msq - mean * mean
        scale = gamma * lax.rsqrt(var + BN_EPS)
        offs = beta - mean * scale
        return z * scale + offs                                   # (Cout, B*L)

    # ---- head block: feature_dim -> state_dim, dilation 1 ----
    x_halves = [x_ref[bi].astype(jnp.float32) for bi in range(B)]
    x = block(x_halves, hw_ref[...], hb_ref[...], hg_ref[...], hbe_ref[...], 1)
    st_scratch[pl.ds(0, S), :] = x

    # ---- 7 residual blocks ----
    for i in range(RES_LAYER_NUM):
        halves = [x[:, bi * L:(bi + 1) * L] for bi in range(B)]
        y = block(halves, rw_ref[i], rb_ref[i], rg_ref[i], rbe_ref[i],
                  DILATIONS[i])
        x = y + x
        st_scratch[pl.ds((i + 1) * S, S), :] = x

    st = st_scratch[...].astype(jnp.bfloat16)                     # (8*S, B*L)

    # ---- fusion 1x1 conv + per-batch global max over the contour ----
    fus = jnp.dot(fw_ref[...], st, preferred_element_type=jnp.float32) + fb_ref[...]
    gmax = jnp.concatenate(
        [jnp.max(fus[:, bi * L:(bi + 1) * L], axis=1, keepdims=True)
         for bi in range(B)], axis=1)                             # (256, B) f32

    # ---- prediction head (gmax rows of pred1 folded into a matvec) ----
    gvec = jnp.dot(w1g_ref[...], gmax.astype(jnp.bfloat16),
                   preferred_element_type=jnp.float32)            # (256, B)
    gfull = jnp.dot(gvec.astype(jnp.bfloat16), sel_ref[...],
                    preferred_element_type=jnp.float32)           # (256, B*L)
    h = jnp.dot(w1s_ref[...], st, preferred_element_type=jnp.float32)
    h = jnp.maximum(h + gfull + b1_ref[...], 0.0)
    h = jnp.dot(w2_ref[...], h.astype(jnp.bfloat16),
                preferred_element_type=jnp.float32) + b2_ref[...]
    h = jnp.maximum(h, 0.0)
    out = jnp.dot(w3_ref[...], h.astype(jnp.bfloat16),
                  preferred_element_type=jnp.float32) + b3_ref[...]
    o_ref[...] = out                                              # (2, B*L)


def _fuse_conv_w(w):
    # (Cout, Cin, K) -> (Cout, K*Cin) matching tap row order k*Cin + c
    cout, cin, k = w.shape
    return jnp.transpose(w, (0, 2, 1)).reshape(cout, k * cin)


def snake_forward(x, params):
    """x: (B, feature_dim, L) float32; params in PyTorch layout (see main)."""
    B, _, L = x.shape
    S = params['head_w'].shape[0]
    bf16 = jnp.bfloat16

    # ---- host-side weight repacking (kernel does zero weight layout ops) ----
    hw = _fuse_conv_w(params['head_w'])                           # (S, K*Fin) f32
    hb = params['head_b'][:, None]
    hg = params['head_gamma'][:, None]
    hbe = params['head_beta'][:, None]

    rw = jnp.transpose(params['res_w'], (0, 1, 3, 2)).reshape(
        RES_LAYER_NUM, S, KSIZE * S)                              # (7, S, K*S) f32
    rb = params['res_b'][:, :, None]
    rg = params['res_gamma'][:, :, None]
    rbe = params['res_beta'][:, :, None]

    fw = params['fusion_w'][:, :, 0].astype(bf16)                 # (256, 8*S)
    fb = params['fusion_b'][:, None]

    w1 = params['pred1_w'][:, :, 0]
    w1g = w1[:, :FUSION_DIM].astype(bf16)                         # (256, 256)
    w1s = w1[:, FUSION_DIM:].astype(bf16)                         # (256, 8*S)
    b1 = params['pred1_b'][:, None]
    w2 = params['pred2_w'][:, :, 0].astype(bf16)                  # (64, 256)
    b2 = params['pred2_b'][:, None]
    w3 = params['pred3_w'][:, :, 0].astype(bf16)                  # (2, 64)
    b3 = params['pred3_b'][:, None]

    # per-batch lane-block selection matrix: sel[b, b*L + l] = 1
    sel = (jnp.arange(B)[:, None] ==
           (jnp.arange(B * L)[None, :] // L)).astype(bf16)        # (B, B*L)

    args = (x, hw, hb, hg, hbe, rw, rb, rg, rbe, fw, fb,
            w1g, w1s, b1, w2, b2, w3, b3, sel)
    vspec = pl.BlockSpec(memory_space=pltpu.MemorySpace.VMEM)

    out = pl.pallas_call(
        _snake_kernel,
        out_shape=jax.ShapeDtypeStruct((2, B * L), jnp.float32),
        in_specs=[vspec] * len(args),
        out_specs=vspec,
        scratch_shapes=[pltpu.VMEM(((RES_LAYER_NUM + 1) * S, B * L),
                                   jnp.float32)],
    )(*args)
    # (2, B*L) lane-stacked -> (B, 2, L)
    return jnp.transpose(out.reshape(2, B, L), (1, 0, 2))


# ---------- pure-JAX reference (mirrors the PyTorch code path) ----------
def snake_reference(x, params):
    hp = lax.Precision.HIGHEST

    def dcirc(x, w, b, d):
        pad = N_ADJ * d
        xp = jnp.concatenate([x[..., -pad:], x, x[..., :pad]], axis=2)
        y = lax.conv_general_dilated(
            xp, w, window_strides=(1,), padding='VALID', rhs_dilation=(d,),
            dimension_numbers=('NCH', 'OIH', 'NCH'), precision=hp)
        return y + b[None, :, None]

    def bn(x, g, be):
        mean = jnp.mean(x, axis=(0, 2), keepdims=True)
        var = jnp.mean((x - mean) ** 2, axis=(0, 2), keepdims=True)
        return g[None, :, None] * (x - mean) / jnp.sqrt(var + BN_EPS) + be[None, :, None]

    def block(x, w, b, g, be, d):
        return bn(jax.nn.relu(dcirc(x, w, b, d)), g, be)

    def conv1x1(x, w, b):
        return jnp.einsum('oi,bil->bol', w[:, :, 0], x, precision=hp) + b[None, :, None]

    x = block(x, params['head_w'], params['head_b'],
              params['head_gamma'], params['head_beta'], 1)
    states = [x]
    for i in range(RES_LAYER_NUM):
        x = block(x, params['res_w'][i], params['res_b'][i],
                  params['res_gamma'][i], params['res_beta'][i], DILATIONS[i]) + x
        states.append(x)
    state = jnp.concatenate(states, axis=1)
    g = jnp.max(conv1x1(state, params['fusion_w'], params['fusion_b']),
                axis=2, keepdims=True)
    g = jnp.broadcast_to(g, (g.shape[0], g.shape[1], state.shape[2]))
    state = jnp.concatenate([g, state], axis=1)
    h = jax.nn.relu(conv1x1(state, params['pred1_w'], params['pred1_b']))
    h = jax.nn.relu(conv1x1(h, params['pred2_w'], params['pred2_b']))
    return conv1x1(h, params['pred3_w'], params['pred3_b'])


if __name__ == "__main__":
    B, FEATURE_DIM, STATE_DIM, L = 2, 6, 8, 128
    CAT = STATE_DIM * (RES_LAYER_NUM + 1)

    key = jax.random.PRNGKey(0)
    keys = jax.random.split(key, 20)

    def nrm(k, shape, scale=0.1):
        return scale * jax.random.normal(k, shape, dtype=jnp.float32)

    params = {
        'head_w': nrm(keys[0], (STATE_DIM, FEATURE_DIM, KSIZE)),
        'head_b': nrm(keys[1], (STATE_DIM,)),
        'head_gamma': 1.0 + nrm(keys[2], (STATE_DIM,), 0.05),
        'head_beta': nrm(keys[3], (STATE_DIM,), 0.05),
        'res_w': nrm(keys[4], (RES_LAYER_NUM, STATE_DIM, STATE_DIM, KSIZE)),
        'res_b': nrm(keys[5], (RES_LAYER_NUM, STATE_DIM)),
        'res_gamma': 1.0 + nrm(keys[6], (RES_LAYER_NUM, STATE_DIM), 0.05),
        'res_beta': nrm(keys[7], (RES_LAYER_NUM, STATE_DIM), 0.05),
        'fusion_w': nrm(keys[8], (FUSION_DIM, CAT, 1)),
        'fusion_b': nrm(keys[9], (FUSION_DIM,)),
        'pred1_w': nrm(keys[10], (256, CAT + FUSION_DIM, 1)),
        'pred1_b': nrm(keys[11], (256,)),
        'pred2_w': nrm(keys[12], (64, 256, 1)),
        'pred2_b': nrm(keys[13], (64,)),
        'pred3_w': nrm(keys[14], (2, 64, 1)),
        'pred3_b': nrm(keys[15], (2,)),
    }
    x = jax.random.normal(keys[16], (B, FEATURE_DIM, L), dtype=jnp.float32)

    out = jax.block_until_ready(snake_forward(x, params))
    ref = jax.block_until_ready(snake_reference(x, params))

    assert out.shape == (B, 2, L), out.shape
    rel_err = float(jnp.max(jnp.abs(out - ref)) / (jnp.max(jnp.abs(ref)) + 1e-6))
    if rel_err > 2e-2:
        raise AssertionError(f"kernel mismatch vs reference: rel_err={rel_err}")
    print("KERNEL_OK")
</pallas_src>

<mosaic_0001>
module attributes {stable_mosaic.version = 11 : i64} {
  func.func @_snake_kernel(%arg0: memref<2x6x128xf32, #tpu.memory_space<vmem>>, %arg1: memref<8x54xf32, #tpu.memory_space<vmem>>, %arg2: memref<8x1xf32, #tpu.memory_space<vmem>>, %arg3: memref<8x1xf32, #tpu.memory_space<vmem>>, %arg4: memref<8x1xf32, #tpu.memory_space<vmem>>, %arg5: memref<7x8x72xf32, #tpu.memory_space<vmem>>, %arg6: memref<7x8x1xf32, #tpu.memory_space<vmem>>, %arg7: memref<7x8x1xf32, #tpu.memory_space<vmem>>, %arg8: memref<7x8x1xf32, #tpu.memory_space<vmem>>, %arg9: memref<256x64xbf16, #tpu.memory_space<vmem>>, %arg10: memref<256x1xf32, #tpu.memory_space<vmem>>, %arg11: memref<256x256xbf16, #tpu.memory_space<vmem>>, %arg12: memref<256x64xbf16, #tpu.memory_space<vmem>>, %arg13: memref<256x1xf32, #tpu.memory_space<vmem>>, %arg14: memref<64x256xbf16, #tpu.memory_space<vmem>>, %arg15: memref<64x1xf32, #tpu.memory_space<vmem>>, %arg16: memref<2x64xbf16, #tpu.memory_space<vmem>>, %arg17: memref<2x1xf32, #tpu.memory_space<vmem>>, %arg18: memref<2x256xbf16, #tpu.memory_space<vmem>>, %arg19: memref<2x256xf32, #tpu.memory_space<vmem>>, %arg20: memref<64x256xf32, #tpu.memory_space<vmem>>) attributes {dimension_semantics = [], scalar_prefetch = 0 : i64, scratch_operands = 1 : i64, tpu.core_type = #tpu.core_type<tc>} {
    %c0 = arith.constant 0 : index
    %c0_0 = arith.constant 0 : index
    %c0_1 = arith.constant 0 : index
    %0 = vector.load %arg0[%c0, %c0_0, %c0_1] : memref<2x6x128xf32, #tpu.memory_space<vmem>>, vector<1x6x128xf32>
    %1 = vector.shape_cast %0 : vector<1x6x128xf32> to vector<6x128xf32>
    %c1 = arith.constant 1 : index
    %c0_2 = arith.constant 0 : index
    %c0_3 = arith.constant 0 : index
    %2 = vector.load %arg0[%c1, %c0_2, %c0_3] : memref<2x6x128xf32, #tpu.memory_space<vmem>>, vector<1x6x128xf32>
    %3 = vector.shape_cast %2 : vector<1x6x128xf32> to vector<6x128xf32>
    %c0_4 = arith.constant 0 : index
    %c0_5 = arith.constant 0 : index
    %4 = vector.load %arg1[%c0_4, %c0_5] : memref<8x54xf32, #tpu.memory_space<vmem>>, vector<8x54xf32>
    %c0_6 = arith.constant 0 : index
    %c0_7 = arith.constant 0 : index
    %5 = vector.load %arg2[%c0_6, %c0_7] : memref<8x1xf32, #tpu.memory_space<vmem>>, vector<8x1xf32>
    %c0_8 = arith.constant 0 : index
    %c0_9 = arith.constant 0 : index
    %6 = vector.load %arg3[%c0_8, %c0_9] : memref<8x1xf32, #tpu.memory_space<vmem>>, vector<8x1xf32>
    %c0_10 = arith.constant 0 : index
    %c0_11 = arith.constant 0 : index
    %7 = vector.load %arg4[%c0_10, %c0_11] : memref<8x1xf32, #tpu.memory_space<vmem>>, vector<8x1xf32>
    %c4_i32 = arith.constant 4 : i32
    %8 = tpu.dynamic_rotate %1 by %c4_i32 dim 1 : vector<6x128xf32>, i32 -> vector<6x128xf32>
    %c3_i32 = arith.constant 3 : i32
    %9 = tpu.dynamic_rotate %1 by %c3_i32 dim 1 : vector<6x128xf32>, i32 -> vector<6x128xf32>
    %c2_i32 = arith.constant 2 : i32
    %10 = tpu.dynamic_rotate %1 by %c2_i32 dim 1 : vector<6x128xf32>, i32 -> vector<6x128xf32>
    %c1_i32 = arith.constant 1 : i32
    %11 = tpu.dynamic_rotate %1 by %c1_i32 dim 1 : vector<6x128xf32>, i32 -> vector<6x128xf32>
    %c127_i32 = arith.constant 127 : i32
    %12 = tpu.dynamic_rotate %1 by %c127_i32 dim 1 : vector<6x128xf32>, i32 -> vector<6x128xf32>
    %c126_i32 = arith.constant 126 : i32
    %13 = tpu.dynamic_rotate %1 by %c126_i32 dim 1 : vector<6x128xf32>, i32 -> vector<6x128xf32>
    %c125_i32 = arith.constant 125 : i32
    %14 = tpu.dynamic_rotate %1 by %c125_i32 dim 1 : vector<6x128xf32>, i32 -> vector<6x128xf32>
    %c124_i32 = arith.constant 124 : i32
    %15 = tpu.dynamic_rotate %1 by %c124_i32 dim 1 : vector<6x128xf32>, i32 -> vector<6x128xf32>
    %16 = tpu.concatenate %8, %9, %10, %11, %1, %12, %13, %14, %15 in 0 : vector<6x128xf32>, vector<6x128xf32>, vector<6x128xf32>, vector<6x128xf32>, vector<6x128xf32>, vector<6x128xf32>, vector<6x128xf32>, vector<6x128xf32>, vector<6x128xf32> -> vector<54x128xf32>
    %c4_i32_12 = arith.constant 4 : i32
    %17 = tpu.dynamic_rotate %3 by %c4_i32_12 dim 1 : vector<6x128xf32>, i32 -> vector<6x128xf32>
    %c3_i32_13 = arith.constant 3 : i32
    %18 = tpu.dynamic_rotate %3 by %c3_i32_13 dim 1 : vector<6x128xf32>, i32 -> vector<6x128xf32>
    %c2_i32_14 = arith.constant 2 : i32
    %19 = tpu.dynamic_rotate %3 by %c2_i32_14 dim 1 : vector<6x128xf32>, i32 -> vector<6x128xf32>
    %c1_i32_15 = arith.constant 1 : i32
    %20 = tpu.dynamic_rotate %3 by %c1_i32_15 dim 1 : vector<6x128xf32>, i32 -> vector<6x128xf32>
    %c127_i32_16 = arith.constant 127 : i32
    %21 = tpu.dynamic_rotate %3 by %c127_i32_16 dim 1 : vector<6x128xf32>, i32 -> vector<6x128xf32>
    %c126_i32_17 = arith.constant 126 : i32
    %22 = tpu.dynamic_rotate %3 by %c126_i32_17 dim 1 : vector<6x128xf32>, i32 -> vector<6x128xf32>
    %c125_i32_18 = arith.constant 125 : i32
    %23 = tpu.dynamic_rotate %3 by %c125_i32_18 dim 1 : vector<6x128xf32>, i32 -> vector<6x128xf32>
    %c124_i32_19 = arith.constant 124 : i32
    %24 = tpu.dynamic_rotate %3 by %c124_i32_19 dim 1 : vector<6x128xf32>, i32 -> vector<6x128xf32>
    %25 = tpu.concatenate %17, %18, %19, %20, %3, %21, %22, %23, %24 in 0 : vector<6x128xf32>, vector<6x128xf32>, vector<6x128xf32>, vector<6x128xf32>, vector<6x128xf32>, vector<6x128xf32>, vector<6x128xf32>, vector<6x128xf32>, vector<6x128xf32> -> vector<54x128xf32>
    %26 = tpu.concatenate %16, %25 in 1 : vector<54x128xf32>, vector<54x128xf32> -> vector<54x256xf32>
    %cst = arith.constant dense<0.000000e+00> : vector<8x256xf32>
    %27 = tpu.matmul %4, %26, %cst {dimension_numbers = #tpu.dot_dimension_numbers<[1], [0], [0], [1], [0, 0, 1, 1], [], []>} : vector<8x54xf32>, vector<54x256xf32>, vector<8x256xf32> -> vector<8x256xf32>
    %28 = vector.broadcast %5 : vector<8x1xf32> to vector<8x256xf32>
    %29 = arith.addf %27, %28 : vector<8x256xf32>
    %cst_20 = arith.constant 0.000000e+00 : f32
    %30 = vector.broadcast %cst_20 : f32 to vector<8x256xf32>
    %31 = arith.maximumf %29, %30 : vector<8x256xf32>
    %cst_21 = arith.constant dense<0.000000e+00> : vector<8xf32>
    %32 = vector.multi_reduction <add>, %31, %cst_21 [1] : vector<8x256xf32> to vector<8xf32>
    %33 = vector.shape_cast %32 : vector<8xf32> to vector<8x1xf32>
    %cst_22 = arith.constant 3.906250e-03 : f32
    %34 = vector.broadcast %cst_22 : f32 to vector<8x1xf32>
    %35 = arith.mulf %33, %34 : vector<8x1xf32>
    %36 = arith.mulf %31, %31 : vector<8x256xf32>
    %cst_23 = arith.constant dense<0.000000e+00> : vector<8xf32>
    %37 = vector.multi_reduction <add>, %36, %cst_23 [1] : vector<8x256xf32> to vector<8xf32>
    %38 = vector.shape_cast %37 : vector<8xf32> to vector<8x1xf32>
    %cst_24 = arith.constant 3.906250e-03 : f32
    %39 = vector.broadcast %cst_24 : f32 to vector<8x1xf32>
    %40 = arith.mulf %38, %39 : vector<8x1xf32>
    %41 = arith.mulf %35, %35 : vector<8x1xf32>
    %42 = arith.subf %40, %41 : vector<8x1xf32>
    %cst_25 = arith.constant 9.99999974E-6 : f32
    %43 = vector.broadcast %cst_25 : f32 to vector<8x1xf32>
    %44 = arith.addf %42, %43 : vector<8x1xf32>
    %45 = math.rsqrt %44 : vector<8x1xf32>
    %46 = arith.mulf %6, %45 : vector<8x1xf32>
    %47 = arith.mulf %35, %46 : vector<8x1xf32>
    %48 = arith.subf %7, %47 : vector<8x1xf32>
    %49 = vector.broadcast %46 : vector<8x1xf32> to vector<8x256xf32>
    %50 = arith.mulf %31, %49 : vector<8x256xf32>
    %51 = vector.broadcast %48 : vector<8x1xf32> to vector<8x256xf32>
    %52 = arith.addf %50, %51 : vector<8x256xf32>
    %c0_26 = arith.constant 0 : index
    %c0_27 = arith.constant 0 : index
    %53 = vector.load %arg20[%c0_26, %c0_27] : memref<64x256xf32, #tpu.memory_space<vmem>>, vector<8x256xf32>
    tpu.vector_store %arg20[%c0_26, %c0_27], %52 {strides = array<i32>} : memref<64x256xf32, #tpu.memory_space<vmem>>, vector<8x256xf32>,
    %54 = vector.extract_strided_slice %52 {offsets = [0, 0], sizes = [8, 128], strides = [1, 1]} : vector<8x256xf32> to vector<8x128xf32>
    %55 = vector.extract_strided_slice %52 {offsets = [0, 128], sizes = [8, 128], strides = [1, 1]} : vector<8x256xf32> to vector<8x128xf32>
    %c0_28 = arith.constant 0 : index
    %c0_29 = arith.constant 0 : index
    %c0_30 = arith.constant 0 : index
    %56 = vector.load %arg5[%c0_28, %c0_29, %c0_30] : memref<7x8x72xf32, #tpu.memory_space<vmem>>, vector<1x8x72xf32>
    %57 = vector.shape_cast %56 : vector<1x8x72xf32> to vector<8x72xf32>
    %c0_31 = arith.constant 0 : index
    %c0_32 = arith.constant 0 : index
    %c0_33 = arith.constant 0 : index
    %58 = vector.load %arg6[%c0_31, %c0_32, %c0_33] : memref<7x8x1xf32, #tpu.memory_space<vmem>>, vector<1x8x1xf32>
    %59 = vector.shape_cast %58 : vector<1x8x1xf32> to vector<8x1xf32>
    %c0_34 = arith.constant 0 : index
    %c0_35 = arith.constant 0 : index
    %c0_36 = arith.constant 0 : index
    %60 = vector.load %arg7[%c0_34, %c0_35, %c0_36] : memref<7x8x1xf32, #tpu.memory_space<vmem>>, vector<1x8x1xf32>
    %61 = vector.shape_cast %60 : vector<1x8x1xf32> to vector<8x1xf32>
    %c0_37 = arith.constant 0 : index
    %c0_38 = arith.constant 0 : index
    %c0_39 = arith.constant 0 : index
    %62 = vector.load %arg8[%c0_37, %c0_38, %c0_39] : memref<7x8x1xf32, #tpu.memory_space<vmem>>, vector<1x8x1xf32>
    %63 = vector.shape_cast %62 : vector<1x8x1xf32> to vector<8x1xf32>
    %c4_i32_40 = arith.constant 4 : i32
    %64 = tpu.dynamic_rotate %54 by %c4_i32_40 dim 1 : vector<8x128xf32>, i32 -> vector<8x128xf32>
    %c3_i32_41 = arith.constant 3 : i32
    %65 = tpu.dynamic_rotate %54 by %c3_i32_41 dim 1 : vector<8x128xf32>, i32 -> vector<8x128xf32>
    %c2_i32_42 = arith.constant 2 : i32
    %66 = tpu.dynamic_rotate %54 by %c2_i32_42 dim 1 : vector<8x128xf32>, i32 -> vector<8x128xf32>
    %c1_i32_43 = arith.constant 1 : i32
    %67 = tpu.dynamic_rotate %54 by %c1_i32_43 dim 1 : vector<8x128xf32>, i32 -> vector<8x128xf32>
    %c127_i32_44 = arith.constant 127 : i32
    %68 = tpu.dynamic_rotate %54 by %c127_i32_44 dim 1 : vector<8x128xf32>, i32 -> vector<8x128xf32>
    %c126_i32_45 = arith.constant 126 : i32
    %69 = tpu.dynamic_rotate %54 by %c126_i32_45 dim 1 : vector<8x128xf32>, i32 -> vector<8x128xf32>
    %c125_i32_46 = arith.constant 125 : i32
    %70 = tpu.dynamic_rotate %54 by %c125_i32_46 dim 1 : vector<8x128xf32>, i32 -> vector<8x128xf32>
    %c124_i32_47 = arith.constant 124 : i32
    %71 = tpu.dynamic_rotate %54 by %c124_i32_47 dim 1 : vector<8x128xf32>, i32 -> vector<8x128xf32>
    %72 = tpu.concatenate %64, %65, %66, %67, %54, %68, %69, %70, %71 in 0 : vector<8x128xf32>, vector<8x128xf32>, vector<8x128xf32>, vector<8x128xf32>, vector<8x128xf32>, vector<8x128xf32>, vector<8x128xf32>, vector<8x128xf32>, vector<8x128xf32> -> vector<72x128xf32>
    %c4_i32_48 = arith.constant 4 : i32
    %73 = tpu.dynamic_rotate %55 by %c4_i32_48 dim 1 : vector<8x128xf32>, i32 -> vector<8x128xf32>
    %c3_i32_49 = arith.constant 3 : i32
    %74 = tpu.dynamic_rotate %55 by %c3_i32_49 dim 1 : vector<8x128xf32>, i32 -> vector<8x128xf32>
    %c2_i32_50 = arith.constant 2 : i32
    %75 = tpu.dynamic_rotate %55 by %c2_i32_50 dim 1 : vector<8x128xf32>, i32 -> vector<8x128xf32>
    %c1_i32_51 = arith.constant 1 : i32
    %76 = tpu.dynamic_rotate %55 by %c1_i32_51 dim 1 : vector<8x128xf32>, i32 -> vector<8x128xf32>
    %c127_i32_52 = arith.constant 127 : i32
    %77 = tpu.dynamic_rotate %55 by %c127_i32_52 dim 1 : vector<8x128xf32>, i32 -> vector<8x128xf32>
    %c126_i32_53 = arith.constant 126 : i32
    %78 = tpu.dynamic_rotate %55 by %c126_i32_53 dim 1 : vector<8x128xf32>, i32 -> vector<8x128xf32>
    %c125_i32_54 = arith.constant 125 : i32
    %79 = tpu.dynamic_rotate %55 by %c125_i32_54 dim 1 : vector<8x128xf32>, i32 -> vector<8x128xf32>
    %c124_i32_55 = arith.constant 124 : i32
    %80 = tpu.dynamic_rotate %55 by %c124_i32_55 dim 1 : vector<8x128xf32>, i32 -> vector<8x128xf32>
    %81 = tpu.concatenate %73, %74, %75, %76, %55, %77, %78, %79, %80 in 0 : vector<8x128xf32>, vector<8x128xf32>, vector<8x128xf32>, vector<8x128xf32>, vector<8x128xf32>, vector<8x128xf32>, vector<8x128xf32>, vector<8x128xf32>, vector<8x128xf32> -> vector<72x128xf32>
    %82 = tpu.concatenate %72, %81 in 1 : vector<72x128xf32>, vector<72x128xf32> -> vector<72x256xf32>
    %cst_56 = arith.constant dense<0.000000e+00> : vector<8x256xf32>
    %83 = tpu.matmul %57, %82, %cst_56 {dimension_numbers = #tpu.dot_dimension_numbers<[1], [0], [0], [1], [0, 0, 1, 1], [], []>} : vector<8x72xf32>, vector<72x256xf32>, vector<8x256xf32> -> vector<8x256xf32>
    %84 = vector.broadcast %59 : vector<8x1xf32> to vector<8x256xf32>
    %85 = arith.addf %83, %84 : vector<8x256xf32>
    %cst_57 = arith.constant 0.000000e+00 : f32
    %86 = vector.broadcast %cst_57 : f32 to vector<8x256xf32>
    %87 = arith.maximumf %85, %86 : vector<8x256xf32>
    %cst_58 = arith.constant dense<0.000000e+00> : vector<8xf32>
    %88 = vector.multi_reduction <add>, %87, %cst_58 [1] : vector<8x256xf32> to vector<8xf32>
    %89 = vector.shape_cast %88 : vector<8xf32> to vector<8x1xf32>
    %cst_59 = arith.constant 3.906250e-03 : f32
    %90 = vector.broadcast %cst_59 : f32 to vector<8x1xf32>
    %91 = arith.mulf %89, %90 : vector<8x1xf32>
    %92 = arith.mulf %87, %87 : vector<8x256xf32>
    %cst_60 = arith.constant dense<0.000000e+00> : vector<8xf32>
    %93 = vector.multi_reduction <add>, %92, %cst_60 [1] : vector<8x256xf32> to vector<8xf32>
    %94 = vector.shape_cast %93 : vector<8xf32> to vector<8x1xf32>
    %cst_61 = arith.constant 3.906250e-03 : f32
    %95 = vector.broadcast %cst_61 : f32 to vector<8x1xf32>
    %96 = arith.mulf %94, %95 : vector<8x1xf32>
    %97 = arith.mulf %91, %91 : vector<8x1xf32>
    %98 = arith.subf %96, %97 : vector<8x1xf32>
    %cst_62 = arith.constant 9.99999974E-6 : f32
    %99 = vector.broadcast %cst_62 : f32 to vector<8x1xf32>
    %100 = arith.addf %98, %99 : vector<8x1xf32>
    %101 = math.rsqrt %100 : vector<8x1xf32>
    %102 = arith.mulf %61, %101 : vector<8x1xf32>
    %103 = arith.mulf %91, %102 : vector<8x1xf32>
    %104 = arith.subf %63, %103 : vector<8x1xf32>
    %105 = vector.broadcast %102 : vector<8x1xf32> to vector<8x256xf32>
    %106 = arith.mulf %87, %105 : vector<8x256xf32>
    %107 = vector.broadcast %104 : vector<8x1xf32> to vector<8x256xf32>
    %108 = arith.addf %106, %107 : vector<8x256xf32>
    %109 = arith.addf %108, %52 : vector<8x256xf32>
    %c8 = arith.constant 8 : index
    %c0_63 = arith.constant 0 : index
    %110 = vector.load %arg20[%c8, %c0_63] : memref<64x256xf32, #tpu.memory_space<vmem>>, vector<8x256xf32>
    tpu.vector_store %arg20[%c8, %c0_63], %109 {strides = array<i32>} : memref<64x256xf32, #tpu.memory_space<vmem>>, vector<8x256xf32>,
    %111 = vector.extract_strided_slice %109 {offsets = [0, 0], sizes = [8, 128], strides = [1, 1]} : vector<8x256xf32> to vector<8x128xf32>
    %112 = vector.extract_strided_slice %109 {offsets = [0, 128], sizes = [8, 128], strides = [1, 1]} : vector<8x256xf32> to vector<8x128xf32>
    %c1_64 = arith.constant 1 : index
    %c0_65 = arith.constant 0 : index
    %c0_66 = arith.constant 0 : index
    %113 = vector.load %arg5[%c1_64, %c0_65, %c0_66] : memref<7x8x72xf32, #tpu.memory_space<vmem>>, vector<1x8x72xf32>
    %114 = vector.shape_cast %113 : vector<1x8x72xf32> to vector<8x72xf32>
    %c1_67 = arith.constant 1 : index
    %c0_68 = arith.constant 0 : index
    %c0_69 = arith.constant 0 : index
    %115 = vector.load %arg6[%c1_67, %c0_68, %c0_69] : memref<7x8x1xf32, #tpu.memory_space<vmem>>, vector<1x8x1xf32>
    %116 = vector.shape_cast %115 : vector<1x8x1xf32> to vector<8x1xf32>
    %c1_70 = arith.constant 1 : index
    %c0_71 = arith.constant 0 : index
    %c0_72 = arith.constant 0 : index
    %117 = vector.load %arg7[%c1_70, %c0_71, %c0_72] : memref<7x8x1xf32, #tpu.memory_space<vmem>>, vector<1x8x1xf32>
    %118 = vector.shape_cast %117 : vector<1x8x1xf32> to vector<8x1xf32>
    %c1_73 = arith.constant 1 : index
    %c0_74 = arith.constant 0 : index
    %c0_75 = arith.constant 0 : index
    %119 = vector.load %arg8[%c1_73, %c0_74, %c0_75] : memref<7x8x1xf32, #tpu.memory_space<vmem>>, vector<1x8x1xf32>
    %120 = vector.shape_cast %119 : vector<1x8x1xf32> to vector<8x1xf32>
    %c4_i32_76 = arith.constant 4 : i32
    %121 = tpu.dynamic_rotate %111 by %c4_i32_76 dim 1 : vector<8x128xf32>, i32 -> vector<8x128xf32>
    %c3_i32_77 = arith.constant 3 : i32
    %122 = tpu.dynamic_rotate %111 by %c3_i32_77 dim 1 : vector<8x128xf32>, i32 -> vector<8x128xf32>
    %c2_i32_78 = arith.constant 2 : i32
    %123 = tpu.dynamic_rotate %111 by %c2_i32_78 dim 1 : vector<8x128xf32>, i32 -> vector<8x128xf32>
    %c1_i32_79 = arith.constant 1 : i32
    %124 = tpu.dynamic_rotate %111 by %c1_i32_79 dim 1 : vector<8x128xf32>, i32 -> vector<8x128xf32>
    %c127_i32_80 = arith.constant 127 : i32
    %125 = tpu.dynamic_rotate %111 by %c127_i32_80 dim 1 : vector<8x128xf32>, i32 -> vector<8x128xf32>
    %c126_i32_81 = arith.constant 126 : i32
    %126 = tpu.dynamic_rotate %111 by %c126_i32_81 dim 1 : vector<8x128xf32>, i32 -> vector<8x128xf32>
    %c125_i32_82 = arith.constant 125 : i32
    %127 = tpu.dynamic_rotate %111 by %c125_i32_82 dim 1 : vector<8x128xf32>, i32 -> vector<8x128xf32>
    %c124_i32_83 = arith.constant 124 : i32
    %128 = tpu.dynamic_rotate %111 by %c124_i32_83 dim 1 : vector<8x128xf32>, i32 -> vector<8x128xf32>
    %129 = tpu.concatenate %121, %122, %123, %124, %111, %125, %126, %127, %128 in 0 : vector<8x128xf32>, vector<8x128xf32>, vector<8x128xf32>, vector<8x128xf32>, vector<8x128xf32>, vector<8x128xf32>, vector<8x128xf32>, vector<8x128xf32>, vector<8x128xf32> -> vector<72x128xf32>
    %c4_i32_84 = arith.constant 4 : i32
    %130 = tpu.dynamic_rotate %112 by %c4_i32_84 dim 1 : vector<8x128xf32>, i32 -> vector<8x128xf32>
    %c3_i32_85 = arith.constant 3 : i32
    %131 = tpu.dynamic_rotate %112 by %c3_i32_85 dim 1 : vector<8x128xf32>, i32 -> vector<8x128xf32>
    %c2_i32_86 = arith.constant 2 : i32
    %132 = tpu.dynamic_rotate %112 by %c2_i32_86 dim 1 : vector<8x128xf32>, i32 -> vector<8x128xf32>
    %c1_i32_87 = arith.constant 1 : i32
    %133 = tpu.dynamic_rotate %112 by %c1_i32_87 dim 1 : vector<8x128xf32>, i32 -> vector<8x128xf32>
    %c127_i32_88 = arith.constant 127 : i32
    %134 = tpu.dynamic_rotate %112 by %c127_i32_88 dim 1 : vector<8x128xf32>, i32 -> vector<8x128xf32>
    %c126_i32_89 = arith.constant 126 : i32
    %135 = tpu.dynamic_rotate %112 by %c126_i32_89 dim 1 : vector<8x128xf32>, i32 -> vector<8x128xf32>
    %c125_i32_90 = arith.constant 125 : i32
    %136 = tpu.dynamic_rotate %112 by %c125_i32_90 dim 1 : vector<8x128xf32>, i32 -> vector<8x128xf32>
    %c124_i32_91 = arith.constant 124 : i32
    %137 = tpu.dynamic_rotate %112 by %c124_i32_91 dim 1 : vector<8x128xf32>, i32 -> vector<8x128xf32>
    %138 = tpu.concatenate %130, %131, %132, %133, %112, %134, %135, %136, %137 in 0 : vector<8x128xf32>, vector<8x128xf32>, vector<8x128xf32>, vector<8x128xf32>, vector<8x128xf32>, vector<8x128xf32>, vector<8x128xf32>, vector<8x128xf32>, vector<8x128xf32> -> vector<72x128xf32>
    %139 = tpu.concatenate %129, %138 in 1 : vector<72x128xf32>, vector<72x128xf32> -> vector<72x256xf32>
    %cst_92 = arith.constant dense<0.000000e+00> : vector<8x256xf32>
    %140 = tpu.matmul %114, %139, %cst_92 {dimension_numbers = #tpu.dot_dimension_numbers<[1], [0], [0], [1], [0, 0, 1, 1], [], []>} : vector<8x72xf32>, vector<72x256xf32>, vector<8x256xf32> -> vector<8x256xf32>
    %141 = vector.broadcast %116 : vector<8x1xf32> to vector<8x256xf32>
    %142 = arith.addf %140, %141 : vector<8x256xf32>
    %cst_93 = arith.constant 0.000000e+00 : f32
    %143 = vector.broadcast %cst_93 : f32 to vector<8x256xf32>
    %144 = arith.maximumf %142, %143 : vector<8x256xf32>
    %cst_94 = arith.constant dense<0.000000e+00> : vector<8xf32>
    %145 = vector.multi_reduction <add>, %144, %cst_94 [1] : vector<8x256xf32> to vector<8xf32>
    %146 = vector.shape_cast %145 : vector<8xf32> to vector<8x1xf32>
    %cst_95 = arith.constant 3.906250e-03 : f32
    %147 = vector.broadcast %cst_95 : f32 to vector<8x1xf32>
    %148 = arith.mulf %146, %147 : vector<8x1xf32>
    %149 = arith.mulf %144, %144 : vector<8x256xf32>
    %cst_96 = arith.constant dense<0.000000e+00> : vector<8xf32>
    %150 = vector.multi_reduction <add>, %149, %cst_96 [1] : vector<8x256xf32> to vector<8xf32>
    %151 = vector.shape_cast %150 : vector<8xf32> to vector<8x1xf32>
    %cst_97 = arith.constant 3.906250e-03 : f32
    %152 = vector.broadcast %cst_97 : f32 to vector<8x1xf32>
    %153 = arith.mulf %151, %152 : vector<8x1xf32>
    %154 = arith.mulf %148, %148 : vector<8x1xf32>
    %155 = arith.subf %153, %154 : vector<8x1xf32>
    %cst_98 = arith.constant 9.99999974E-6 : f32
    %156 = vector.broadcast %cst_98 : f32 to vector<8x1xf32>
    %157 = arith.addf %155, %156 : vector<8x1xf32>
    %158 = math.rsqrt %157 : vector<8x1xf32>
    %159 = arith.mulf %118, %158 : vector<8x1xf32>
    %160 = arith.mulf %148, %159 : vector<8x1xf32>
    %161 = arith.subf %120, %160 : vector<8x1xf32>
    %162 = vector.broadcast %159 : vector<8x1xf32> to vector<8x256xf32>
    %163 = arith.mulf %144, %162 : vector<8x256xf32>
    %164 = vector.broadcast %161 : vector<8x1xf32> to vector<8x256xf32>
    %165 = arith.addf %163, %164 : vector<8x256xf32>
    %166 = arith.addf %165, %109 : vector<8x256xf32>
    %c16 = arith.constant 16 : index
    %c0_99 = arith.constant 0 : index
    %167 = vector.load %arg20[%c16, %c0_99] : memref<64x256xf32, #tpu.memory_space<vmem>>, vector<8x256xf32>
    tpu.vector_store %arg20[%c16, %c0_99], %166 {strides = array<i32>} : memref<64x256xf32, #tpu.memory_space<vmem>>, vector<8x256xf32>,
    %168 = vector.extract_strided_slice %166 {offsets = [0, 0], sizes = [8, 128], strides = [1, 1]} : vector<8x256xf32> to vector<8x128xf32>
    %169 = vector.extract_strided_slice %166 {offsets = [0, 128], sizes = [8, 128], strides = [1, 1]} : vector<8x256xf32> to vector<8x128xf32>
    %c2 = arith.constant 2 : index
    %c0_100 = arith.constant 0 : index
    %c0_101 = arith.constant 0 : index
    %170 = vector.load %arg5[%c2, %c0_100, %c0_101] : memref<7x8x72xf32, #tpu.memory_space<vmem>>, vector<1x8x72xf32>
    %171 = vector.shape_cast %170 : vector<1x8x72xf32> to vector<8x72xf32>
    %c2_102 = arith.constant 2 : index
    %c0_103 = arith.constant 0 : index
    %c0_104 = arith.constant 0 : index
    %172 = vector.load %arg6[%c2_102, %c0_103, %c0_104] : memref<7x8x1xf32, #tpu.memory_space<vmem>>, vector<1x8x1xf32>
    %173 = vector.shape_cast %172 : vector<1x8x1xf32> to vector<8x1xf32>
    %c2_105 = arith.constant 2 : index
    %c0_106 = arith.constant 0 : index
    %c0_107 = arith.constant 0 : index
    %174 = vector.load %arg7[%c2_105, %c0_106, %c0_107] : memref<7x8x1xf32, #tpu.memory_space<vmem>>, vector<1x8x1xf32>
    %175 = vector.shape_cast %174 : vector<1x8x1xf32> to vector<8x1xf32>
    %c2_108 = arith.constant 2 : index
    %c0_109 = arith.constant 0 : index
    %c0_110 = arith.constant 0 : index
    %176 = vector.load %arg8[%c2_108, %c0_109, %c0_110] : memref<7x8x1xf32, #tpu.memory_space<vmem>>, vector<1x8x1xf32>
    %177 = vector.shape_cast %176 : vector<1x8x1xf32> to vector<8x1xf32>
    %c4_i32_111 = arith.constant 4 : i32
    %178 = tpu.dynamic_rotate %168 by %c4_i32_111 dim 1 : vector<8x128xf32>, i32 -> vector<8x128xf32>
    %c3_i32_112 = arith.constant 3 : i32
    %179 = tpu.dynamic_rotate %168 by %c3_i32_112 dim 1 : vector<8x128xf32>, i32 -> vector<8x128xf32>
    %c2_i32_113 = arith.constant 2 : i32
    %180 = tpu.dynamic_rotate %168 by %c2_i32_113 dim 1 : vector<8x128xf32>, i32 -> vector<8x128xf32>
    %c1_i32_114 = arith.constant 1 : i32
    %181 = tpu.dynamic_rotate %168 by %c1_i32_114 dim 1 : vector<8x128xf32>, i32 -> vector<8x128xf32>
    %c127_i32_115 = arith.constant 127 : i32
    %182 = tpu.dynamic_rotate %168 by %c127_i32_115 dim 1 : vector<8x128xf32>, i32 -> vector<8x128xf32>
    %c126_i32_116 = arith.constant 126 : i32
    %183 = tpu.dynamic_rotate %168 by %c126_i32_116 dim 1 : vector<8x128xf32>, i32 -> vector<8x128xf32>
    %c125_i32_117 = arith.constant 125 : i32
    %184 = tpu.dynamic_rotate %168 by %c125_i32_117 dim 1 : vector<8x128xf32>, i32 -> vector<8x128xf32>
    %c124_i32_118 = arith.constant 124 : i32
    %185 = tpu.dynamic_rotate %168 by %c124_i32_118 dim 1 : vector<8x128xf32>, i32 -> vector<8x128xf32>
    %186 = tpu.concatenate %178, %179, %180, %181, %168, %182, %183, %184, %185 in 0 : vector<8x128xf32>, vector<8x128xf32>, vector<8x128xf32>, vector<8x128xf32>, vector<8x128xf32>, vector<8x128xf32>, vector<8x128xf32>, vector<8x128xf32>, vector<8x128xf32> -> vector<72x128xf32>
    %c4_i32_119 = arith.constant 4 : i32
    %187 = tpu.dynamic_rotate %169 by %c4_i32_119 dim 1 : vector<8x128xf32>, i32 -> vector<8x128xf32>
    %c3_i32_120 = arith.constant 3 : i32
    %188 = tpu.dynamic_rotate %169 by %c3_i32_120 dim 1 : vector<8x128xf32>, i32 -> vector<8x128xf32>
    %c2_i32_121 = arith.constant 2 : i32
    %189 = tpu.dynamic_rotate %169 by %c2_i32_121 dim 1 : vector<8x128xf32>, i32 -> vector<8x128xf32>
    %c1_i32_122 = arith.constant 1 : i32
    %190 = tpu.dynamic_rotate %169 by %c1_i32_122 dim 1 : vector<8x128xf32>, i32 -> vector<8x128xf32>
    %c127_i32_123 = arith.constant 127 : i32
    %191 = tpu.dynamic_rotate %169 by %c127_i32_123 dim 1 : vector<8x128xf32>, i32 -> vector<8x128xf32>
    %c126_i32_124 = arith.constant 126 : i32
    %192 = tpu.dynamic_rotate %169 by %c126_i32_124 dim 1 : vector<8x128xf32>, i32 -> vector<8x128xf32>
    %c125_i32_125 = arith.constant 125 : i32
    %193 = tpu.dynamic_rotate %169 by %c125_i32_125 dim 1 : vector<8x128xf32>, i32 -> vector<8x128xf32>
    %c124_i32_126 = arith.constant 124 : i32
    %194 = tpu.dynamic_rotate %169 by %c124_i32_126 dim 1 : vector<8x128xf32>, i32 -> vector<8x128xf32>
    %195 = tpu.concatenate %187, %188, %189, %190, %169, %191, %192, %193, %194 in 0 : vector<8x128xf32>, vector<8x128xf32>, vector<8x128xf32>, vector<8x128xf32>, vector<8x128xf32>, vector<8x128xf32>, vector<8x128xf32>, vector<8x128xf32>, vector<8x128xf32> -> vector<72x128xf32>
    %196 = tpu.concatenate %186, %195 in 1 : vector<72x128xf32>, vector<72x128xf32> -> vector<72x256xf32>
    %cst_127 = arith.constant dense<0.000000e+00> : vector<8x256xf32>
    %197 = tpu.matmul %171, %196, %cst_127 {dimension_numbers = #tpu.dot_dimension_numbers<[1], [0], [0], [1], [0, 0, 1, 1], [], []>} : vector<8x72xf32>, vector<72x256xf32>, vector<8x256xf32> -> vector<8x256xf32>
    %198 = vector.broadcast %173 : vector<8x1xf32> to vector<8x256xf32>
    %199 = arith.addf %197, %198 : vector<8x256xf32>
    %cst_128 = arith.constant 0.000000e+00 : f32
    %200 = vector.broadcast %cst_128 : f32 to vector<8x256xf32>
    %201 = arith.maximumf %199, %200 : vector<8x256xf32>
    %cst_129 = arith.constant dense<0.000000e+00> : vector<8xf32>
    %202 = vector.multi_reduction <add>, %201, %cst_129 [1] : vector<8x256xf32> to vector<8xf32>
    %203 = vector.shape_cast %202 : vector<8xf32> to vector<8x1xf32>
    %cst_130 = arith.constant 3.906250e-03 : f32
    %204 = vector.broadcast %cst_130 : f32 to vector<8x1xf32>
    %205 = arith.mulf %203, %204 : vector<8x1xf32>
    %206 = arith.mulf %201, %201 : vector<8x256xf32>
    %cst_131 = arith.constant dense<0.000000e+00> : vector<8xf32>
    %207 = vector.multi_reduction <add>, %206, %cst_131 [1] : vector<8x256xf32> to vector<8xf32>
    %208 = vector.shape_cast %207 : vector<8xf32> to vector<8x1xf32>
    %cst_132 = arith.constant 3.906250e-03 : f32
    %209 = vector.broadcast %cst_132 : f32 to vector<8x1xf32>
    %210 = arith.mulf %208, %209 : vector<8x1xf32>
    %211 = arith.mulf %205, %205 : vector<8x1xf32>
    %212 = arith.subf %210, %211 : vector<8x1xf32>
    %cst_133 = arith.constant 9.99999974E-6 : f32
    %213 = vector.broadcast %cst_133 : f32 to vector<8x1xf32>
    %214 = arith.addf %212, %213 : vector<8x1xf32>
    %215 = math.rsqrt %214 : vector<8x1xf32>
    %216 = arith.mulf %175, %215 : vector<8x1xf32>
    %217 = arith.mulf %205, %216 : vector<8x1xf32>
    %218 = arith.subf %177, %217 : vector<8x1xf32>
    %219 = vector.broadcast %216 : vector<8x1xf32> to vector<8x256xf32>
    %220 = arith.mulf %201, %219 : vector<8x256xf32>
    %221 = vector.broadcast %218 : vector<8x1xf32> to vector<8x256xf32>
    %222 = arith.addf %220, %221 : vector<8x256xf32>
    %223 = arith.addf %222, %166 : vector<8x256xf32>
    %c24 = arith.constant 24 : index
    %c0_134 = arith.constant 0 : index
    %224 = vector.load %arg20[%c24, %c0_134] : memref<64x256xf32, #tpu.memory_space<vmem>>, vector<8x256xf32>
    tpu.vector_store %arg20[%c24, %c0_134], %223 {strides = array<i32>} : memref<64x256xf32, #tpu.memory_space<vmem>>, vector<8x256xf32>,
    %225 = vector.extract_strided_slice %223 {offsets = [0, 0], sizes = [8, 128], strides = [1, 1]} : vector<8x256xf32> to vector<8x128xf32>
    %226 = vector.extract_strided_slice %223 {offsets = [0, 128], sizes = [8, 128], strides = [1, 1]} : vector<8x256xf32> to vector<8x128xf32>
    %c3 = arith.constant 3 : index
    %c0_135 = arith.constant 0 : index
    %c0_136 = arith.constant 0 : index
    %227 = vector.load %arg5[%c3, %c0_135, %c0_136] : memref<7x8x72xf32, #tpu.memory_space<vmem>>, vector<1x8x72xf32>
    %228 = vector.shape_cast %227 : vector<1x8x72xf32> to vector<8x72xf32>
    %c3_137 = arith.constant 3 : index
    %c0_138 = arith.constant 0 : index
    %c0_139 = arith.constant 0 : index
    %229 = vector.load %arg6[%c3_137, %c0_138, %c0_139] : memref<7x8x1xf32, #tpu.memory_space<vmem>>, vector<1x8x1xf32>
    %230 = vector.shape_cast %229 : vector<1x8x1xf32> to vector<8x1xf32>
    %c3_140 = arith.constant 3 : index
    %c0_141 = arith.constant 0 : index
    %c0_142 = arith.constant 0 : index
    %231 = vector.load %arg7[%c3_140, %c0_141, %c0_142] : memref<7x8x1xf32, #tpu.memory_space<vmem>>, vector<1x8x1xf32>
    %232 = vector.shape_cast %231 : vector<1x8x1xf32> to vector<8x1xf32>
    %c3_143 = arith.constant 3 : index
    %c0_144 = arith.constant 0 : index
    %c0_145 = arith.constant 0 : index
    %233 = vector.load %arg8[%c3_143, %c0_144, %c0_145] : memref<7x8x1xf32, #tpu.memory_space<vmem>>, vector<1x8x1xf32>
    %234 = vector.shape_cast %233 : vector<1x8x1xf32> to vector<8x1xf32>
    %c8_i32 = arith.constant 8 : i32
    %235 = tpu.dynamic_rotate %225 by %c8_i32 dim 1 : vector<8x128xf32>, i32 -> vector<8x128xf32>
    %c6_i32 = arith.constant 6 : i32
    %236 = tpu.dynamic_rotate %225 by %c6_i32 dim 1 : vector<8x128xf32>, i32 -> vector<8x128xf32>
    %c4_i32_146 = arith.constant 4 : i32
    %237 = tpu.dynamic_rotate %225 by %c4_i32_146 dim 1 : vector<8x128xf32>, i32 -> vector<8x128xf32>
    %c2_i32_147 = arith.constant 2 : i32
    %238 = tpu.dynamic_rotate %225 by %c2_i32_147 dim 1 : vector<8x128xf32>, i32 -> vector<8x128xf32>
    %c126_i32_148 = arith.constant 126 : i32
    %239 = tpu.dynamic_rotate %225 by %c126_i32_148 dim 1 : vector<8x128xf32>, i32 -> vector<8x128xf32>
    %c124_i32_149 = arith.constant 124 : i32
    %240 = tpu.dynamic_rotate %225 by %c124_i32_149 dim 1 : vector<8x128xf32>, i32 -> vector<8x128xf32>
    %c122_i32 = arith.constant 122 : i32
    %241 = tpu.dynamic_rotate %225 by %c122_i32 dim 1 : vector<8x128xf32>, i32 -> vector<8x128xf32>
    %c120_i32 = arith.constant 120 : i32
    %242 = tpu.dynamic_rotate %225 by %c120_i32 dim 1 : vector<8x128xf32>, i32 -> vector<8x128xf32>
    %243 = tpu.concatenate %235, %236, %237, %238, %225, %239, %240, %241, %242 in 0 : vector<8x128xf32>, vector<8x128xf32>, vector<8x128xf32>, vector<8x128xf32>, vector<8x128xf32>, vector<8x128xf32>, vector<8x128xf32>, vector<8x128xf32>, vector<8x128xf32> -> vector<72x128xf32>
    %c8_i32_150 = arith.constant 8 : i32
    %244 = tpu.dynamic_rotate %226 by %c8_i32_150 dim 1 : vector<8x128xf32>, i32 -> vector<8x128xf32>
    %c6_i32_151 = arith.constant 6 : i32
    %245 = tpu.dynamic_rotate %226 by %c6_i32_151 dim 1 : vector<8x128xf32>, i32 -> vector<8x128xf32>
    %c4_i32_152 = arith.constant 4 : i32
    %246 = tpu.dynamic_rotate %226 by %c4_i32_152 dim 1 : vector<8x128xf32>, i32 -> vector<8x128xf32>
    %c2_i32_153 = arith.constant 2 : i32
    %247 = tpu.dynamic_rotate %226 by %c2_i32_153 dim 1 : vector<8x128xf32>, i32 -> vector<8x128xf32>
    %c126_i32_154 = arith.constant 126 : i32
    %248 = tpu.dynamic_rotate %226 by %c126_i32_154 dim 1 : vector<8x128xf32>, i32 -> vector<8x128xf32>
    %c124_i32_155 = arith.constant 124 : i32
    %249 = tpu.dynamic_rotate %226 by %c124_i32_155 dim 1 : vector<8x128xf32>, i32 -> vector<8x128xf32>
    %c122_i32_156 = arith.constant 122 : i32
    %250 = tpu.dynamic_rotate %226 by %c122_i32_156 dim 1 : vector<8x128xf32>, i32 -> vector<8x128xf32>
    %c120_i32_157 = arith.constant 120 : i32
    %251 = tpu.dynamic_rotate %226 by %c120_i32_157 dim 1 : vector<8x128xf32>, i32 -> vector<8x128xf32>
    %252 = tpu.concatenate %244, %245, %246, %247, %226, %248, %249, %250, %251 in 0 : vector<8x128xf32>, vector<8x128xf32>, vector<8x128xf32>, vector<8x128xf32>, vector<8x128xf32>, vector<8x128xf32>, vector<8x128xf32>, vector<8x128xf32>, vector<8x128xf32> -> vector<72x128xf32>
    %253 = tpu.concatenate %243, %252 in 1 : vector<72x128xf32>, vector<72x128xf32> -> vector<72x256xf32>
    %cst_158 = arith.constant dense<0.000000e+00> : vector<8x256xf32>
    %254 = tpu.matmul %228, %253, %cst_158 {dimension_numbers = #tpu.dot_dimension_numbers<[1], [0], [0], [1], [0, 0, 1, 1], [], []>} : vector<8x72xf32>, vector<72x256xf32>, vector<8x256xf32> -> vector<8x256xf32>
    %255 = vector.broadcast %230 : vector<8x1xf32> to vector<8x256xf32>
    %256 = arith.addf %254, %255 : vector<8x256xf32>
    %cst_159 = arith.constant 0.000000e+00 : f32
    %257 = vector.broadcast %cst_159 : f32 to vector<8x256xf32>
    %258 = arith.maximumf %256, %257 : vector<8x256xf32>
    %cst_160 = arith.constant dense<0.000000e+00> : vector<8xf32>
    %259 = vector.multi_reduction <add>, %258, %cst_160 [1] : vector<8x256xf32> to vector<8xf32>
    %260 = vector.shape_cast %259 : vector<8xf32> to vector<8x1xf32>
    %cst_161 = arith.constant 3.906250e-03 : f32
    %261 = vector.broadcast %cst_161 : f32 to vector<8x1xf32>
    %262 = arith.mulf %260, %261 : vector<8x1xf32>
    %263 = arith.mulf %258, %258 : vector<8x256xf32>
    %cst_162 = arith.constant dense<0.000000e+00> : vector<8xf32>
    %264 = vector.multi_reduction <add>, %263, %cst_162 [1] : vector<8x256xf32> to vector<8xf32>
    %265 = vector.shape_cast %264 : vector<8xf32> to vector<8x1xf32>
    %cst_163 = arith.constant 3.906250e-03 : f32
    %266 = vector.broadcast %cst_163 : f32 to vector<8x1xf32>
    %267 = arith.mulf %265, %266 : vector<8x1xf32>
    %268 = arith.mulf %262, %262 : vector<8x1xf32>
    %269 = arith.subf %267, %268 : vector<8x1xf32>
    %cst_164 = arith.constant 9.99999974E-6 : f32
    %270 = vector.broadcast %cst_164 : f32 to vector<8x1xf32>
    %271 = arith.addf %269, %270 : vector<8x1xf32>
    %272 = math.rsqrt %271 : vector<8x1xf32>
    %273 = arith.mulf %232, %272 : vector<8x1xf32>
    %274 = arith.mulf %262, %273 : vector<8x1xf32>
    %275 = arith.subf %234, %274 : vector<8x1xf32>
    %276 = vector.broadcast %273 : vector<8x1xf32> to vector<8x256xf32>
    %277 = arith.mulf %258, %276 : vector<8x256xf32>
    %278 = vector.broadcast %275 : vector<8x1xf32> to vector<8x256xf32>
    %279 = arith.addf %277, %278 : vector<8x256xf32>
    %280 = arith.addf %279, %223 : vector<8x256xf32>
    %c32 = arith.constant 32 : index
    %c0_165 = arith.constant 0 : index
    %281 = vector.load %arg20[%c32, %c0_165] : memref<64x256xf32, #tpu.memory_space<vmem>>, vector<8x256xf32>
    tpu.vector_store %arg20[%c32, %c0_165], %280 {strides = array<i32>} : memref<64x256xf32, #tpu.memory_space<vmem>>, vector<8x256xf32>,
    %282 = vector.extract_strided_slice %280 {offsets = [0, 0], sizes = [8, 128], strides = [1, 1]} : vector<8x256xf32> to vector<8x128xf32>
    %283 = vector.extract_strided_slice %280 {offsets = [0, 128], sizes = [8, 128], strides = [1, 1]} : vector<8x256xf32> to vector<8x128xf32>
    %c4 = arith.constant 4 : index
    %c0_166 = arith.constant 0 : index
    %c0_167 = arith.constant 0 : index
    %284 = vector.load %arg5[%c4, %c0_166, %c0_167] : memref<7x8x72xf32, #tpu.memory_space<vmem>>, vector<1x8x72xf32>
    %285 = vector.shape_cast %284 : vector<1x8x72xf32> to vector<8x72xf32>
    %c4_168 = arith.constant 4 : index
    %c0_169 = arith.constant 0 : index
    %c0_170 = arith.constant 0 : index
    %286 = vector.load %arg6[%c4_168, %c0_169, %c0_170] : memref<7x8x1xf32, #tpu.memory_space<vmem>>, vector<1x8x1xf32>
    %287 = vector.shape_cast %286 : vector<1x8x1xf32> to vector<8x1xf32>
    %c4_171 = arith.constant 4 : index
    %c0_172 = arith.constant 0 : index
    %c0_173 = arith.constant 0 : index
    %288 = vector.load %arg7[%c4_171, %c0_172, %c0_173] : memref<7x8x1xf32, #tpu.memory_space<vmem>>, vector<1x8x1xf32>
    %289 = vector.shape_cast %288 : vector<1x8x1xf32> to vector<8x1xf32>
    %c4_174 = arith.constant 4 : index
    %c0_175 = arith.constant 0 : index
    %c0_176 = arith.constant 0 : index
    %290 = vector.load %arg8[%c4_174, %c0_175, %c0_176] : memref<7x8x1xf32, #tpu.memory_space<vmem>>, vector<1x8x1xf32>
    %291 = vector.shape_cast %290 : vector<1x8x1xf32> to vector<8x1xf32>
    %c8_i32_177 = arith.constant 8 : i32
    %292 = tpu.dynamic_rotate %282 by %c8_i32_177 dim 1 : vector<8x128xf32>, i32 -> vector<8x128xf32>
    %c6_i32_178 = arith.constant 6 : i32
    %293 = tpu.dynamic_rotate %282 by %c6_i32_178 dim 1 : vector<8x128xf32>, i32 -> vector<8x128xf32>
    %c4_i32_179 = arith.constant 4 : i32
    %294 = tpu.dynamic_rotate %282 by %c4_i32_179 dim 1 : vector<8x128xf32>, i32 -> vector<8x128xf32>
    %c2_i32_180 = arith.constant 2 : i32
    %295 = tpu.dynamic_rotate %282 by %c2_i32_180 dim 1 : vector<8x128xf32>, i32 -> vector<8x128xf32>
    %c126_i32_181 = arith.constant 126 : i32
    %296 = tpu.dynamic_rotate %282 by %c126_i32_181 dim 1 : vector<8x128xf32>, i32 -> vector<8x128xf32>
    %c124_i32_182 = arith.constant 124 : i32
    %297 = tpu.dynamic_rotate %282 by %c124_i32_182 dim 1 : vector<8x128xf32>, i32 -> vector<8x128xf32>
    %c122_i32_183 = arith.constant 122 : i32
    %298 = tpu.dynamic_rotate %282 by %c122_i32_183 dim 1 : vector<8x128xf32>, i32 -> vector<8x128xf32>
    %c120_i32_184 = arith.constant 120 : i32
    %299 = tpu.dynamic_rotate %282 by %c120_i32_184 dim 1 : vector<8x128xf32>, i32 -> vector<8x128xf32>
    %300 = tpu.concatenate %292, %293, %294, %295, %282, %296, %297, %298, %299 in 0 : vector<8x128xf32>, vector<8x128xf32>, vector<8x128xf32>, vector<8x128xf32>, vector<8x128xf32>, vector<8x128xf32>, vector<8x128xf32>, vector<8x128xf32>, vector<8x128xf32> -> vector<72x128xf32>
    %c8_i32_185 = arith.constant 8 : i32
    %301 = tpu.dynamic_rotate %283 by %c8_i32_185 dim 1 : vector<8x128xf32>, i32 -> vector<8x128xf32>
    %c6_i32_186 = arith.constant 6 : i32
    %302 = tpu.dynamic_rotate %283 by %c6_i32_186 dim 1 : vector<8x128xf32>, i32 -> vector<8x128xf32>
    %c4_i32_187 = arith.constant 4 : i32
    %303 = tpu.dynamic_rotate %283 by %c4_i32_187 dim 1 : vector<8x128xf32>, i32 -> vector<8x128xf32>
    %c2_i32_188 = arith.constant 2 : i32
    %304 = tpu.dynamic_rotate %283 by %c2_i32_188 dim 1 : vector<8x128xf32>, i32 -> vector<8x128xf32>
    %c126_i32_189 = arith.constant 126 : i32
    %305 = tpu.dynamic_rotate %283 by %c126_i32_189 dim 1 : vector<8x128xf32>, i32 -> vector<8x128xf32>
    %c124_i32_190 = arith.constant 124 : i32
    %306 = tpu.dynamic_rotate %283 by %c124_i32_190 dim 1 : vector<8x128xf32>, i32 -> vector<8x128xf32>
    %c122_i32_191 = arith.constant 122 : i32
    %307 = tpu.dynamic_rotate %283 by %c122_i32_191 dim 1 : vector<8x128xf32>, i32 -> vector<8x128xf32>
    %c120_i32_192 = arith.constant 120 : i32
    %308 = tpu.dynamic_rotate %283 by %c120_i32_192 dim 1 : vector<8x128xf32>, i32 -> vector<8x128xf32>
    %309 = tpu.concatenate %301, %302, %303, %304, %283, %305, %306, %307, %308 in 0 : vector<8x128xf32>, vector<8x128xf32>, vector<8x128xf32>, vector<8x128xf32>, vector<8x128xf32>, vector<8x128xf32>, vector<8x128xf32>, vector<8x128xf32>, vector<8x128xf32> -> vector<72x128xf32>
    %310 = tpu.concatenate %300, %309 in 1 : vector<72x128xf32>, vector<72x128xf32> -> vector<72x256xf32>
    %cst_193 = arith.constant dense<0.000000e+00> : vector<8x256xf32>
    %311 = tpu.matmul %285, %310, %cst_193 {dimension_numbers = #tpu.dot_dimension_numbers<[1], [0], [0], [1], [0, 0, 1, 1], [], []>} : vector<8x72xf32>, vector<72x256xf32>, vector<8x256xf32> -> vector<8x256xf32>
    %312 = vector.broadcast %287 : vector<8x1xf32> to vector<8x256xf32>
    %313 = arith.addf %311, %312 : vector<8x256xf32>
    %cst_194 = arith.constant 0.000000e+00 : f32
    %314 = vector.broadcast %cst_194 : f32 to vector<8x256xf32>
    %315 = arith.maximumf %313, %314 : vector<8x256xf32>
    %cst_195 = arith.constant dense<0.000000e+00> : vector<8xf32>
    %316 = vector.multi_reduction <add>, %315, %cst_195 [1] : vector<8x256xf32> to vector<8xf32>
    %317 = vector.shape_cast %316 : vector<8xf32> to vector<8x1xf32>
    %cst_196 = arith.constant 3.906250e-03 : f32
    %318 = vector.broadcast %cst_196 : f32 to vector<8x1xf32>
    %319 = arith.mulf %317, %318 : vector<8x1xf32>
    %320 = arith.mulf %315, %315 : vector<8x256xf32>
    %cst_197 = arith.constant dense<0.000000e+00> : vector<8xf32>
    %321 = vector.multi_reduction <add>, %320, %cst_197 [1] : vector<8x256xf32> to vector<8xf32>
    %322 = vector.shape_cast %321 : vector<8xf32> to vector<8x1xf32>
    %cst_198 = arith.constant 3.906250e-03 : f32
    %323 = vector.broadcast %cst_198 : f32 to vector<8x1xf32>
    %324 = arith.mulf %322, %323 : vector<8x1xf32>
    %325 = arith.mulf %319, %319 : vector<8x1xf32>
    %326 = arith.subf %324, %325 : vector<8x1xf32>
    %cst_199 = arith.constant 9.99999974E-6 : f32
    %327 = vector.broadcast %cst_199 : f32 to vector<8x1xf32>
    %328 = arith.addf %326, %327 : vector<8x1xf32>
    %329 = math.rsqrt %328 : vector<8x1xf32>
    %330 = arith.mulf %289, %329 : vector<8x1xf32>
    %331 = arith.mulf %319, %330 : vector<8x1xf32>
    %332 = arith.subf %291, %331 : vector<8x1xf32>
    %333 = vector.broadcast %330 : vector<8x1xf32> to vector<8x256xf32>
    %334 = arith.mulf %315, %333 : vector<8x256xf32>
    %335 = vector.broadcast %332 : vector<8x1xf32> to vector<8x256xf32>
    %336 = arith.addf %334, %335 : vector<8x256xf32>
    %337 = arith.addf %336, %280 : vector<8x256xf32>
    %c40 = arith.constant 40 : index
    %c0_200 = arith.constant 0 : index
    %338 = vector.load %arg20[%c40, %c0_200] : memref<64x256xf32, #tpu.memory_space<vmem>>, vector<8x256xf32>
    tpu.vector_store %arg20[%c40, %c0_200], %337 {strides = array<i32>} : memref<64x256xf32, #tpu.memory_space<vmem>>, vector<8x256xf32>,
    %339 = vector.extract_strided_slice %337 {offsets = [0, 0], sizes = [8, 128], strides = [1, 1]} : vector<8x256xf32> to vector<8x128xf32>
    %340 = vector.extract_strided_slice %337 {offsets = [0, 128], sizes = [8, 128], strides = [1, 1]} : vector<8x256xf32> to vector<8x128xf32>
    %c5 = arith.constant 5 : index
    %c0_201 = arith.constant 0 : index
    %c0_202 = arith.constant 0 : index
    %341 = vector.load %arg5[%c5, %c0_201, %c0_202] : memref<7x8x72xf32, #tpu.memory_space<vmem>>, vector<1x8x72xf32>
    %342 = vector.shape_cast %341 : vector<1x8x72xf32> to vector<8x72xf32>
    %c5_203 = arith.constant 5 : index
    %c0_204 = arith.constant 0 : index
    %c0_205 = arith.constant 0 : index
    %343 = vector.load %arg6[%c5_203, %c0_204, %c0_205] : memref<7x8x1xf32, #tpu.memory_space<vmem>>, vector<1x8x1xf32>
    %344 = vector.shape_cast %343 : vector<1x8x1xf32> to vector<8x1xf32>
    %c5_206 = arith.constant 5 : index
    %c0_207 = arith.constant 0 : index
    %c0_208 = arith.constant 0 : index
    %345 = vector.load %arg7[%c5_206, %c0_207, %c0_208] : memref<7x8x1xf32, #tpu.memory_space<vmem>>, vector<1x8x1xf32>
    %346 = vector.shape_cast %345 : vector<1x8x1xf32> to vector<8x1xf32>
    %c5_209 = arith.constant 5 : index
    %c0_210 = arith.constant 0 : index
    %c0_211 = arith.constant 0 : index
    %347 = vector.load %arg8[%c5_209, %c0_210, %c0_211] : memref<7x8x1xf32, #tpu.memory_space<vmem>>, vector<1x8x1xf32>
    %348 = vector.shape_cast %347 : vector<1x8x1xf32> to vector<8x1xf32>
    %c16_i32 = arith.constant 16 : i32
    %349 = tpu.dynamic_rotate %339 by %c16_i32 dim 1 : vector<8x128xf32>, i32 -> vector<8x128xf32>
    %c12_i32 = arith.constant 12 : i32
    %350 = tpu.dynamic_rotate %339 by %c12_i32 dim 1 : vector<8x128xf32>, i32 -> vector<8x128xf32>
    %c8_i32_212 = arith.constant 8 : i32
    %351 = tpu.dynamic_rotate %339 by %c8_i32_212 dim 1 : vector<8x128xf32>, i32 -> vector<8x128xf32>
    %c4_i32_213 = arith.constant 4 : i32
    %352 = tpu.dynamic_rotate %339 by %c4_i32_213 dim 1 : vector<8x128xf32>, i32 -> vector<8x128xf32>
    %c124_i32_214 = arith.constant 124 : i32
    %353 = tpu.dynamic_rotate %339 by %c124_i32_214 dim 1 : vector<8x128xf32>, i32 -> vector<8x128xf32>
    %c120_i32_215 = arith.constant 120 : i32
    %354 = tpu.dynamic_rotate %339 by %c120_i32_215 dim 1 : vector<8x128xf32>, i32 -> vector<8x128xf32>
    %c116_i32 = arith.constant 116 : i32
    %355 = tpu.dynamic_rotate %339 by %c116_i32 dim 1 : vector<8x128xf32>, i32 -> vector<8x128xf32>
    %c112_i32 = arith.constant 112 : i32
    %356 = tpu.dynamic_rotate %339 by %c112_i32 dim 1 : vector<8x128xf32>, i32 -> vector<8x128xf32>
    %357 = tpu.concatenate %349, %350, %351, %352, %339, %353, %354, %355, %356 in 0 : vector<8x128xf32>, vector<8x128xf32>, vector<8x128xf32>, vector<8x128xf32>, vector<8x128xf32>, vector<8x128xf32>, vector<8x128xf32>, vector<8x128xf32>, vector<8x128xf32> -> vector<72x128xf32>
    %c16_i32_216 = arith.constant 16 : i32
    %358 = tpu.dynamic_rotate %340 by %c16_i32_216 dim 1 : vector<8x128xf32>, i32 -> vector<8x128xf32>
    %c12_i32_217 = arith.constant 12 : i32
    %359 = tpu.dynamic_rotate %340 by %c12_i32_217 dim 1 : vector<8x128xf32>, i32 -> vector<8x128xf32>
    %c8_i32_218 = arith.constant 8 : i32
    %360 = tpu.dynamic_rotate %340 by %c8_i32_218 dim 1 : vector<8x128xf32>, i32 -> vector<8x128xf32>
    %c4_i32_219 = arith.constant 4 : i32
    %361 = tpu.dynamic_rotate %340 by %c4_i32_219 dim 1 : vector<8x128xf32>, i32 -> vector<8x128xf32>
    %c124_i32_220 = arith.constant 124 : i32
    %362 = tpu.dynamic_rotate %340 by %c124_i32_220 dim 1 : vector<8x128xf32>, i32 -> vector<8x128xf32>
    %c120_i32_221 = arith.constant 120 : i32
    %363 = tpu.dynamic_rotate %340 by %c120_i32_221 dim 1 : vector<8x128xf32>, i32 -> vector<8x128xf32>
    %c116_i32_222 = arith.constant 116 : i32
    %364 = tpu.dynamic_rotate %340 by %c116_i32_222 dim 1 : vector<8x128xf32>, i32 -> vector<8x128xf32>
    %c112_i32_223 = arith.constant 112 : i32
    %365 = tpu.dynamic_rotate %340 by %c112_i32_223 dim 1 : vector<8x128xf32>, i32 -> vector<8x128xf32>
    %366 = tpu.concatenate %358, %359, %360, %361, %340, %362, %363, %364, %365 in 0 : vector<8x128xf32>, vector<8x128xf32>, vector<8x128xf32>, vector<8x128xf32>, vector<8x128xf32>, vector<8x128xf32>, vector<8x128xf32>, vector<8x128xf32>, vector<8x128xf32> -> vector<72x128xf32>
    %367 = tpu.concatenate %357, %366 in 1 : vector<72x128xf32>, vector<72x128xf32> -> vector<72x256xf32>
    %cst_224 = arith.constant dense<0.000000e+00> : vector<8x256xf32>
    %368 = tpu.matmul %342, %367, %cst_224 {dimension_numbers = #tpu.dot_dimension_numbers<[1], [0], [0], [1], [0, 0, 1, 1], [], []>} : vector<8x72xf32>, vector<72x256xf32>, vector<8x256xf32> -> vector<8x256xf32>
    %369 = vector.broadcast %344 : vector<8x1xf32> to vector<8x256xf32>
    %370 = arith.addf %368, %369 : vector<8x256xf32>
    %cst_225 = arith.constant 0.000000e+00 : f32
    %371 = vector.broadcast %cst_225 : f32 to vector<8x256xf32>
    %372 = arith.maximumf %370, %371 : vector<8x256xf32>
    %cst_226 = arith.constant dense<0.000000e+00> : vector<8xf32>
    %373 = vector.multi_reduction <add>, %372, %cst_226 [1] : vector<8x256xf32> to vector<8xf32>
    %374 = vector.shape_cast %373 : vector<8xf32> to vector<8x1xf32>
    %cst_227 = arith.constant 3.906250e-03 : f32
    %375 = vector.broadcast %cst_227 : f32 to vector<8x1xf32>
    %376 = arith.mulf %374, %375 : vector<8x1xf32>
    %377 = arith.mulf %372, %372 : vector<8x256xf32>
    %cst_228 = arith.constant dense<0.000000e+00> : vector<8xf32>
    %378 = vector.multi_reduction <add>, %377, %cst_228 [1] : vector<8x256xf32> to vector<8xf32>
    %379 = vector.shape_cast %378 : vector<8xf32> to vector<8x1xf32>
    %cst_229 = arith.constant 3.906250e-03 : f32
    %380 = vector.broadcast %cst_229 : f32 to vector<8x1xf32>
    %381 = arith.mulf %379, %380 : vector<8x1xf32>
    %382 = arith.mulf %376, %376 : vector<8x1xf32>
    %383 = arith.subf %381, %382 : vector<8x1xf32>
    %cst_230 = arith.constant 9.99999974E-6 : f32
    %384 = vector.broadcast %cst_230 : f32 to vector<8x1xf32>
    %385 = arith.addf %383, %384 : vector<8x1xf32>
    %386 = math.rsqrt %385 : vector<8x1xf32>
    %387 = arith.mulf %346, %386 : vector<8x1xf32>
    %388 = arith.mulf %376, %387 : vector<8x1xf32>
    %389 = arith.subf %348, %388 : vector<8x1xf32>
    %390 = vector.broadcast %387 : vector<8x1xf32> to vector<8x256xf32>
    %391 = arith.mulf %372, %390 : vector<8x256xf32>
    %392 = vector.broadcast %389 : vector<8x1xf32> to vector<8x256xf32>
    %393 = arith.addf %391, %392 : vector<8x256xf32>
    %394 = arith.addf %393, %337 : vector<8x256xf32>
    %c48 = arith.constant 48 : index
    %c0_231 = arith.constant 0 : index
    %395 = vector.load %arg20[%c48, %c0_231] : memref<64x256xf32, #tpu.memory_space<vmem>>, vector<8x256xf32>
    tpu.vector_store %arg20[%c48, %c0_231], %394 {strides = array<i32>} : memref<64x256xf32, #tpu.memory_space<vmem>>, vector<8x256xf32>,
    %396 = vector.extract_strided_slice %394 {offsets = [0, 0], sizes = [8, 128], strides = [1, 1]} : vector<8x256xf32> to vector<8x128xf32>
    %397 = vector.extract_strided_slice %394 {offsets = [0, 128], sizes = [8, 128], strides = [1, 1]} : vector<8x256xf32> to vector<8x128xf32>
    %c6 = arith.constant 6 : index
    %c0_232 = arith.constant 0 : index
    %c0_233 = arith.constant 0 : index
    %398 = vector.load %arg5[%c6, %c0_232, %c0_233] : memref<7x8x72xf32, #tpu.memory_space<vmem>>, vector<1x8x72xf32>
    %399 = vector.shape_cast %398 : vector<1x8x72xf32> to vector<8x72xf32>
    %c6_234 = arith.constant 6 : index
    %c0_235 = arith.constant 0 : index
    %c0_236 = arith.constant 0 : index
    %400 = vector.load %arg6[%c6_234, %c0_235, %c0_236] : memref<7x8x1xf32, #tpu.memory_space<vmem>>, vector<1x8x1xf32>
    %401 = vector.shape_cast %400 : vector<1x8x1xf32> to vector<8x1xf32>
    %c6_237 = arith.constant 6 : index
    %c0_238 = arith.constant 0 : index
    %c0_239 = arith.constant 0 : index
    %402 = vector.load %arg7[%c6_237, %c0_238, %c0_239] : memref<7x8x1xf32, #tpu.memory_space<vmem>>, vector<1x8x1xf32>
    %403 = vector.shape_cast %402 : vector<1x8x1xf32> to vector<8x1xf32>
    %c6_240 = arith.constant 6 : index
    %c0_241 = arith.constant 0 : index
    %c0_242 = arith.constant 0 : index
    %404 = vector.load %arg8[%c6_240, %c0_241, %c0_242] : memref<7x8x1xf32, #tpu.memory_space<vmem>>, vector<1x8x1xf32>
    %405 = vector.shape_cast %404 : vector<1x8x1xf32> to vector<8x1xf32>
    %c16_i32_243 = arith.constant 16 : i32
    %406 = tpu.dynamic_rotate %396 by %c16_i32_243 dim 1 : vector<8x128xf32>, i32 -> vector<8x128xf32>
    %c12_i32_244 = arith.constant 12 : i32
    %407 = tpu.dynamic_rotate %396 by %c12_i32_244 dim 1 : vector<8x128xf32>, i32 -> vector<8x128xf32>
    %c8_i32_245 = arith.constant 8 : i32
    %408 = tpu.dynamic_rotate %396 by %c8_i32_245 dim 1 : vector<8x128xf32>, i32 -> vector<8x128xf32>
    %c4_i32_246 = arith.constant 4 : i32
    %409 = tpu.dynamic_rotate %396 by %c4_i32_246 dim 1 : vector<8x128xf32>, i32 -> vector<8x128xf32>
    %c124_i32_247 = arith.constant 124 : i32
    %410 = tpu.dynamic_rotate %396 by %c124_i32_247 dim 1 : vector<8x128xf32>, i32 -> vector<8x128xf32>
    %c120_i32_248 = arith.constant 120 : i32
    %411 = tpu.dynamic_rotate %396 by %c120_i32_248 dim 1 : vector<8x128xf32>, i32 -> vector<8x128xf32>
    %c116_i32_249 = arith.constant 116 : i32
    %412 = tpu.dynamic_rotate %396 by %c116_i32_249 dim 1 : vector<8x128xf32>, i32 -> vector<8x128xf32>
    %c112_i32_250 = arith.constant 112 : i32
    %413 = tpu.dynamic_rotate %396 by %c112_i32_250 dim 1 : vector<8x128xf32>, i32 -> vector<8x128xf32>
    %414 = tpu.concatenate %406, %407, %408, %409, %396, %410, %411, %412, %413 in 0 : vector<8x128xf32>, vector<8x128xf32>, vector<8x128xf32>, vector<8x128xf32>, vector<8x128xf32>, vector<8x128xf32>, vector<8x128xf32>, vector<8x128xf32>, vector<8x128xf32> -> vector<72x128xf32>
    %c16_i32_251 = arith.constant 16 : i32
    %415 = tpu.dynamic_rotate %397 by %c16_i32_251 dim 1 : vector<8x128xf32>, i32 -> vector<8x128xf32>
    %c12_i32_252 = arith.constant 12 : i32
    %416 = tpu.dynamic_rotate %397 by %c12_i32_252 dim 1 : vector<8x128xf32>, i32 -> vector<8x128xf32>
    %c8_i32_253 = arith.constant 8 : i32
    %417 = tpu.dynamic_rotate %397 by %c8_i32_253 dim 1 : vector<8x128xf32>, i32 -> vector<8x128xf32>
    %c4_i32_254 = arith.constant 4 : i32
    %418 = tpu.dynamic_rotate %397 by %c4_i32_254 dim 1 : vector<8x128xf32>, i32 -> vector<8x128xf32>
    %c124_i32_255 = arith.constant 124 : i32
    %419 = tpu.dynamic_rotate %397 by %c124_i32_255 dim 1 : vector<8x128xf32>, i32 -> vector<8x128xf32>
    %c120_i32_256 = arith.constant 120 : i32
    %420 = tpu.dynamic_rotate %397 by %c120_i32_256 dim 1 : vector<8x128xf32>, i32 -> vector<8x128xf32>
    %c116_i32_257 = arith.constant 116 : i32
    %421 = tpu.dynamic_rotate %397 by %c116_i32_257 dim 1 : vector<8x128xf32>, i32 -> vector<8x128xf32>
    %c112_i32_258 = arith.constant 112 : i32
    %422 = tpu.dynamic_rotate %397 by %c112_i32_258 dim 1 : vector<8x128xf32>, i32 -> vector<8x128xf32>
    %423 = tpu.concatenate %415, %416, %417, %418, %397, %419, %420, %421, %422 in 0 : vector<8x128xf32>, vector<8x128xf32>, vector<8x128xf32>, vector<8x128xf32>, vector<8x128xf32>, vector<8x128xf32>, vector<8x128xf32>, vector<8x128xf32>, vector<8x128xf32> -> vector<72x128xf32>
    %424 = tpu.concatenate %414, %423 in 1 : vector<72x128xf32>, vector<72x128xf32> -> vector<72x256xf32>
    %cst_259 = arith.constant dense<0.000000e+00> : vector<8x256xf32>
    %425 = tpu.matmul %399, %424, %cst_259 {dimension_numbers = #tpu.dot_dimension_numbers<[1], [0], [0], [1], [0, 0, 1, 1], [], []>} : vector<8x72xf32>, vector<72x256xf32>, vector<8x256xf32> -> vector<8x256xf32>
    %426 = vector.broadcast %401 : vector<8x1xf32> to vector<8x256xf32>
    %427 = arith.addf %425, %426 : vector<8x256xf32>
    %cst_260 = arith.constant 0.000000e+00 : f32
    %428 = vector.broadcast %cst_260 : f32 to vector<8x256xf32>
    %429 = arith.maximumf %427, %428 : vector<8x256xf32>
    %cst_261 = arith.constant dense<0.000000e+00> : vector<8xf32>
    %430 = vector.multi_reduction <add>, %429, %cst_261 [1] : vector<8x256xf32> to vector<8xf32>
    %431 = vector.shape_cast %430 : vector<8xf32> to vector<8x1xf32>
    %cst_262 = arith.constant 3.906250e-03 : f32
    %432 = vector.broadcast %cst_262 : f32 to vector<8x1xf32>
    %433 = arith.mulf %431, %432 : vector<8x1xf32>
    %434 = arith.mulf %429, %429 : vector<8x256xf32>
    %cst_263 = arith.constant dense<0.000000e+00> : vector<8xf32>
    %435 = vector.multi_reduction <add>, %434, %cst_263 [1] : vector<8x256xf32> to vector<8xf32>
    %436 = vector.shape_cast %435 : vector<8xf32> to vector<8x1xf32>
    %cst_264 = arith.constant 3.906250e-03 : f32
    %437 = vector.broadcast %cst_264 : f32 to vector<8x1xf32>
    %438 = arith.mulf %436, %437 : vector<8x1xf32>
    %439 = arith.mulf %433, %433 : vector<8x1xf32>
    %440 = arith.subf %438, %439 : vector<8x1xf32>
    %cst_265 = arith.constant 9.99999974E-6 : f32
    %441 = vector.broadcast %cst_265 : f32 to vector<8x1xf32>
    %442 = arith.addf %440, %441 : vector<8x1xf32>
    %443 = math.rsqrt %442 : vector<8x1xf32>
    %444 = arith.mulf %403, %443 : vector<8x1xf32>
    %445 = arith.mulf %433, %444 : vector<8x1xf32>
    %446 = arith.subf %405, %445 : vector<8x1xf32>
    %447 = vector.broadcast %444 : vector<8x1xf32> to vector<8x256xf32>
    %448 = arith.mulf %429, %447 : vector<8x256xf32>
    %449 = vector.broadcast %446 : vector<8x1xf32> to vector<8x256xf32>
    %450 = arith.addf %448, %449 : vector<8x256xf32>
    %451 = arith.addf %450, %394 : vector<8x256xf32>
    %c56 = arith.constant 56 : index
    %c0_266 = arith.constant 0 : index
    %452 = vector.load %arg20[%c56, %c0_266] : memref<64x256xf32, #tpu.memory_space<vmem>>, vector<8x256xf32>
    tpu.vector_store %arg20[%c56, %c0_266], %451 {strides = array<i32>} : memref<64x256xf32, #tpu.memory_space<vmem>>, vector<8x256xf32>,
    %c0_267 = arith.constant 0 : index
    %c0_268 = arith.constant 0 : index
    %453 = vector.load %arg20[%c0_267, %c0_268] : memref<64x256xf32, #tpu.memory_space<vmem>>, vector<64x256xf32>
    %454 = arith.truncf %453 : vector<64x256xf32> to vector<64x256xbf16>
    %c0_269 = arith.constant 0 : index
    %c0_270 = arith.constant 0 : index
    %455 = vector.load %arg9[%c0_269, %c0_270] : memref<256x64xbf16, #tpu.memory_space<vmem>>, vector<256x64xbf16>
    %cst_271 = arith.constant dense<0.000000e+00> : vector<256x256xf32>
    %456 = tpu.matmul %455, %454, %cst_271 {dimension_numbers = #tpu.dot_dimension_numbers<[1], [0], [0], [1], [0, 0, 1, 1], [], []>} : vector<256x64xbf16>, vector<64x256xbf16>, vector<256x256xf32> -> vector<256x256xf32>
    %c0_272 = arith.constant 0 : index
    %c0_273 = arith.constant 0 : index
    %457 = vector.load %arg10[%c0_272, %c0_273] : memref<256x1xf32, #tpu.memory_space<vmem>>, vector<256x1xf32>
    %458 = vector.broadcast %457 : vector<256x1xf32> to vector<256x256xf32>
    %459 = arith.addf %456, %458 : vector<256x256xf32>
    %460 = vector.extract_strided_slice %459 {offsets = [0, 0], sizes = [256, 128], strides = [1, 1]} : vector<256x256xf32> to vector<256x128xf32>
    %cst_274 = arith.constant dense<0xFF800000> : vector<256xf32>
    %461 = vector.multi_reduction <maximumf>, %460, %cst_274 [1] : vector<256x128xf32> to vector<256xf32>
    %462 = vector.shape_cast %461 : vector<256xf32> to vector<256x1xf32>
    %463 = vector.extract_strided_slice %459 {offsets = [0, 128], sizes = [256, 128], strides = [1, 1]} : vector<256x256xf32> to vector<256x128xf32>
    %cst_275 = arith.constant dense<0xFF800000> : vector<256xf32>
    %464 = vector.multi_reduction <maximumf>, %463, %cst_275 [1] : vector<256x128xf32> to vector<256xf32>
    %465 = vector.shape_cast %464 : vector<256xf32> to vector<256x1xf32>
    %466 = tpu.concatenate %462, %465 in 1 : vector<256x1xf32>, vector<256x1xf32> -> vector<256x2xf32>
    %c0_276 = arith.constant 0 : index
    %c0_277 = arith.constant 0 : index
    %467 = vector.load %arg11[%c0_276, %c0_277] : memref<256x256xbf16, #tpu.memory_space<vmem>>, vector<256x256xbf16>
    %468 = arith.truncf %466 : vector<256x2xf32> to vector<256x2xbf16>
    %cst_278 = arith.constant dense<0.000000e+00> : vector<256x2xf32>
    %469 = tpu.matmul %467, %468, %cst_278 {dimension_numbers = #tpu.dot_dimension_numbers<[1], [0], [0], [1], [0, 0, 1, 1], [], []>} : vector<256x256xbf16>, vector<256x2xbf16>, vector<256x2xf32> -> vector<256x2xf32>
    %470 = arith.truncf %469 : vector<256x2xf32> to vector<256x2xbf16>
    %c0_279 = arith.constant 0 : index
    %c0_280 = arith.constant 0 : index
    %471 = vector.load %arg18[%c0_279, %c0_280] : memref<2x256xbf16, #tpu.memory_space<vmem>>, vector<2x256xbf16>
    %cst_281 = arith.constant dense<0.000000e+00> : vector<256x256xf32>
    %472 = tpu.matmul %470, %471, %cst_281 {dimension_numbers = #tpu.dot_dimension_numbers<[1], [0], [0], [1], [0, 0, 1, 1], [], []>} : vector<256x2xbf16>, vector<2x256xbf16>, vector<256x256xf32> -> vector<256x256xf32>
    %c0_282 = arith.constant 0 : index
    %c0_283 = arith.constant 0 : index
    %473 = vector.load %arg12[%c0_282, %c0_283] : memref<256x64xbf16, #tpu.memory_space<vmem>>, vector<256x64xbf16>
    %cst_284 = arith.constant dense<0.000000e+00> : vector<256x256xf32>
    %474 = tpu.matmul %473, %454, %cst_284 {dimension_numbers = #tpu.dot_dimension_numbers<[1], [0], [0], [1], [0, 0, 1, 1], [], []>} : vector<256x64xbf16>, vector<64x256xbf16>, vector<256x256xf32> -> vector<256x256xf32>
    %475 = arith.addf %474, %472 : vector<256x256xf32>
    %c0_285 = arith.constant 0 : index
    %c0_286 = arith.constant 0 : index
    %476 = vector.load %arg13[%c0_285, %c0_286] : memref<256x1xf32, #tpu.memory_space<vmem>>, vector<256x1xf32>
    %477 = vector.broadcast %476 : vector<256x1xf32> to vector<256x256xf32>
    %478 = arith.addf %475, %477 : vector<256x256xf32>
    %cst_287 = arith.constant 0.000000e+00 : f32
    %479 = vector.broadcast %cst_287 : f32 to vector<256x256xf32>
    %480 = arith.maximumf %478, %479 : vector<256x256xf32>
    %c0_288 = arith.constant 0 : index
    %c0_289 = arith.constant 0 : index
    %481 = vector.load %arg14[%c0_288, %c0_289] : memref<64x256xbf16, #tpu.memory_space<vmem>>, vector<64x256xbf16>
    %482 = arith.truncf %480 : vector<256x256xf32> to vector<256x256xbf16>
    %cst_290 = arith.constant dense<0.000000e+00> : vector<64x256xf32>
    %483 = tpu.matmul %481, %482, %cst_290 {dimension_numbers = #tpu.dot_dimension_numbers<[1], [0], [0], [1], [0, 0, 1, 1], [], []>} : vector<64x256xbf16>, vector<256x256xbf16>, vector<64x256xf32> -> vector<64x256xf32>
    %c0_291 = arith.constant 0 : index
    %c0_292 = arith.constant 0 : index
    %484 = vector.load %arg15[%c0_291, %c0_292] : memref<64x1xf32, #tpu.memory_space<vmem>>, vector<64x1xf32>
    %485 = vector.broadcast %484 : vector<64x1xf32> to vector<64x256xf32>
    %486 = arith.addf %483, %485 : vector<64x256xf32>
    %cst_293 = arith.constant 0.000000e+00 : f32
    %487 = vector.broadcast %cst_293 : f32 to vector<64x256xf32>
    %488 = arith.maximumf %486, %487 : vector<64x256xf32>
    %c0_294 = arith.constant 0 : index
    %c0_295 = arith.constant 0 : index
    %489 = vector.load %arg16[%c0_294, %c0_295] : memref<2x64xbf16, #tpu.memory_space<vmem>>, vector<2x64xbf16>
    %490 = arith.truncf %488 : vector<64x256xf32> to vector<64x256xbf16>
    %cst_296 = arith.constant dense<0.000000e+00> : vector<2x256xf32>
    %491 = tpu.matmul %489, %490, %cst_296 {dimension_numbers = #tpu.dot_dimension_numbers<[1], [0], [0], [1], [0, 0, 1, 1], [], []>} : vector<2x64xbf16>, vector<64x256xbf16>, vector<2x256xf32> -> vector<2x256xf32>
    %c0_297 = arith.constant 0 : index
    %c0_298 = arith.constant 0 : index
    %492 = vector.load %arg17[%c0_297, %c0_298] : memref<2x1xf32, #tpu.memory_space<vmem>>, vector<2x1xf32>
    %493 = vector.broadcast %492 : vector<2x1xf32> to vector<2x256xf32>
    %494 = arith.addf %491, %493 : vector<2x256xf32>
    %c0_299 = arith.constant 0 : index
    %c0_300 = arith.constant 0 : index
    %495 = vector.load %arg19[%c0_299, %c0_300] : memref<2x256xf32, #tpu.memory_space<vmem>>, vector<2x256xf32>
    tpu.vector_store %arg19[%c0_299, %c0_300], %494 {strides = array<i32>} : memref<2x256xf32, #tpu.memory_space<vmem>>, vector<2x256xf32>,
    return
  }
}

</mosaic_0001>

<llo_original>
// kernel: tpu_custom_call.1
$region0: #{tpu_custom_call.1}
  #allocation0 [shape = 'u32[]', space=smem, size = 0x4, offset = 0x4, fixed_abs, tag = 'smem constant byte address 0x4 - core index']
  #allocation1 [shape = 'u32[144,128]{1,0:T(1,128)}', space=vmem, size = 0x12000, scoped, tag = 'internal scratch']
  #allocation2 [shape = 'f32[64,256]{1,0:T(8,128)}', space=vmem, size = 0x10000, scoped, tag = 'scratch operand']
  %s0 = inlined_call_operand.vmem [shape: f32[2,6,128], index: 0, kind: input, shape index: {}]
  %s1 = inlined_call_operand.vmem [shape: f32[8,54], index: 1, kind: input, shape index: {}]
  %s2 = inlined_call_operand.vmem [shape: f32[8,1], index: 2, kind: input, shape index: {}]
  %s3 = inlined_call_operand.vmem [shape: f32[8,1], index: 3, kind: input, shape index: {}]
  %s4 = inlined_call_operand.vmem [shape: f32[8,1], index: 4, kind: input, shape index: {}]
  %s5 = inlined_call_operand.vmem [shape: f32[7,8,72], index: 5, kind: input, shape index: {}]
  %s6 = inlined_call_operand.vmem [shape: f32[7,8,1], index: 6, kind: input, shape index: {}]
  %s7 = inlined_call_operand.vmem [shape: f32[7,8,1], index: 7, kind: input, shape index: {}]
  %s8 = inlined_call_operand.vmem [shape: f32[7,8,1], index: 8, kind: input, shape index: {}]
  %s9 = inlined_call_operand.vmem [shape: bf16[256,64], index: 9, kind: input, shape index: {}]
  %s10 = inlined_call_operand.vmem [shape: f32[256,1], index: 10, kind: input, shape index: {}]
  %s11 = inlined_call_operand.vmem [shape: bf16[256,256], index: 11, kind: input, shape index: {}]
  %s12 = inlined_call_operand.vmem [shape: bf16[256,64], index: 12, kind: input, shape index: {}]
  %s13 = inlined_call_operand.vmem [shape: f32[256,1], index: 13, kind: input, shape index: {}]
  %s14 = inlined_call_operand.vmem [shape: bf16[64,256], index: 14, kind: input, shape index: {}]
  %s15 = inlined_call_operand.vmem [shape: f32[64,1], index: 15, kind: input, shape index: {}]
  %s16 = inlined_call_operand.vmem [shape: bf16[2,64], index: 16, kind: input, shape index: {}]
  %s17 = inlined_call_operand.vmem [shape: f32[2,1], index: 17, kind: input, shape index: {}]
  %s18 = inlined_call_operand.vmem [shape: bf16[2,256], index: 18, kind: input, shape index: {}]
  %s19 = inlined_call_operand.hbm [shape: f32[2,256], index: 19, kind: output, shape index: {}]
  %s20 = sld [smem:[#allocation0]]
  $region86: #{tpu_custom_call.1} parent=0
    _
  %s22 = ssub.s32 1, %s20
  %s23 = scalar_select 0, %s22, %s20
  $region1: #{tpu_custom_call.1} parent=0
    #allocation3 [shape = 'u8[2048]{0}', space=vmem, size = 0x800, scoped, tag = 'output window, operand 0, single buffered']
    #allocation4 [shape = 's32[1]{0}', space=sflag, size = 0x4, scoped, tag = 'scoped memory for tpu_custom_call.1']
    %24 = vsyncpa [#allocation4], 0
    // Predicated region
    $region2: #{tpu_custom_call.1} parent=1 // pred_check
      _
    $region3: #{tpu_custom_call.1} parent=1 // pred_check_branch
      %26 = sbr.rel (0) target = $region5
    $region4: #{tpu_custom_call.1} parent=1 // pred_region
      _
    $region5: #{tpu_custom_call.1} parent=1 // pred_fallthru
      _
    // Predicated region
    $region6: #{tpu_custom_call.1} parent=1 // pred_check
      _
    $region7: #{tpu_custom_call.1} parent=1 // pred_check_branch
      %28 = sbr.rel (0) target = $region9
    $region8: #{tpu_custom_call.1} parent=1 // pred_region
      _
    $region9: #{tpu_custom_call.1} parent=1 // pred_fallthru
      _
    // Predicated region
    $region10: #{tpu_custom_call.1} parent=1 // pred_check
      _
    $region11: #{tpu_custom_call.1} parent=1 // pred_check_branch
      %30 = sbr.rel (0) target = $region13
    $region12: #{tpu_custom_call.1} parent=1 // pred_region
      _
    $region13: #{tpu_custom_call.1} parent=1 // pred_fallthru
      _
    // Predicated region
    $region14: #{tpu_custom_call.1} parent=1 // pred_check
      _
    $region15: #{tpu_custom_call.1} parent=1 // pred_check_branch
      %32 = sbr.rel (0) target = $region17
    $region16: #{tpu_custom_call.1} parent=1 // pred_region
      _
    $region17: #{tpu_custom_call.1} parent=1 // pred_fallthru
      _
    // Predicated region
    $region18: #{tpu_custom_call.1} parent=1 // pred_check
      _
    $region19: #{tpu_custom_call.1} parent=1 // pred_check_branch
      %34 = sbr.rel (0) target = $region21
    $region20: #{tpu_custom_call.1} parent=1 // pred_region
      _
    $region21: #{tpu_custom_call.1} parent=1 // pred_fallthru
      _
    // Predicated region
    $region22: #{tpu_custom_call.1} parent=1 // pred_check
      _
    $region23: #{tpu_custom_call.1} parent=1 // pred_check_branch
      %36 = sbr.rel (0) target = $region25
    $region24: #{tpu_custom_call.1} parent=1 // pred_region
      _
    $region25: #{tpu_custom_call.1} parent=1 // pred_fallthru
      _
    // Predicated region
    $region26: #{tpu_custom_call.1} parent=1 // pred_check
      _
    $region27: #{tpu_custom_call.1} parent=1 // pred_check_branch
      %38 = sbr.rel (0) target = $region29
    $region28: #{tpu_custom_call.1} parent=1 // pred_region
      _
    $region29: #{tpu_custom_call.1} parent=1 // pred_fallthru
      _
    // Predicated region
    $region30: #{tpu_custom_call.1} parent=1 // pred_check
      _
    $region31: #{tpu_custom_call.1} parent=1 // pred_check_branch
      %40 = sbr.rel (0) target = $region33
    $region32: #{tpu_custom_call.1} parent=1 // pred_region
      _
    $region33: #{tpu_custom_call.1} parent=1 // pred_fallthru
      _
    // Predicated region
    $region34: #{tpu_custom_call.1} parent=1 // pred_check
      _
    $region35: #{tpu_custom_call.1} parent=1 // pred_check_branch
      %42 = sbr.rel (0) target = $region37
    $region36: #{tpu_custom_call.1} parent=1 // pred_region
      _
    $region37: #{tpu_custom_call.1} parent=1 // pred_fallthru
      _
    // Predicated region
    $region38: #{tpu_custom_call.1} parent=1 // pred_check
      _
    $region39: #{tpu_custom_call.1} parent=1 // pred_check_branch
      %44 = sbr.rel (0) target = $region41
    $region40: #{tpu_custom_call.1} parent=1 // pred_region
      _
    $region41: #{tpu_custom_call.1} parent=1 // pred_fallthru
      _
    // Predicated region
    $region42: #{tpu_custom_call.1} parent=1 // pred_check
      _
    $region43: #{tpu_custom_call.1} parent=1 // pred_check_branch
      %46 = sbr.rel (0) target = $region45
    $region44: #{tpu_custom_call.1} parent=1 // pred_region
      _
    $region45: #{tpu_custom_call.1} parent=1 // pred_fallthru
      _
    // Predicated region
    $region46: #{tpu_custom_call.1} parent=1 // pred_check
      _
    $region47: #{tpu_custom_call.1} parent=1 // pred_check_branch
      %48 = sbr.rel (0) target = $region49
    $region48: #{tpu_custom_call.1} parent=1 // pred_region
      _
    $region49: #{tpu_custom_call.1} parent=1 // pred_fallthru
      _
    // Predicated region
    $region50: #{tpu_custom_call.1} parent=1 // pred_check
      _
    $region51: #{tpu_custom_call.1} parent=1 // pred_check_branch
      %50 = sbr.rel (0) target = $region53
    $region52: #{tpu_custom_call.1} parent=1 // pred_region
      _
    $region53: #{tpu_custom_call.1} parent=1 // pred_fallthru
      _
    // Predicated region
    $region54: #{tpu_custom_call.1} parent=1 // pred_check
      _
    $region55: #{tpu_custom_call.1} parent=1 // pred_check_branch
      %52 = sbr.rel (0) target = $region57
    $region56: #{tpu_custom_call.1} parent=1 // pred_region
      _
    $region57: #{tpu_custom_call.1} parent=1 // pred_fallthru
      _
    // Predicated region
    $region58: #{tpu_custom_call.1} parent=1 // pred_check
      _
    $region59: #{tpu_custom_call.1} parent=1 // pred_check_branch
      %54 = sbr.rel (0) target = $region61
    $region60: #{tpu_custom_call.1} parent=1 // pred_region
      _
    $region61: #{tpu_custom_call.1} parent=1 // pred_fallthru
      _
    // Predicated region
    $region62: #{tpu_custom_call.1} parent=1 // pred_check
      _
    $region63: #{tpu_custom_call.1} parent=1 // pred_check_branch
      %56 = sbr.rel (0) target = $region65
    $region64: #{tpu_custom_call.1} parent=1 // pred_region
      _
    $region65: #{tpu_custom_call.1} parent=1 // pred_fallthru
      _
    // Predicated region
    $region66: #{tpu_custom_call.1} parent=1 // pred_check
      _
    $region67: #{tpu_custom_call.1} parent=1 // pred_check_branch
      %58 = sbr.rel (0) target = $region69
    $region68: #{tpu_custom_call.1} parent=1 // pred_region
      _
    $region69: #{tpu_custom_call.1} parent=1 // pred_fallthru
      _
    // Predicated region
    $region70: #{tpu_custom_call.1} parent=1 // pred_check
      _
    $region71: #{tpu_custom_call.1} parent=1 // pred_check_branch
      %60 = sbr.rel (0) target = $region73
    $region72: #{tpu_custom_call.1} parent=1 // pred_region
      _
    $region73: #{tpu_custom_call.1} parent=1 // pred_fallthru
      _
    // Predicated region
    $region74: #{tpu_custom_call.1} parent=1 // pred_check
      _
    $region75: #{tpu_custom_call.1} parent=1 // pred_check_branch
      %62 = sbr.rel (0) target = $region77
    $region76: #{tpu_custom_call.1} parent=1 // pred_region
      _
    $region77: #{tpu_custom_call.1} parent=1 // pred_fallthru
      _
    %v64 = vld [vmem:[%s0] sm:$0x3f]
    %s65 = scalar_lea.vmem %s0, 8
    %v66 = vld [vmem:[%s65] sm:$0x3f]
    %v67 = vld [vmem:[%s1] sm:$0xff]
    %v68 = vld [vmem:[%s2] sm:$0xff]
    %v69 = vld [vmem:[%s3] sm:$0xff]
    %v70 = vld [vmem:[%s4] sm:$0xff]
    %71 = vrot.lane.b32.xlu0 %v64, 4
    %v72 = vpop.permute.xlu0 %71
    %73 = vrot.lane.b32.xlu0 %v64, 3
    %v74 = vpop.permute.xlu0 %73
    %75 = vrot.lane.b32.xlu0 %v64, 2
    %v76 = vpop.permute.xlu0 %75
    %77 = vrot.lane.b32.xlu0 %v64, 1
    %v78 = vpop.permute.xlu0 %77
    %79 = vrot.lane.b32.xlu0 %v64, 127
    %v80 = vpop.permute.xlu0 %79
    %81 = vrot.lane.b32.xlu0 %v64, 126
    %v82 = vpop.permute.xlu0 %81
    %83 = vrot.lane.b32.xlu0 %v64, 125
    %v84 = vpop.permute.xlu0 %83
    %85 = vrot.lane.b32.xlu0 %v64, 124
    %v86 = vpop.permute.xlu0 %85
    %v88 = vrot.slane %v74, 2
    %v91 = vrot.slane %v76, 4
    %v94 = vrot.slane %v78, 6
    %v97 = vrot.slane %v80, 2
    %v100 = vrot.slane %v82, 4
    %v103 = vrot.slane %v84, 6
    %vm105 = vcmask 1045504
    %v106 = vsel %vm105, %v72, %v88
    %vm107 = vcmask 1043456
    %v108 = vsel %vm107, %v88, %v91
    %vm109 = vcmask 1041408
    %v110 = vsel %vm109, %v91, %v94
    %v111 = vsel %vm105, %v64, %v97
    %v112 = vsel %vm107, %v97, %v100
    %v113 = vsel %vm109, %v100, %v103
    %114 = vrot.lane.b32.xlu0 %v66, 4
    %v115 = vpop.permute.xlu0 %114
    %116 = vrot.lane.b32.xlu0 %v66, 3
    %v117 = vpop.permute.xlu0 %116
    %118 = vrot.lane.b32.xlu0 %v66, 2
    %v119 = vpop.permute.xlu0 %118
    %120 = vrot.lane.b32.xlu0 %v66, 1
    %v121 = vpop.permute.xlu0 %120
    %122 = vrot.lane.b32.xlu0 %v66, 127
    %v123 = vpop.permute.xlu0 %122
    %124 = vrot.lane.b32.xlu0 %v66, 126
    %v125 = vpop.permute.xlu0 %124
    %126 = vrot.lane.b32.xlu0 %v66, 125
    %v127 = vpop.permute.xlu0 %126
    %128 = vrot.lane.b32.xlu0 %v66, 124
    %v129 = vpop.permute.xlu0 %128
    %v131 = vrot.slane %v117, 2
    %v134 = vrot.slane %v119, 4
    %v137 = vrot.slane %v121, 6
    %v140 = vrot.slane %v123, 2
    %v143 = vrot.slane %v125, 4
    %v146 = vrot.slane %v127, 6
    %v148 = vsel %vm105, %v115, %v131
    %v149 = vsel %vm107, %v131, %v134
    %v150 = vsel %vm109, %v134, %v137
    %v151 = vsel %vm105, %v66, %v140
    %v152 = vsel %vm107, %v140, %v143
    %v153 = vsel %vm109, %v143, %v146
    %155 = vset.pattern.permute.xlu0 0
    %156 = vperm.xlu0 %155, %v68
    %v157 = vpop.permute.xlu0 %156
    %vm159 = vcmask 441344
    %v161 = vsel %vm159, %v67, 0
    %v164 = vsel %vm105, %v86, 0
    %v167 = vsel %vm105, %v129, 0
    %169 = vmatprep.subr.mxu0 %v148
    %170 = vmatpush1.msra.mxu0 %v106
    %171 = vmatprep.subr.mxu0 %v149
    %172 = vmatpush1.msra.mxu0 %v108
    %173 = vmatprep.subr.mxu0 %v150
    %174 = vmatpush1.msra.mxu0 %v110
    %175 = vmatprep.subr.mxu0 %v151
    %176 = vmatpush1.msra.mxu0 %v111
    %177 = vmatprep.subr.mxu0 %v152
    %178 = vmatpush1.msra.mxu0 %v112
    %179 = vmatprep.subr.mxu0 %v153
    %180 = vmatpush1.msra.mxu0 %v113
    %181 = vmatprep.subr.mxu0 %v167
    %182 = vmatpush1.msra.mxu0 %v164
    %183 = vmatprep.subr.mxu0 0.0
    %184 = vmatpush1.msra.mxu0 0.0
    %185 = vmatprep.subr.mxu0 0.0
    %186 = vmatpush1.msra.mxu0 0.0
    %187 = vmatprep.subr.mxu0 0.0
    %188 = vmatpush1.msra.mxu0 0.0
    %189 = vmatprep.subr.mxu0 0.0
    %190 = vmatpush1.msra.mxu0 0.0
    %191 = vmatprep.subr.mxu0 0.0
    %192 = vmatpush1.msra.mxu0 0.0
    %193 = vmatprep.subr.mxu0 0.0
    %194 = vmatpush1.msra.mxu0 0.0
    %195 = vmatprep.subr.mxu0 0.0
    %196 = vmatpush1.msra.mxu0 0.0
    %197 = vmatprep.subr.mxu0 0.0
    %198 = vmatpush1.msra.mxu0 0.0
    %199 = vmatprep.subr.mxu0 0.0
    %200 = vmatpush1.msra.mxu0 0.0
    %201 = vmatprep.subr.mxu0 0.0
    %202 = vmatpush1.msra.mxu0 0.0
    %203 = vmatprep.subr.mxu0 0.0
    %204 = vmatpush1.msra.mxu0 0.0
    %205 = vmatprep.subr.mxu0 0.0
    %206 = vmatpush1.msra.mxu0 0.0
    %207 = vmatprep.subr.mxu0 0.0
    %208 = vmatpush1.msra.mxu0 0.0
    %209 = vmatprep.subr.mxu0 0.0
    %210 = vmatpush1.msra.mxu0 0.0
    %211 = vmatprep.subr.mxu0 0.0
    %212 = vmatpush1.msra.mxu0 0.0
    %213 = vmatprep.subr.mxu0 0.0
    %214 = vmatpush1.msra.mxu0 0.0
    %215 = vmatprep.subr.mxu0 0.0
    %216 = vmatpush1.msra.mxu0 0.0
    %217 = vmatprep.subr.mxu0 0.0
    %218 = vmatpush1.msra.mxu0 0.0
    %219 = vmatprep.subr.mxu0 0.0
    %220 = vmatpush1.msra.mxu0 0.0
    %221 = vmatprep.subr.mxu0 0.0
    %222 = vmatpush1.msra.mxu0 0.0
    %223 = vmatprep.subr.mxu0 0.0
    %224 = vmatpush1.msra.mxu0 0.0
    %225 = vmatprep.subr.mxu0 0.0
    %226 = vmatpush1.msra.mxu0 0.0
    %227 = vmatprep.subr.mxu0 0.0
    %228 = vmatpush1.msra.mxu0 0.0
    %229 = vmatprep.subr.mxu0 0.0
    %230 = vmatpush1.msra.mxu0 0.0
    %231 = vmatprep.subr.mxu0 0.0
    %232 = vmatpush1.msra.mxu0 0.0
    %233 = vmatprep.mubr.f32.mxu0 0.0
    %234 = vmatmul.mubr.f32.gmra.mrb[0].mxu0 %v161
    %v235 = vpop.f32.mrb[0].mxu0
    %v236 = vadd.f32 %v157, %v235
    %v237 = vpop.f32.mrb[0].mxu0
    %v238 = vadd.f32 %v157, %v237
    %239 = vdwg.mxu0
    %v240 = vmax.f32 %v236, 0.0
    %v241 = vmax.f32 %v238, 0.0
    %v242 = vadd.f32 %v240, %v241
    %243 = vadd.xlane.f32.xlu0 %v242
    %v244 = vpop.xlane.xlu0 %243
    %v245 = vmul.f32 %v244, 0.00390625
    %v246 = vmul.f32 %v240, %v240
    %v247 = vmul.f32 %v241, %v241
    %v248 = vadd.f32 %v246, %v247
    %249 = vadd.xlane.f32.xlu0 %v248
    %v250 = vpop.xlane.xlu0 %249
    %v251 = vmul.f32 %v250, 0.00390625
    %v252 = vmul.f32 %v245, %v245
    %v253 = vsub.f32 %v251, %v252
    %v254 = vadd.f32 %v253, 1e-05
    %v255 = vrsqrt.pop %v254
    %v256 = vmul.f32 %v69, %v255
    %v257 = vmul.f32 %v245, %v256
    %v258 = vsub.f32 %v70, %v257
    %260 = vset.pattern.permute.xlu0 0
    %261 = vperm.xlu0 %260, %v256
    %v262 = vpop.permute.xlu0 %261
    %v264 = vmul.f32 %v240, %v262
    %v265 = vmul.f32 %v241, %v262
    %267 = vset.pattern.permute.xlu0 0
    %268 = vperm.xlu0 %267, %v258
    %v269 = vpop.permute.xlu0 %268
    %v271 = vadd.f32 %v264, %v269
    %v272 = vadd.f32 %v265, %v269
    %273 = vst [vmem:[#allocation2] sm:$0xff] %v271
    %274 = vst [vmem:[#allocation2 + $0x8] sm:$0xff] %v272
    %v275 = vld [vmem:[%s5] sm:$0xff]
    %v276 = vld [vmem:[%s6] sm:$0xff]
    %v277 = vld [vmem:[%s7] sm:$0xff]
    %v278 = vld [vmem:[%s8] sm:$0xff]
    %279 = vrot.lane.b32.xlu0 %v271, 4
    %v280 = vpop.permute.xlu0 %279
    %281 = vrot.lane.b32.xlu0 %v271, 3
    %v282 = vpop.permute.xlu0 %281
    %283 = vrot.lane.b32.xlu0 %v271, 2
    %v284 = vpop.permute.xlu0 %283
    %285 = vrot.lane.b32.xlu0 %v271, 1
    %v286 = vpop.permute.xlu0 %285
    %287 = vrot.lane.b32.xlu0 %v271, 127
    %v288 = vpop.permute.xlu0 %287
    %289 = vrot.lane.b32.xlu0 %v271, 126
    %v290 = vpop.permute.xlu0 %289
    %291 = vrot.lane.b32.xlu0 %v271, 125
    %v292 = vpop.permute.xlu0 %291
    %293 = vrot.lane.b32.xlu0 %v271, 124
    %v294 = vpop.permute.xlu0 %293
    %295 = vrot.lane.b32.xlu0 %v272, 4
    %v296 = vpop.permute.xlu0 %295
    %297 = vrot.lane.b32.xlu0 %v272, 3
    %v298 = vpop.permute.xlu0 %297
    %299 = vrot.lane.b32.xlu0 %v272, 2
    %v300 = vpop.permute.xlu0 %299
    %301 = vrot.lane.b32.xlu0 %v272, 1
    %v302 = vpop.permute.xlu0 %301
    %303 = vrot.lane.b32.xlu0 %v272, 127
    %v304 = vpop.permute.xlu0 %303
    %305 = vrot.lane.b32.xlu0 %v272, 126
    %v306 = vpop.permute.xlu0 %305
    %307 = vrot.lane.b32.xlu0 %v272, 125
    %v308 = vpop.permute.xlu0 %307
    %309 = vrot.lane.b32.xlu0 %v272, 124
    %v310 = vpop.permute.xlu0 %309
    %312 = vset.pattern.permute.xlu0 0
    %313 = vperm.xlu0 %312, %v276
    %v314 = vpop.permute.xlu0 %313
    %vm316 = vcmask 588800
    %v318 = vsel %vm316, %v275, 0
    %320 = vmatprep.subr.mxu0 %v296
    %321 = vmatpush1.msra.mxu0 %v280
    %322 = vmatprep.subr.mxu0 %v298
    %323 = vmatpush1.msra.mxu0 %v282
    %324 = vmatprep.subr.mxu0 %v300
    %325 = vmatpush1.msra.mxu0 %v284
    %326 = vmatprep.subr.mxu0 %v302
    %327 = vmatpush1.msra.mxu0 %v286
    %328 = vmatprep.subr.mxu0 %v272
    %329 = vmatpush1.msra.mxu0 %v271
    %330 = vmatprep.subr.mxu0 %v304
    %331 = vmatpush1.msra.mxu0 %v288
    %332 = vmatprep.subr.mxu0 %v306
    %333 = vmatpush1.msra.mxu0 %v290
    %334 = vmatprep.subr.mxu0 %v308
    %335 = vmatpush1.msra.mxu0 %v292
    %336 = vmatprep.subr.mxu0 %v310
    %337 = vmatpush1.msra.mxu0 %v294
    %338 = vmatprep.subr.mxu0 0.0
    %339 = vmatpush1.msra.mxu0 0.0
    %340 = vmatprep.subr.mxu0 0.0
    %341 = vmatpush1.msra.mxu0 0.0
    %342 = vmatprep.subr.mxu0 0.0
    %343 = vmatpush1.msra.mxu0 0.0
    %344 = vmatprep.subr.mxu0 0.0
    %345 = vmatpush1.msra.mxu0 0.0
    %346 = vmatprep.subr.mxu0 0.0
    %347 = vmatpush1.msra.mxu0 0.0
    %348 = vmatprep.subr.mxu0 0.0
    %349 = vmatpush1.msra.mxu0 0.0
    %350 = vmatprep.subr.mxu0 0.0
    %351 = vmatpush1.msra.mxu0 0.0
    %352 = vmatprep.subr.mxu0 0.0
    %353 = vmatpush1.msra.mxu0 0.0
    %354 = vmatprep.subr.mxu0 0.0
    %355 = vmatpush1.msra.mxu0 0.0
    %356 = vmatprep.subr.mxu0 0.0
    %357 = vmatpush1.msra.mxu0 0.0
    %358 = vmatprep.subr.mxu0 0.0
    %359 = vmatpush1.msra.mxu0 0.0
    %360 = vmatprep.subr.mxu0 0.0
    %361 = vmatpush1.msra.mxu0 0.0
    %362 = vmatprep.subr.mxu0 0.0
    %363 = vmatpush1.msra.mxu0 0.0
    %364 = vmatprep.subr.mxu0 0.0
    %365 = vmatpush1.msra.mxu0 0.0
    %366 = vmatprep.subr.mxu0 0.0
    %367 = vmatpush1.msra.mxu0 0.0
    %368 = vmatprep.subr.mxu0 0.0
    %369 = vmatpush1.msra.mxu0 0.0
    %370 = vmatprep.subr.mxu0 0.0
    %371 = vmatpush1.msra.mxu0 0.0
    %372 = vmatprep.subr.mxu0 0.0
    %373 = vmatpush1.msra.mxu0 0.0
    %374 = vmatprep.subr.mxu0 0.0
    %375 = vmatpush1.msra.mxu0 0.0
    %376 = vmatprep.subr.mxu0 0.0
    %377 = vmatpush1.msra.mxu0 0.0
    %378 = vmatprep.subr.mxu0 0.0
    %379 = vmatpush1.msra.mxu0 0.0
    %380 = vmatprep.subr.mxu0 0.0
    %381 = vmatpush1.msra.mxu0 0.0
    %382 = vmatprep.subr.mxu0 0.0
    %383 = vmatpush1.msra.mxu0 0.0
    %384 = vmatprep.mubr.f32.mxu0 0.0
    %385 = vmatmul.mubr.f32.gmra.mrb[0].mxu0 %v318
    %v386 = vpop.f32.mrb[0].mxu0
    %v387 = vadd.f32 %v314, %v386
    %v388 = vpop.f32.mrb[0].mxu0
    %v389 = vadd.f32 %v314, %v388
    %390 = vdwg.mxu0
    %v391 = vmax.f32 %v387, 0.0
    %v392 = vmax.f32 %v389, 0.0
    %v393 = vadd.f32 %v391, %v392
    %394 = vadd.xlane.f32.xlu0 %v393
    %v395 = vpop.xlane.xlu0 %394
    %v396 = vmul.f32 %v395, 0.00390625
    %v397 = vmul.f32 %v391, %v391
    %v398 = vmul.f32 %v392, %v392
    %v399 = vadd.f32 %v397, %v398
    %400 = vadd.xlane.f32.xlu0 %v399
    %v401 = vpop.xlane.xlu0 %400
    %v402 = vmul.f32 %v401, 0.00390625
    %v403 = vmul.f32 %v396, %v396
    %v404 = vsub.f32 %v402, %v403
    %v405 = vadd.f32 %v404, 1e-05
    %v406 = vrsqrt.pop %v405
    %v407 = vmul.f32 %v277, %v406
    %v408 = vmul.f32 %v396, %v407
    %v409 = vsub.f32 %v278, %v408
    %411 = vset.pattern.permute.xlu0 0
    %412 = vperm.xlu0 %411, %v407
    %v413 = vpop.permute.xlu0 %412
    %v415 = vmul.f32 %v391, %v413
    %v416 = vmul.f32 %v392, %v413
    %418 = vset.pattern.permute.xlu0 0
    %419 = vperm.xlu0 %418, %v409
    %v420 = vpop.permute.xlu0 %419
    %v422 = vadd.f32 %v415, %v420
    %v423 = vadd.f32 %v416, %v420
    %v424 = vadd.f32 %v422, %v271
    %v425 = vadd.f32 %v423, %v272
    %426 = vst [vmem:[#allocation2 + $0x10] sm:$0xff] %v424
    %427 = vst [vmem:[#allocation2 + $0x18] sm:$0xff] %v425
    %s428 = scalar_lea.vmem %s5, 8
    %v429 = vld [vmem:[%s428] sm:$0xff]
    %s430 = scalar_lea.vmem %s6, 8
    %v431 = vld [vmem:[%s430] sm:$0xff]
    %s432 = scalar_lea.vmem %s7, 8
    %v433 = vld [vmem:[%s432] sm:$0xff]
    %s434 = scalar_lea.vmem %s8, 8
    %v435 = vld [vmem:[%s434] sm:$0xff]
    %436 = vrot.lane.b32.xlu0 %v424, 4
    %v437 = vpop.permute.xlu0 %436
    %438 = vrot.lane.b32.xlu0 %v424, 3
    %v439 = vpop.permute.xlu0 %438
    %440 = vrot.lane.b32.xlu0 %v424, 2
    %v441 = vpop.permute.xlu0 %440
    %442 = vrot.lane.b32.xlu0 %v424, 1
    %v443 = vpop.permute.xlu0 %442
    %444 = vrot.lane.b32.xlu0 %v424, 127
    %v445 = vpop.permute.xlu0 %444
    %446 = vrot.lane.b32.xlu0 %v424, 126
    %v447 = vpop.permute.xlu0 %446
    %448 = vrot.lane.b32.xlu0 %v424, 125
    %v449 = vpop.permute.xlu0 %448
    %450 = vrot.lane.b32.xlu0 %v424, 124
    %v451 = vpop.permute.xlu0 %450
    %452 = vrot.lane.b32.xlu0 %v425, 4
    %v453 = vpop.permute.xlu0 %452
    %454 = vrot.lane.b32.xlu0 %v425, 3
    %v455 = vpop.permute.xlu0 %454
    %456 = vrot.lane.b32.xlu0 %v425, 2
    %v457 = vpop.permute.xlu0 %456
    %458 = vrot.lane.b32.xlu0 %v425, 1
    %v459 = vpop.permute.xlu0 %458
    %460 = vrot.lane.b32.xlu0 %v425, 127
    %v461 = vpop.permute.xlu0 %460
    %462 = vrot.lane.b32.xlu0 %v425, 126
    %v463 = vpop.permute.xlu0 %462
    %464 = vrot.lane.b32.xlu0 %v425, 125
    %v465 = vpop.permute.xlu0 %464
    %466 = vrot.lane.b32.xlu0 %v425, 124
    %v467 = vpop.permute.xlu0 %466
    %469 = vset.pattern.permute.xlu0 0
    %470 = vperm.xlu0 %469, %v431
    %v471 = vpop.permute.xlu0 %470
    %v474 = vsel %vm316, %v429, 0
    %476 = vmatprep.subr.mxu0 %v453
    %477 = vmatpush1.msra.mxu0 %v437
    %478 = vmatprep.subr.mxu0 %v455
    %479 = vmatpush1.msra.mxu0 %v439
    %480 = vmatprep.subr.mxu0 %v457
    %481 = vmatpush1.msra.mxu0 %v441
    %482 = vmatprep.subr.mxu0 %v459
    %483 = vmatpush1.msra.mxu0 %v443
    %484 = vmatprep.subr.mxu0 %v425
    %485 = vmatpush1.msra.mxu0 %v424
    %486 = vmatprep.subr.mxu0 %v461
    %487 = vmatpush1.msra.mxu0 %v445
    %488 = vmatprep.subr.mxu0 %v463
    %489 = vmatpush1.msra.mxu0 %v447
    %490 = vmatprep.subr.mxu0 %v465
    %491 = vmatpush1.msra.mxu0 %v449
    %492 = vmatprep.subr.mxu0 %v467
    %493 = vmatpush1.msra.mxu0 %v451
    %494 = vmatprep.subr.mxu0 0.0
    %495 = vmatpush1.msra.mxu0 0.0
    %496 = vmatprep.subr.mxu0 0.0
    %497 = vmatpush1.msra.mxu0 0.0
    %498 = vmatprep.subr.mxu0 0.0
    %499 = vmatpush1.msra.mxu0 0.0
    %500 = vmatprep.subr.mxu0 0.0
    %501 = vmatpush1.msra.mxu0 0.0
    %502 = vmatprep.subr.mxu0 0.0
    %503 = vmatpush1.msra.mxu0 0.0
    %504 = vmatprep.subr.mxu0 0.0
    %505 = vmatpush1.msra.mxu0 0.0
    %506 = vmatprep.subr.mxu0 0.0
    %507 = vmatpush1.msra.mxu0 0.0
    %508 = vmatprep.subr.mxu0 0.0
    %509 = vmatpush1.msra.mxu0 0.0
    %510 = vmatprep.subr.mxu0 0.0
    %511 = vmatpush1.msra.mxu0 0.0
    %512 = vmatprep.subr.mxu0 0.0
    %513 = vmatpush1.msra.mxu0 0.0
    %514 = vmatprep.subr.mxu0 0.0
    %515 = vmatpush1.msra.mxu0 0.0
    %516 = vmatprep.subr.mxu0 0.0
    %517 = vmatpush1.msra.mxu0 0.0
    %518 = vmatprep.subr.mxu0 0.0
    %519 = vmatpush1.msra.mxu0 0.0
    %520 = vmatprep.subr.mxu0 0.0
    %521 = vmatpush1.msra.mxu0 0.0
    %522 = vmatprep.subr.mxu0 0.0
    %523 = vmatpush1.msra.mxu0 0.0
    %524 = vmatprep.subr.mxu0 0.0
    %525 = vmatpush1.msra.mxu0 0.0
    %526 = vmatprep.subr.mxu0 0.0
    %527 = vmatpush1.msra.mxu0 0.0
    %528 = vmatprep.subr.mxu0 0.0
    %529 = vmatpush1.msra.mxu0 0.0
    %530 = vmatprep.subr.mxu0 0.0
    %531 = vmatpush1.msra.mxu0 0.0
    %532 = vmatprep.subr.mxu0 0.0
    %533 = vmatpush1.msra.mxu0 0.0
    %534 = vmatprep.subr.mxu0 0.0
    %535 = vmatpush1.msra.mxu0 0.0
    %536 = vmatprep.subr.mxu0 0.0
    %537 = vmatpush1.msra.mxu0 0.0
    %538 = vmatprep.subr.mxu0 0.0
    %539 = vmatpush1.msra.mxu0 0.0
    %540 = vmatprep.mubr.f32.mxu0 0.0
    %541 = vmatmul.mubr.f32.gmra.mrb[0].mxu0 %v474
    %v542 = vpop.f32.mrb[0].mxu0
    %v543 = vadd.f32 %v471, %v542
    %v544 = vpop.f32.mrb[0].mxu0
    %v545 = vadd.f32 %v471, %v544
    %546 = vdwg.mxu0
    %v547 = vmax.f32 %v543, 0.0
    %v548 = vmax.f32 %v545, 0.0
    %v549 = vadd.f32 %v547, %v548
    %550 = vadd.xlane.f32.xlu0 %v549
    %v551 = vpop.xlane.xlu0 %550
    %v552 = vmul.f32 %v551, 0.00390625
    %v553 = vmul.f32 %v547, %v547
    %v554 = vmul.f32 %v548, %v548
    %v555 = vadd.f32 %v553, %v554
    %556 = vadd.xlane.f32.xlu0 %v555
    %v557 = vpop.xlane.xlu0 %556
    %v558 = vmul.f32 %v557, 0.00390625
    %v559 = vmul.f32 %v552, %v552
    %v560 = vsub.f32 %v558, %v559
    %v561 = vadd.f32 %v560, 1e-05
    %v562 = vrsqrt.pop %v561
    %v563 = vmul.f32 %v433, %v562
    %v564 = vmul.f32 %v552, %v563
    %v565 = vsub.f32 %v435, %v564
    %567 = vset.pattern.permute.xlu0 0
    %568 = vperm.xlu0 %567, %v563
    %v569 = vpop.permute.xlu0 %568
    %v571 = vmul.f32 %v547, %v569
    %v572 = vmul.f32 %v548, %v569
    %574 = vset.pattern.permute.xlu0 0
    %575 = vperm.xlu0 %574, %v565
    %v576 = vpop.permute.xlu0 %575
    %v578 = vadd.f32 %v571, %v576
    %v579 = vadd.f32 %v572, %v576
    %v580 = vadd.f32 %v578, %v424
    %v581 = vadd.f32 %v579, %v425
    %582 = vst [vmem:[#allocation2 + $0x20] sm:$0xff] %v580
    %583 = vst [vmem:[#allocation2 + $0x28] sm:$0xff] %v581
    %s584 = scalar_lea.vmem %s5, 16
    %v585 = vld [vmem:[%s584] sm:$0xff]
    %s586 = scalar_lea.vmem %s6, 16
    %v587 = vld [vmem:[%s586] sm:$0xff]
    %s588 = scalar_lea.vmem %s7, 16
    %v589 = vld [vmem:[%s588] sm:$0xff]
    %s590 = scalar_lea.vmem %s8, 16
    %v591 = vld [vmem:[%s590] sm:$0xff]
    %592 = vrot.lane.b32.xlu0 %v580, 4
    %v593 = vpop.permute.xlu0 %592
    %594 = vrot.lane.b32.xlu0 %v580, 3
    %v595 = vpop.permute.xlu0 %594
    %596 = vrot.lane.b32.xlu0 %v580, 2
    %v597 = vpop.permute.xlu0 %596
    %598 = vrot.lane.b32.xlu0 %v580, 1
    %v599 = vpop.permute.xlu0 %598
    %600 = vrot.lane.b32.xlu0 %v580, 127
    %v601 = vpop.permute.xlu0 %600
    %602 = vrot.lane.b32.xlu0 %v580, 126
    %v603 = vpop.permute.xlu0 %602
    %604 = vrot.lane.b32.xlu0 %v580, 125
    %v605 = vpop.permute.xlu0 %604
    %606 = vrot.lane.b32.xlu0 %v580, 124
    %v607 = vpop.permute.xlu0 %606
    %608 = vrot.lane.b32.xlu0 %v581, 4
    %v609 = vpop.permute.xlu0 %608
    %610 = vrot.lane.b32.xlu0 %v581, 3
    %v611 = vpop.permute.xlu0 %610
    %612 = vrot.lane.b32.xlu0 %v581, 2
    %v613 = vpop.permute.xlu0 %612
    %614 = vrot.lane.b32.xlu0 %v581, 1
    %v615 = vpop.permute.xlu0 %614
    %616 = vrot.lane.b32.xlu0 %v581, 127
    %v617 = vpop.permute.xlu0 %616
    %618 = vrot.lane.b32.xlu0 %v581, 126
    %v619 = vpop.permute.xlu0 %618
    %620 = vrot.lane.b32.xlu0 %v581, 125
    %v621 = vpop.permute.xlu0 %620
    %622 = vrot.lane.b32.xlu0 %v581, 124
    %v623 = vpop.permute.xlu0 %622
    %625 = vset.pattern.permute.xlu0 0
    %626 = vperm.xlu0 %625, %v587
    %v627 = vpop.permute.xlu0 %626
    %v630 = vsel %vm316, %v585, 0
    %632 = vmatprep.subr.mxu0 %v609
    %633 = vmatpush1.msra.mxu0 %v593
    %634 = vmatprep.subr.mxu0 %v611
    %635 = vmatpush1.msra.mxu0 %v595
    %636 = vmatprep.subr.mxu0 %v613
    %637 = vmatpush1.msra.mxu0 %v597
    %638 = vmatprep.subr.mxu0 %v615
    %639 = vmatpush1.msra.mxu0 %v599
    %640 = vmatprep.subr.mxu0 %v581
    %641 = vmatpush1.msra.mxu0 %v580
    %642 = vmatprep.subr.mxu0 %v617
    %643 = vmatpush1.msra.mxu0 %v601
    %644 = vmatprep.subr.mxu0 %v619
    %645 = vmatpush1.msra.mxu0 %v603
    %646 = vmatprep.subr.mxu0 %v621
    %647 = vmatpush1.msra.mxu0 %v605
    %648 = vmatprep.subr.mxu0 %v623
    %649 = vmatpush1.msra.mxu0 %v607
    %650 = vmatprep.subr.mxu0 0.0
    %651 = vmatpush1.msra.mxu0 0.0
    %652 = vmatprep.subr.mxu0 0.0
    %653 = vmatpush1.msra.mxu0 0.0
    %654 = vmatprep.subr.mxu0 0.0
    %655 = vmatpush1.msra.mxu0 0.0
    %656 = vmatprep.subr.mxu0 0.0
    %657 = vmatpush1.msra.mxu0 0.0
    %658 = vmatprep.subr.mxu0 0.0
    %659 = vmatpush1.msra.mxu0 0.0
    %660 = vmatprep.subr.mxu0 0.0
    %661 = vmatpush1.msra.mxu0 0.0
    %662 = vmatprep.subr.mxu0 0.0
    %663 = vmatpush1.msra.mxu0 0.0
    %664 = vmatprep.subr.mxu0 0.0
    %665 = vmatpush1.msra.mxu0 0.0
    %666 = vmatprep.subr.mxu0 0.0
    %667 = vmatpush1.msra.mxu0 0.0
    %668 = vmatprep.subr.mxu0 0.0
    %669 = vmatpush1.msra.mxu0 0.0
    %670 = vmatprep.subr.mxu0 0.0
    %671 = vmatpush1.msra.mxu0 0.0
    %672 = vmatprep.subr.mxu0 0.0
    %673 = vmatpush1.msra.mxu0 0.0
    %674 = vmatprep.subr.mxu0 0.0
    %675 = vmatpush1.msra.mxu0 0.0
    %676 = vmatprep.subr.mxu0 0.0
    %677 = vmatpush1.msra.mxu0 0.0
    %678 = vmatprep.subr.mxu0 0.0
    %679 = vmatpush1.msra.mxu0 0.0
    %680 = vmatprep.subr.mxu0 0.0
    %681 = vmatpush1.msra.mxu0 0.0
    %682 = vmatprep.subr.mxu0 0.0
    %683 = vmatpush1.msra.mxu0 0.0
    %684 = vmatprep.subr.mxu0 0.0
    %685 = vmatpush1.msra.mxu0 0.0
    %686 = vmatprep.subr.mxu0 0.0
    %687 = vmatpush1.msra.mxu0 0.0
    %688 = vmatprep.subr.mxu0 0.0
    %689 = vmatpush1.msra.mxu0 0.0
    %690 = vmatprep.subr.mxu0 0.0
    %691 = vmatpush1.msra.mxu0 0.0
    %692 = vmatprep.subr.mxu0 0.0
    %693 = vmatpush1.msra.mxu0 0.0
    %694 = vmatprep.subr.mxu0 0.0
    %695 = vmatpush1.msra.mxu0 0.0
    %696 = vmatprep.mubr.f32.mxu0 0.0
    %697 = vmatmul.mubr.f32.gmra.mrb[0].mxu0 %v630
    %v698 = vpop.f32.mrb[0].mxu0
    %v699 = vadd.f32 %v627, %v698
    %v700 = vpop.f32.mrb[0].mxu0
    %v701 = vadd.f32 %v627, %v700
    %702 = vdwg.mxu0
    %v703 = vmax.f32 %v699, 0.0
    %v704 = vmax.f32 %v701, 0.0
    %v705 = vadd.f32 %v703, %v704
    %706 = vadd.xlane.f32.xlu0 %v705
    %v707 = vpop.xlane.xlu0 %706
    %v708 = vmul.f32 %v707, 0.00390625
    %v709 = vmul.f32 %v703, %v703
    %v710 = vmul.f32 %v704, %v704
    %v711 = vadd.f32 %v709, %v710
    %712 = vadd.xlane.f32.xlu0 %v711
    %v713 = vpop.xlane.xlu0 %712
    %v714 = vmul.f32 %v713, 0.00390625
    %v715 = vmul.f32 %v708, %v708
    %v716 = vsub.f32 %v714, %v715
    %v717 = vadd.f32 %v716, 1e-05
    %v718 = vrsqrt.pop %v717
    %v719 = vmul.f32 %v589, %v718
    %v720 = vmul.f32 %v708, %v719
    %v721 = vsub.f32 %v591, %v720
    %723 = vset.pattern.permute.xlu0 0
    %724 = vperm.xlu0 %723, %v719
    %v725 = vpop.permute.xlu0 %724
    %v727 = vmul.f32 %v703, %v725
    %v728 = vmul.f32 %v704, %v725
    %730 = vset.pattern.permute.xlu0 0
    %731 = vperm.xlu0 %730, %v721
    %v732 = vpop.permute.xlu0 %731
    %v734 = vadd.f32 %v727, %v732
    %v735 = vadd.f32 %v728, %v732
    %v736 = vadd.f32 %v734, %v580
    %v737 = vadd.f32 %v735, %v581
    %738 = vst [vmem:[#allocation2 + $0x30] sm:$0xff] %v736
    %739 = vst [vmem:[#allocation2 + $0x38] sm:$0xff] %v737
    %s740 = scalar_lea.vmem %s5, 24
    %v741 = vld [vmem:[%s740] sm:$0xff]
    %s742 = scalar_lea.vmem %s6, 24
    %v743 = vld [vmem:[%s742] sm:$0xff]
    %s744 = scalar_lea.vmem %s7, 24
    %v745 = vld [vmem:[%s744] sm:$0xff]
    %s746 = scalar_lea.vmem %s8, 24
    %v747 = vld [vmem:[%s746] sm:$0xff]
    %748 = vrot.lane.b32.xlu0 %v736, 8
    %v749 = vpop.permute.xlu0 %748
    %750 = vrot.lane.b32.xlu0 %v736, 6
    %v751 = vpop.permute.xlu0 %750
    %752 = vrot.lane.b32.xlu0 %v736, 4
    %v753 = vpop.permute.xlu0 %752
    %754 = vrot.lane.b32.xlu0 %v736, 2
    %v755 = vpop.permute.xlu0 %754
    %756 = vrot.lane.b32.xlu0 %v736, 126
    %v757 = vpop.permute.xlu0 %756
    %758 = vrot.lane.b32.xlu0 %v736, 124
    %v759 = vpop.permute.xlu0 %758
    %760 = vrot.lane.b32.xlu0 %v736, 122
    %v761 = vpop.permute.xlu0 %760
    %762 = vrot.lane.b32.xlu0 %v736, 120
    %v763 = vpop.permute.xlu0 %762
    %764 = vrot.lane.b32.xlu0 %v737, 8
    %v765 = vpop.permute.xlu0 %764
    %766 = vrot.lane.b32.xlu0 %v737, 6
    %v767 = vpop.permute.xlu0 %766
    %768 = vrot.lane.b32.xlu0 %v737, 4
    %v769 = vpop.permute.xlu0 %768
    %770 = vrot.lane.b32.xlu0 %v737, 2
    %v771 = vpop.permute.xlu0 %770
    %772 = vrot.lane.b32.xlu0 %v737, 126
    %v773 = vpop.permute.xlu0 %772
    %774 = vrot.lane.b32.xlu0 %v737, 124
    %v775 = vpop.permute.xlu0 %774
    %776 = vrot.lane.b32.xlu0 %v737, 122
    %v777 = vpop.permute.xlu0 %776
    %778 = vrot.lane.b32.xlu0 %v737, 120
    %v779 = vpop.permute.xlu0 %778
    %781 = vset.pattern.permute.xlu0 0
    %782 = vperm.xlu0 %781, %v743
    %v783 = vpop.permute.xlu0 %782
    %v786 = vsel %vm316, %v741, 0
    %788 = vmatprep.subr.mxu0 %v765
    %789 = vmatpush1.msra.mxu0 %v749
    %790 = vmatprep.subr.mxu0 %v767
    %791 = vmatpush1.msra.mxu0 %v751
    %792 = vmatprep.subr.mxu0 %v769
    %793 = vmatpush1.msra.mxu0 %v753
    %794 = vmatprep.subr.mxu0 %v771
    %795 = vmatpush1.msra.mxu0 %v755
    %796 = vmatprep.subr.mxu0 %v737
    %797 = vmatpush1.msra.mxu0 %v736
    %798 = vmatprep.subr.mxu0 %v773
    %799 = vmatpush1.msra.mxu0 %v757
    %800 = vmatprep.subr.mxu0 %v775
    %801 = vmatpush1.msra.mxu0 %v759
    %802 = vmatprep.subr.mxu0 %v777
    %803 = vmatpush1.msra.mxu0 %v761
    %804 = vmatprep.subr.mxu0 %v779
    %805 = vmatpush1.msra.mxu0 %v763
    %806 = vmatprep.subr.mxu0 0.0
    %807 = vmatpush1.msra.mxu0 0.0
    %808 = vmatprep.subr.mxu0 0.0
    %809 = vmatpush1.msra.mxu0 0.0
    %810 = vmatprep.subr.mxu0 0.0
    %811 = vmatpush1.msra.mxu0 0.0
    %812 = vmatprep.subr.mxu0 0.0
    %813 = vmatpush1.msra.mxu0 0.0
    %814 = vmatprep.subr.mxu0 0.0
    %815 = vmatpush1.msra.mxu0 0.0
    %816 = vmatprep.subr.mxu0 0.0
    %817 = vmatpush1.msra.mxu0 0.0
    %818 = vmatprep.subr.mxu0 0.0
    %819 = vmatpush1.msra.mxu0 0.0
    %820 = vmatprep.subr.mxu0 0.0
    %821 = vmatpush1.msra.mxu0 0.0
    %822 = vmatprep.subr.mxu0 0.0
    %823 = vmatpush1.msra.mxu0 0.0
    %824 = vmatprep.subr.mxu0 0.0
    %825 = vmatpush1.msra.mxu0 0.0
    %826 = vmatprep.subr.mxu0 0.0
    %827 = vmatpush1.msra.mxu0 0.0
    %828 = vmatprep.subr.mxu0 0.0
    %829 = vmatpush1.msra.mxu0 0.0
    %830 = vmatprep.subr.mxu0 0.0
    %831 = vmatpush1.msra.mxu0 0.0
    %832 = vmatprep.subr.mxu0 0.0
    %833 = vmatpush1.msra.mxu0 0.0
    %834 = vmatprep.subr.mxu0 0.0
    %835 = vmatpush1.msra.mxu0 0.0
    %836 = vmatprep.subr.mxu0 0.0
    %837 = vmatpush1.msra.mxu0 0.0
    %838 = vmatprep.subr.mxu0 0.0
    %839 = vmatpush1.msra.mxu0 0.0
    %840 = vmatprep.subr.mxu0 0.0
    %841 = vmatpush1.msra.mxu0 0.0
    %842 = vmatprep.subr.mxu0 0.0
    %843 = vmatpush1.msra.mxu0 0.0
    %844 = vmatprep.subr.mxu0 0.0
    %845 = vmatpush1.msra.mxu0 0.0
    %846 = vmatprep.subr.mxu0 0.0
    %847 = vmatpush1.msra.mxu0 0.0
    %848 = vmatprep.subr.mxu0 0.0
    %849 = vmatpush1.msra.mxu0 0.0
    %850 = vmatprep.subr.mxu0 0.0
    %851 = vmatpush1.msra.mxu0 0.0
    %852 = vmatprep.mubr.f32.mxu0 0.0
    %853 = vmatmul.mubr.f32.gmra.mrb[0].mxu0 %v786
    %v854 = vpop.f32.mrb[0].mxu0
    %v855 = vadd.f32 %v783, %v854
    %v856 = vpop.f32.mrb[0].mxu0
    %v857 = vadd.f32 %v783, %v856
    %858 = vdwg.mxu0
    %v859 = vmax.f32 %v855, 0.0
    %v860 = vmax.f32 %v857, 0.0
    %v861 = vadd.f32 %v859, %v860
    %862 = vadd.xlane.f32.xlu0 %v861
    %v863 = vpop.xlane.xlu0 %862
    %v864 = vmul.f32 %v863, 0.00390625
    %v865 = vmul.f32 %v859, %v859
    %v866 = vmul.f32 %v860, %v860
    %v867 = vadd.f32 %v865, %v866
    %868 = vadd.xlane.f32.xlu0 %v867
    %v869 = vpop.xlane.xlu0 %868
    %v870 = vmul.f32 %v869, 0.00390625
    %v871 = vmul.f32 %v864, %v864
    %v872 = vsub.f32 %v870, %v871
    %v873 = vadd.f32 %v872, 1e-05
    %v874 = vrsqrt.pop %v873
    %v875 = vmul.f32 %v745, %v874
    %v876 = vmul.f32 %v864, %v875
    %v877 = vsub.f32 %v747, %v876
    %879 = vset.pattern.permute.xlu0 0
    %880 = vperm.xlu0 %879, %v875
    %v881 = vpop.permute.xlu0 %880
    %v883 = vmul.f32 %v859, %v881
    %v884 = vmul.f32 %v860, %v881
    %886 = vset.pattern.permute.xlu0 0
    %887 = vperm.xlu0 %886, %v877
    %v888 = vpop.permute.xlu0 %887
    %v890 = vadd.f32 %v883, %v888
    %v891 = vadd.f32 %v884, %v888
    %v892 = vadd.f32 %v890, %v736
    %v893 = vadd.f32 %v891, %v737
    %894 = vst [vmem:[#allocation2 + $0x40] sm:$0xff] %v892
    %895 = vst [vmem:[#allocation2 + $0x48] sm:$0xff] %v893
    %s896 = scalar_lea.vmem %s5, 32
    %v897 = vld [vmem:[%s896] sm:$0xff]
    %s898 = scalar_lea.vmem %s6, 32
    %v899 = vld [vmem:[%s898] sm:$0xff]
    %s900 = scalar_lea.vmem %s7, 32
    %v901 = vld [vmem:[%s900] sm:$0xff]
    %s902 = scalar_lea.vmem %s8, 32
    %v903 = vld [vmem:[%s902] sm:$0xff]
    %904 = vrot.lane.b32.xlu0 %v892, 8
    %v905 = vpop.permute.xlu0 %904
    %906 = vrot.lane.b32.xlu0 %v892, 6
    %v907 = vpop.permute.xlu0 %906
    %908 = vrot.lane.b32.xlu0 %v892, 4
    %v909 = vpop.permute.xlu0 %908
    %910 = vrot.lane.b32.xlu0 %v892, 2
    %v911 = vpop.permute.xlu0 %910
    %912 = vrot.lane.b32.xlu0 %v892, 126
    %v913 = vpop.permute.xlu0 %912
    %914 = vrot.lane.b32.xlu0 %v892, 124
    %v915 = vpop.permute.xlu0 %914
    %916 = vrot.lane.b32.xlu0 %v892, 122
    %v917 = vpop.permute.xlu0 %916
    %918 = vrot.lane.b32.xlu0 %v892, 120
    %v919 = vpop.permute.xlu0 %918
    %920 = vrot.lane.b32.xlu0 %v893, 8
    %v921 = vpop.permute.xlu0 %920
    %922 = vrot.lane.b32.xlu0 %v893, 6
    %v923 = vpop.permute.xlu0 %922
    %924 = vrot.lane.b32.xlu0 %v893, 4
    %v925 = vpop.permute.xlu0 %924
    %926 = vrot.lane.b32.xlu0 %v893, 2
    %v927 = vpop.permute.xlu0 %926
    %928 = vrot.lane.b32.xlu0 %v893, 126
    %v929 = vpop.permute.xlu0 %928
    %930 = vrot.lane.b32.xlu0 %v893, 124
    %v931 = vpop.permute.xlu0 %930
    %932 = vrot.lane.b32.xlu0 %v893, 122
    %v933 = vpop.permute.xlu0 %932
    %934 = vrot.lane.b32.xlu0 %v893, 120
    %v935 = vpop.permute.xlu0 %934
    %937 = vset.pattern.permute.xlu0 0
    %938 = vperm.xlu0 %937, %v899
    %v939 = vpop.permute.xlu0 %938
    %v942 = vsel %vm316, %v897, 0
    %944 = vmatprep.subr.mxu0 %v921
    %945 = vmatpush1.msra.mxu0 %v905
    %946 = vmatprep.subr.mxu0 %v923
    %947 = vmatpush1.msra.mxu0 %v907
    %948 = vmatprep.subr.mxu0 %v925
    %949 = vmatpush1.msra.mxu0 %v909
    %950 = vmatprep.subr.mxu0 %v927
    %951 = vmatpush1.msra.mxu0 %v911
    %952 = vmatprep.subr.mxu0 %v893
    %953 = vmatpush1.msra.mxu0 %v892
    %954 = vmatprep.subr.mxu0 %v929
    %955 = vmatpush1.msra.mxu0 %v913
    %956 = vmatprep.subr.mxu0 %v931
    %957 = vmatpush1.msra.mxu0 %v915
    %958 = vmatprep.subr.mxu0 %v933
    %959 = vmatpush1.msra.mxu0 %v917
    %960 = vmatprep.subr.mxu0 %v935
    %961 = vmatpush1.msra.mxu0 %v919
    %962 = vmatprep.subr.mxu0 0.0
    %963 = vmatpush1.msra.mxu0 0.0
    %964 = vmatprep.subr.mxu0 0.0
    %965 = vmatpush1.msra.mxu0 0.0
    %966 = vmatprep.subr.mxu0 0.0
    %967 = vmatpush1.msra.mxu0 0.0
    %968 = vmatprep.subr.mxu0 0.0
    %969 = vmatpush1.msra.mxu0 0.0
    %970 = vmatprep.subr.mxu0 0.0
    %971 = vmatpush1.msra.mxu0 0.0
    %972 = vmatprep.subr.mxu0 0.0
    %973 = vmatpush1.msra.mxu0 0.0
    %974 = vmatprep.subr.mxu0 0.0
    %975 = vmatpush1.msra.mxu0 0.0
    %976 = vmatprep.subr.mxu0 0.0
    %977 = vmatpush1.msra.mxu0 0.0
    %978 = vmatprep.subr.mxu0 0.0
    %979 = vmatpush1.msra.mxu0 0.0
    %980 = vmatprep.subr.mxu0 0.0
    %981 = vmatpush1.msra.mxu0 0.0
    %982 = vmatprep.subr.mxu0 0.0
    %983 = vmatpush1.msra.mxu0 0.0
    %984 = vmatprep.subr.mxu0 0.0
    %985 = vmatpush1.msra.mxu0 0.0
    %986 = vmatprep.subr.mxu0 0.0
    %987 = vmatpush1.msra.mxu0 0.0
    %988 = vmatprep.subr.mxu0 0.0
    %989 = vmatpush1.msra.mxu0 0.0
    %990 = vmatprep.subr.mxu0 0.0
    %991 = vmatpush1.msra.mxu0 0.0
    %992 = vmatprep.subr.mxu0 0.0
    %993 = vmatpush1.msra.mxu0 0.0
    %994 = vmatprep.subr.mxu0 0.0
    %995 = vmatpush1.msra.mxu0 0.0
    %996 = vmatprep.subr.mxu0 0.0
    %997 = vmatpush1.msra.mxu0 0.0
    %998 = vmatprep.subr.mxu0 0.0
    %999 = vmatpush1.msra.mxu0 0.0
    %1000 = vmatprep.subr.mxu0 0.0
    %1001 = vmatpush1.msra.mxu0 0.0
    %1002 = vmatprep.subr.mxu0 0.0
    %1003 = vmatpush1.msra.mxu0 0.0
    %1004 = vmatprep.subr.mxu0 0.0
    %1005 = vmatpush1.msra.mxu0 0.0
    %1006 = vmatprep.subr.mxu0 0.0
    %1007 = vmatpush1.msra.mxu0 0.0
    %1008 = vmatprep.mubr.f32.mxu0 0.0
    %1009 = vmatmul.mubr.f32.gmra.mrb[0].mxu0 %v942
    %v1010 = vpop.f32.mrb[0].mxu0
    %v1011 = vadd.f32 %v939, %v1010
    %v1012 = vpop.f32.mrb[0].mxu0
    %v1013 = vadd.f32 %v939, %v1012
    %1014 = vdwg.mxu0
    %v1015 = vmax.f32 %v1011, 0.0
    %v1016 = vmax.f32 %v1013, 0.0
    %v1017 = vadd.f32 %v1015, %v1016
    %1018 = vadd.xlane.f32.xlu0 %v1017
    %v1019 = vpop.xlane.xlu0 %1018
    %v1020 = vmul.f32 %v1019, 0.00390625
    %v1021 = vmul.f32 %v1015, %v1015
    %v1022 = vmul.f32 %v1016, %v1016
    %v1023 = vadd.f32 %v1021, %v1022
    %1024 = vadd.xlane.f32.xlu0 %v1023
    %v1025 = vpop.xlane.xlu0 %1024
    %v1026 = vmul.f32 %v1025, 0.00390625
    %v1027 = vmul.f32 %v1020, %v1020
    %v1028 = vsub.f32 %v1026, %v1027
    %v1029 = vadd.f32 %v1028, 1e-05
    %v1030 = vrsqrt.pop %v1029
    %v1031 = vmul.f32 %v901, %v1030
    %v1032 = vmul.f32 %v1020, %v1031
    %v1033 = vsub.f32 %v903, %v1032
    %1035 = vset.pattern.permute.xlu0 0
    %1036 = vperm.xlu0 %1035, %v1031
    %v1037 = vpop.permute.xlu0 %1036
    %v1039 = vmul.f32 %v1015, %v1037
    %v1040 = vmul.f32 %v1016, %v1037
    %1042 = vset.pattern.permute.xlu0 0
    %1043 = vperm.xlu0 %1042, %v1033
    %v1044 = vpop.permute.xlu0 %1043
    %v1046 = vadd.f32 %v1039, %v1044
    %v1047 = vadd.f32 %v1040, %v1044
    %v1048 = vadd.f32 %v1046, %v892
    %v1049 = vadd.f32 %v1047, %v893
    %1050 = vst [vmem:[#allocation2 + $0x50] sm:$0xff] %v1048
    %1051 = vst [vmem:[#allocation2 + $0x58] sm:$0xff] %v1049
    %s1052 = scalar_lea.vmem %s5, 40
    %v1053 = vld [vmem:[%s1052] sm:$0xff]
    %s1054 = scalar_lea.vmem %s6, 40
    %v1055 = vld [vmem:[%s1054] sm:$0xff]
    %s1056 = scalar_lea.vmem %s7, 40
    %v1057 = vld [vmem:[%s1056] sm:$0xff]
    %s1058 = scalar_lea.vmem %s8, 40
    %v1059 = vld [vmem:[%s1058] sm:$0xff]
    %1060 = vrot.lane.b32.xlu0 %v1048, 16
    %v1061 = vpop.permute.xlu0 %1060
    %1062 = vrot.lane.b32.xlu0 %v1048, 12
    %v1063 = vpop.permute.xlu0 %1062
    %1064 = vrot.lane.b32.xlu0 %v1048, 8
    %v1065 = vpop.permute.xlu0 %1064
    %1066 = vrot.lane.b32.xlu0 %v1048, 4
    %v1067 = vpop.permute.xlu0 %1066
    %1068 = vrot.lane.b32.xlu0 %v1048, 124
    %v1069 = vpop.permute.xlu0 %1068
    %1070 = vrot.lane.b32.xlu0 %v1048, 120
    %v1071 = vpop.permute.xlu0 %1070
    %1072 = vrot.lane.b32.xlu0 %v1048, 116
    %v1073 = vpop.permute.xlu0 %1072
    %1074 = vrot.lane.b32.xlu0 %v1048, 112
    %v1075 = vpop.permute.xlu0 %1074
    %1076 = vrot.lane.b32.xlu0 %v1049, 16
    %v1077 = vpop.permute.xlu0 %1076
    %1078 = vrot.lane.b32.xlu0 %v1049, 12
    %v1079 = vpop.permute.xlu0 %1078
    %1080 = vrot.lane.b32.xlu0 %v1049, 8
    %v1081 = vpop.permute.xlu0 %1080
    %1082 = vrot.lane.b32.xlu0 %v1049, 4
    %v1083 = vpop.permute.xlu0 %1082
    %1084 = vrot.lane.b32.xlu0 %v1049, 124
    %v1085 = vpop.permute.xlu0 %1084
    %1086 = vrot.lane.b32.xlu0 %v1049, 120
    %v1087 = vpop.permute.xlu0 %1086
    %1088 = vrot.lane.b32.xlu0 %v1049, 116
    %v1089 = vpop.permute.xlu0 %1088
    %1090 = vrot.lane.b32.xlu0 %v1049, 112
    %v1091 = vpop.permute.xlu0 %1090
    %1093 = vset.pattern.permute.xlu0 0
    %1094 = vperm.xlu0 %1093, %v1055
    %v1095 = vpop.permute.xlu0 %1094
    %v1098 = vsel %vm316, %v1053, 0
    %1100 = vmatprep.subr.mxu0 %v1077
    %1101 = vmatpush1.msra.mxu0 %v1061
    %1102 = vmatprep.subr.mxu0 %v1079
    %1103 = vmatpush1.msra.mxu0 %v1063
    %1104 = vmatprep.subr.mxu0 %v1081
    %1105 = vmatpush1.msra.mxu0 %v1065
    %1106 = vmatprep.subr.mxu0 %v1083
    %1107 = vmatpush1.msra.mxu0 %v1067
    %1108 = vmatprep.subr.mxu0 %v1049
    %1109 = vmatpush1.msra.mxu0 %v1048
    %1110 = vmatprep.subr.mxu0 %v1085
    %1111 = vmatpush1.msra.mxu0 %v1069
    %1112 = vmatprep.subr.mxu0 %v1087
    %1113 = vmatpush1.msra.mxu0 %v1071
    %1114 = vmatprep.subr.mxu0 %v1089
    %1115 = vmatpush1.msra.mxu0 %v1073
    %1116 = vmatprep.subr.mxu0 %v1091
    %1117 = vmatpush1.msra.mxu0 %v1075
    %1118 = vmatprep.subr.mxu0 0.0
    %1119 = vmatpush1.msra.mxu0 0.0
    %1120 = vmatprep.subr.mxu0 0.0
    %1121 = vmatpush1.msra.mxu0 0.0
    %1122 = vmatprep.subr.mxu0 0.0
    %1123 = vmatpush1.msra.mxu0 0.0
    %1124 = vmatprep.subr.mxu0 0.0
    %1125 = vmatpush1.msra.mxu0 0.0
    %1126 = vmatprep.subr.mxu0 0.0
    %1127 = vmatpush1.msra.mxu0 0.0
    %1128 = vmatprep.subr.mxu0 0.0
    %1129 = vmatpush1.msra.mxu0 0.0
    %1130 = vmatprep.subr.mxu0 0.0
    %1131 = vmatpush1.msra.mxu0 0.0
    %1132 = vmatprep.subr.mxu0 0.0
    %1133 = vmatpush1.msra.mxu0 0.0
    %1134 = vmatprep.subr.mxu0 0.0
    %1135 = vmatpush1.msra.mxu0 0.0
    %1136 = vmatprep.subr.mxu0 0.0
    %1137 = vmatpush1.msra.mxu0 0.0
    %1138 = vmatprep.subr.mxu0 0.0
    %1139 = vmatpush1.msra.mxu0 0.0
    %1140 = vmatprep.subr.mxu0 0.0
    %1141 = vmatpush1.msra.mxu0 0.0
    %1142 = vmatprep.subr.mxu0 0.0
    %1143 = vmatpush1.msra.mxu0 0.0
    %1144 = vmatprep.subr.mxu0 0.0
    %1145 = vmatpush1.msra.mxu0 0.0
    %1146 = vmatprep.subr.mxu0 0.0
    %1147 = vmatpush1.msra.mxu0 0.0
    %1148 = vmatprep.subr.mxu0 0.0
    %1149 = vmatpush1.msra.mxu0 0.0
    %1150 = vmatprep.subr.mxu0 0.0
    %1151 = vmatpush1.msra.mxu0 0.0
    %1152 = vmatprep.subr.mxu0 0.0
    %1153 = vmatpush1.msra.mxu0 0.0
    %1154 = vmatprep.subr.mxu0 0.0
    %1155 = vmatpush1.msra.mxu0 0.0
    %1156 = vmatprep.subr.mxu0 0.0
    %1157 = vmatpush1.msra.mxu0 0.0
    %1158 = vmatprep.subr.mxu0 0.0
    %1159 = vmatpush1.msra.mxu0 0.0
    %1160 = vmatprep.subr.mxu0 0.0
    %1161 = vmatpush1.msra.mxu0 0.0
    %1162 = vmatprep.subr.mxu0 0.0
    %1163 = vmatpush1.msra.mxu0 0.0
    %1164 = vmatprep.mubr.f32.mxu0 0.0
    %1165 = vmatmul.mubr.f32.gmra.mrb[0].mxu0 %v1098
    %v1166 = vpop.f32.mrb[0].mxu0
    %v1167 = vadd.f32 %v1095, %v1166
    %v1168 = vpop.f32.mrb[0].mxu0
    %v1169 = vadd.f32 %v1095, %v1168
    %1170 = vdwg.mxu0
    %v1171 = vmax.f32 %v1167, 0.0
    %v1172 = vmax.f32 %v1169, 0.0
    %v1173 = vadd.f32 %v1171, %v1172
    %1174 = vadd.xlane.f32.xlu0 %v1173
    %v1175 = vpop.xlane.xlu0 %1174
    %v1176 = vmul.f32 %v1175, 0.00390625
    %v1177 = vmul.f32 %v1171, %v1171
    %v1178 = vmul.f32 %v1172, %v1172
    %v1179 = vadd.f32 %v1177, %v1178
    %1180 = vadd.xlane.f32.xlu0 %v1179
    %v1181 = vpop.xlane.xlu0 %1180
    %v1182 = vmul.f32 %v1181, 0.00390625
    %v1183 = vmul.f32 %v1176, %v1176
    %v1184 = vsub.f32 %v1182, %v1183
    %v1185 = vadd.f32 %v1184, 1e-05
    %v1186 = vrsqrt.pop %v1185
    %v1187 = vmul.f32 %v1057, %v1186
    %v1188 = vmul.f32 %v1176, %v1187
    %v1189 = vsub.f32 %v1059, %v1188
    %1191 = vset.pattern.permute.xlu0 0
    %1192 = vperm.xlu0 %1191, %v1187
    %v1193 = vpop.permute.xlu0 %1192
    %v1195 = vmul.f32 %v1171, %v1193
    %v1196 = vmul.f32 %v1172, %v1193
    %1198 = vset.pattern.permute.xlu0 0
    %1199 = vperm.xlu0 %1198, %v1189
    %v1200 = vpop.permute.xlu0 %1199
    %v1202 = vadd.f32 %v1195, %v1200
    %v1203 = vadd.f32 %v1196, %v1200
    %v1204 = vadd.f32 %v1202, %v1048
    %v1205 = vadd.f32 %v1203, %v1049
    %1206 = vst [vmem:[#allocation2 + $0x60] sm:$0xff] %v1204
    %1207 = vst [vmem:[#allocation2 + $0x68] sm:$0xff] %v1205
    %s1208 = scalar_lea.vmem %s5, 48
    %v1209 = vld [vmem:[%s1208] sm:$0xff]
    %s1210 = scalar_lea.vmem %s6, 48
    %v1211 = vld [vmem:[%s1210] sm:$0xff]
    %s1212 = scalar_lea.vmem %s7, 48
    %v1213 = vld [vmem:[%s1212] sm:$0xff]
    %s1214 = scalar_lea.vmem %s8, 48
    %v1215 = vld [vmem:[%s1214] sm:$0xff]
    %1216 = vrot.lane.b32.xlu0 %v1204, 16
    %v1217 = vpop.permute.xlu0 %1216
    %1218 = vrot.lane.b32.xlu0 %v1204, 12
    %v1219 = vpop.permute.xlu0 %1218
    %1220 = vrot.lane.b32.xlu0 %v1204, 8
    %v1221 = vpop.permute.xlu0 %1220
    %1222 = vrot.lane.b32.xlu0 %v1204, 4
    %v1223 = vpop.permute.xlu0 %1222
    %1224 = vrot.lane.b32.xlu0 %v1204, 124
    %v1225 = vpop.permute.xlu0 %1224
    %1226 = vrot.lane.b32.xlu0 %v1204, 120
    %v1227 = vpop.permute.xlu0 %1226
    %1228 = vrot.lane.b32.xlu0 %v1204, 116
    %v1229 = vpop.permute.xlu0 %1228
    %1230 = vrot.lane.b32.xlu0 %v1204, 112
    %v1231 = vpop.permute.xlu0 %1230
    %1232 = vrot.lane.b32.xlu0 %v1205, 16
    %v1233 = vpop.permute.xlu0 %1232
    %1234 = vrot.lane.b32.xlu0 %v1205, 12
    %v1235 = vpop.permute.xlu0 %1234
    %1236 = vrot.lane.b32.xlu0 %v1205, 8
    %v1237 = vpop.permute.xlu0 %1236
    %1238 = vrot.lane.b32.xlu0 %v1205, 4
    %v1239 = vpop.permute.xlu0 %1238
    %1240 = vrot.lane.b32.xlu0 %v1205, 124
    %v1241 = vpop.permute.xlu0 %1240
    %1242 = vrot.lane.b32.xlu0 %v1205, 120
    %v1243 = vpop.permute.xlu0 %1242
    %1244 = vrot.lane.b32.xlu0 %v1205, 116
    %v1245 = vpop.permute.xlu0 %1244
    %1246 = vrot.lane.b32.xlu0 %v1205, 112
    %v1247 = vpop.permute.xlu0 %1246
    %1249 = vset.pattern.permute.xlu0 0
    %1250 = vperm.xlu0 %1249, %v1211
    %v1251 = vpop.permute.xlu0 %1250
    %v1254 = vsel %vm316, %v1209, 0
    %1256 = vmatprep.subr.mxu0 %v1233
    %1257 = vmatpush1.msra.mxu0 %v1217
    %1258 = vmatprep.subr.mxu0 %v1235
    %1259 = vmatpush1.msra.mxu0 %v1219
    %1260 = vmatprep.subr.mxu0 %v1237
    %1261 = vmatpush1.msra.mxu0 %v1221
    %1262 = vmatprep.subr.mxu0 %v1239
    %1263 = vmatpush1.msra.mxu0 %v1223
    %1264 = vmatprep.subr.mxu0 %v1205
    %1265 = vmatpush1.msra.mxu0 %v1204
    %1266 = vmatprep.subr.mxu0 %v1241
    %1267 = vmatpush1.msra.mxu0 %v1225
    %1268 = vmatprep.subr.mxu0 %v1243
    %1269 = vmatpush1.msra.mxu0 %v1227
    %1270 = vmatprep.subr.mxu0 %v1245
    %1271 = vmatpush1.msra.mxu0 %v1229
    %1272 = vmatprep.subr.mxu0 %v1247
    %1273 = vmatpush1.msra.mxu0 %v1231
    %1274 = vmatprep.subr.mxu0 0.0
    %1275 = vmatpush1.msra.mxu0 0.0
    %1276 = vmatprep.subr.mxu0 0.0
    %1277 = vmatpush1.msra.mxu0 0.0
    %1278 = vmatprep.subr.mxu0 0.0
    %1279 = vmatpush1.msra.mxu0 0.0
    %1280 = vmatprep.subr.mxu0 0.0
    %1281 = vmatpush1.msra.mxu0 0.0
    %1282 = vmatprep.subr.mxu0 0.0
    %1283 = vmatpush1.msra.mxu0 0.0
    %1284 = vmatprep.subr.mxu0 0.0
    %1285 = vmatpush1.msra.mxu0 0.0
    %1286 = vmatprep.subr.mxu0 0.0
    %1287 = vmatpush1.msra.mxu0 0.0
    %1288 = vmatprep.subr.mxu0 0.0
    %1289 = vmatpush1.msra.mxu0 0.0
    %1290 = vmatprep.subr.mxu0 0.0
    %1291 = vmatpush1.msra.mxu0 0.0
    %1292 = vmatprep.subr.mxu0 0.0
    %1293 = vmatpush1.msra.mxu0 0.0
    %1294 = vmatprep.subr.mxu0 0.0
    %1295 = vmatpush1.msra.mxu0 0.0
    %1296 = vmatprep.subr.mxu0 0.0
    %1297 = vmatpush1.msra.mxu0 0.0
    %1298 = vmatprep.subr.mxu0 0.0
    %1299 = vmatpush1.msra.mxu0 0.0
    %1300 = vmatprep.subr.mxu0 0.0
    %1301 = vmatpush1.msra.mxu0 0.0
    %1302 = vmatprep.subr.mxu0 0.0
    %1303 = vmatpush1.msra.mxu0 0.0
    %1304 = vmatprep.subr.mxu0 0.0
    %1305 = vmatpush1.msra.mxu0 0.0
    %1306 = vmatprep.subr.mxu0 0.0
    %1307 = vmatpush1.msra.mxu0 0.0
    %1308 = vmatprep.subr.mxu0 0.0
    %1309 = vmatpush1.msra.mxu0 0.0
    %1310 = vmatprep.subr.mxu0 0.0
    %1311 = vmatpush1.msra.mxu0 0.0
    %1312 = vmatprep.subr.mxu0 0.0
    %1313 = vmatpush1.msra.mxu0 0.0
    %1314 = vmatprep.subr.mxu0 0.0
    %1315 = vmatpush1.msra.mxu0 0.0
    %1316 = vmatprep.subr.mxu0 0.0
    %1317 = vmatpush1.msra.mxu0 0.0
    %1318 = vmatprep.subr.mxu0 0.0
    %1319 = vmatpush1.msra.mxu0 0.0
    %1320 = vmatprep.mubr.f32.mxu0 0.0
    %1321 = vmatmul.mubr.f32.gmra.mrb[0].mxu0 %v1254
    %v1322 = vpop.f32.mrb[0].mxu0
    %v1323 = vadd.f32 %v1251, %v1322
    %v1324 = vpop.f32.mrb[0].mxu0
    %v1325 = vadd.f32 %v1251, %v1324
    %1326 = vdwg.mxu0
    %v1327 = vmax.f32 %v1323, 0.0
    %v1328 = vmax.f32 %v1325, 0.0
    %v1329 = vadd.f32 %v1327, %v1328
    %1330 = vadd.xlane.f32.xlu0 %v1329
    %v1331 = vpop.xlane.xlu0 %1330
    %v1332 = vmul.f32 %v1331, 0.00390625
    %v1333 = vmul.f32 %v1327, %v1327
    %v1334 = vmul.f32 %v1328, %v1328
    %v1335 = vadd.f32 %v1333, %v1334
    %1336 = vadd.xlane.f32.xlu0 %v1335
    %v1337 = vpop.xlane.xlu0 %1336
    %v1338 = vmul.f32 %v1337, 0.00390625
    %v1339 = vmul.f32 %v1332, %v1332
    %v1340 = vsub.f32 %v1338, %v1339
    %v1341 = vadd.f32 %v1340, 1e-05
    %v1342 = vrsqrt.pop %v1341
    %v1343 = vmul.f32 %v1213, %v1342
    %v1344 = vmul.f32 %v1332, %v1343
    %v1345 = vsub.f32 %v1215, %v1344
    %1347 = vset.pattern.permute.xlu0 0
    %1348 = vperm.xlu0 %1347, %v1343
    %v1349 = vpop.permute.xlu0 %1348
    %v1351 = vmul.f32 %v1327, %v1349
    %v1352 = vmul.f32 %v1328, %v1349
    %1354 = vset.pattern.permute.xlu0 0
    %1355 = vperm.xlu0 %1354, %v1345
    %v1356 = vpop.permute.xlu0 %1355
    %v1358 = vadd.f32 %v1351, %v1356
    %v1359 = vadd.f32 %v1352, %v1356
    %v1360 = vadd.f32 %v1358, %v1204
    %v1361 = vadd.f32 %v1359, %v1205
    %1362 = vst [vmem:[#allocation2 + $0x70] sm:$0xff] %v1360
    %1363 = vst [vmem:[#allocation2 + $0x78] sm:$0xff] %v1361
    %v1364 = vld [vmem:[#allocation2] sm:$0xff]
    %v1365 = vld [vmem:[#allocation2 + $0x8] sm:$0xff]
    %v1366 = vld [vmem:[#allocation2 + $0x10] sm:$0xff]
    %v1367 = vld [vmem:[#allocation2 + $0x18] sm:$0xff]
    %v1368 = vld [vmem:[#allocation2 + $0x20] sm:$0xff]
    %v1369 = vld [vmem:[#allocation2 + $0x28] sm:$0xff]
    %v1370 = vld [vmem:[#allocation2 + $0x30] sm:$0xff]
    %v1371 = vld [vmem:[#allocation2 + $0x38] sm:$0xff]
    %v1372 = vld [vmem:[#allocation2 + $0x40] sm:$0xff]
    %v1373 = vld [vmem:[#allocation2 + $0x48] sm:$0xff]
    %v1374 = vld [vmem:[#allocation2 + $0x50] sm:$0xff]
    %v1375 = vld [vmem:[#allocation2 + $0x58] sm:$0xff]
    %v1376 = vld [vmem:[#allocation2 + $0x60] sm:$0xff]
    %v1377 = vld [vmem:[#allocation2 + $0x68] sm:$0xff]
    %v1378 = vld [vmem:[#allocation2 + $0x70] sm:$0xff]
    %v1379 = vld [vmem:[#allocation2 + $0x78] sm:$0xff]
    %v1380 = vpack.c.bf16 %v1366, %v1364
    %v1381 = vpack.c.bf16 %v1367, %v1365
    %v1382 = vpack.c.bf16 %v1370, %v1368
    %v1383 = vpack.c.bf16 %v1371, %v1369
    %v1384 = vpack.c.bf16 %v1374, %v1372
    %v1385 = vpack.c.bf16 %v1375, %v1373
    %v1386 = vpack.c.bf16 %v1378, %v1376
    %v1387 = vpack.c.bf16 %v1379, %v1377
    %v1388 = vld [vmem:[%s9] sm:$0xf]
    %v1389 = vld [vmem:[%s9 + $0x4] sm:$0xf]
    %v1390 = vld [vmem:[%s9 + $0x8] sm:$0xf]
    %v1391 = vld [vmem:[%s9 + $0xc] sm:$0xf]
    %v1392 = vld [vmem:[%s9 + $0x10] sm:$0xf]
    %v1393 = vld [vmem:[%s9 + $0x14] sm:$0xf]
    %v1394 = vld [vmem:[%s9 + $0x18] sm:$0xf]
    %v1395 = vld [vmem:[%s9 + $0x1c] sm:$0xf]
    %v1396 = vld [vmem:[%s9 + $0x20] sm:$0xf]
    %v1397 = vld [vmem:[%s9 + $0x24] sm:$0xf]
    %v1398 = vld [vmem:[%s9 + $0x28] sm:$0xf]
    %v1399 = vld [vmem:[%s9 + $0x2c] sm:$0xf]
    %v1400 = vld [vmem:[%s9 + $0x30] sm:$0xf]
    %v1401 = vld [vmem:[%s9 + $0x34] sm:$0xf]
    %v1402 = vld [vmem:[%s9 + $0x38] sm:$0xf]
    %v1403 = vld [vmem:[%s9 + $0x3c] sm:$0xf]
    %v1404 = vld [vmem:[%s9 + $0x40] sm:$0xf]
    %v1405 = vld [vmem:[%s9 + $0x44] sm:$0xf]
    %v1406 = vld [vmem:[%s9 + $0x48] sm:$0xf]
    %v1407 = vld [vmem:[%s9 + $0x4c] sm:$0xf]
    %v1408 = vld [vmem:[%s9 + $0x50] sm:$0xf]
    %v1409 = vld [vmem:[%s9 + $0x54] sm:$0xf]
    %v1410 = vld [vmem:[%s9 + $0x58] sm:$0xf]
    %v1411 = vld [vmem:[%s9 + $0x5c] sm:$0xf]
    %v1412 = vld [vmem:[%s9 + $0x60] sm:$0xf]
    %v1413 = vld [vmem:[%s9 + $0x64] sm:$0xf]
    %v1414 = vld [vmem:[%s9 + $0x68] sm:$0xf]
    %v1415 = vld [vmem:[%s9 + $0x6c] sm:$0xf]
    %v1416 = vld [vmem:[%s9 + $0x70] sm:$0xf]
    %v1417 = vld [vmem:[%s9 + $0x74] sm:$0xf]
    %v1418 = vld [vmem:[%s9 + $0x78] sm:$0xf]
    %v1419 = vld [vmem:[%s9 + $0x7c] sm:$0xf]
    %v1420 = vld [vmem:[%s10] sm:$0xff]
    %v1421 = vld [vmem:[%s10 + $0x8] sm:$0xff]
    %v1422 = vld [vmem:[%s10 + $0x10] sm:$0xff]
    %v1423 = vld [vmem:[%s10 + $0x18] sm:$0xff]
    %v1424 = vld [vmem:[%s10 + $0x20] sm:$0xff]
    %v1425 = vld [vmem:[%s10 + $0x28] sm:$0xff]
    %v1426 = vld [vmem:[%s10 + $0x30] sm:$0xff]
    %v1427 = vld [vmem:[%s10 + $0x38] sm:$0xff]
    %v1428 = vld [vmem:[%s10 + $0x40] sm:$0xff]
    %v1429 = vld [vmem:[%s10 + $0x48] sm:$0xff]
    %v1430 = vld [vmem:[%s10 + $0x50] sm:$0xff]
    %v1431 = vld [vmem:[%s10 + $0x58] sm:$0xff]
    %v1432 = vld [vmem:[%s10 + $0x60] sm:$0xff]
    %v1433 = vld [vmem:[%s10 + $0x68] sm:$0xff]
    %v1434 = vld [vmem:[%s10 + $0x70] sm:$0xff]
    %v1435 = vld [vmem:[%s10 + $0x78] sm:$0xff]
    %v1436 = vld [vmem:[%s10 + $0x80] sm:$0xff]
    %v1437 = vld [vmem:[%s10 + $0x88] sm:$0xff]
    %v1438 = vld [vmem:[%s10 + $0x90] sm:$0xff]
    %v1439 = vld [vmem:[%s10 + $0x98] sm:$0xff]
    %v1440 = vld [vmem:[%s10 + $0xa0] sm:$0xff]
    %v1441 = vld [vmem:[%s10 + $0xa8] sm:$0xff]
    %v1442 = vld [vmem:[%s10 + $0xb0] sm:$0xff]
    %v1443 = vld [vmem:[%s10 + $0xb8] sm:$0xff]
    %v1444 = vld [vmem:[%s10 + $0xc0] sm:$0xff]
    %v1445 = vld [vmem:[%s10 + $0xc8] sm:$0xff]
    %v1446 = vld [vmem:[%s10 + $0xd0] sm:$0xff]
    %v1447 = vld [vmem:[%s10 + $0xd8] sm:$0xff]
    %v1448 = vld [vmem:[%s10 + $0xe0] sm:$0xff]
    %v1449 = vld [vmem:[%s10 + $0xe8] sm:$0xff]
    %v1450 = vld [vmem:[%s10 + $0xf0] sm:$0xff]
    %v1451 = vld [vmem:[%s10 + $0xf8] sm:$0xff]
    %1453 = vset.pattern.permute.xlu0 0
    %1454 = vperm.xlu0 %1453, %v1420
    %v1455 = vpop.permute.xlu0 %1454
    %1458 = vset.pattern.permute.xlu0 0
    %1459 = vperm.xlu0 %1458, %v1421
    %v1460 = vpop.permute.xlu0 %1459
    %1463 = vset.pattern.permute.xlu0 0
    %1464 = vperm.xlu0 %1463, %v1422
    %v1465 = vpop.permute.xlu0 %1464
    %1468 = vset.pattern.permute.xlu0 0
    %1469 = vperm.xlu0 %1468, %v1423
    %v1470 = vpop.permute.xlu0 %1469
    %1473 = vset.pattern.permute.xlu0 0
    %1474 = vperm.xlu0 %1473, %v1424
    %v1475 = vpop.permute.xlu0 %1474
    %1478 = vset.pattern.permute.xlu0 0
    %1479 = vperm.xlu0 %1478, %v1425
    %v1480 = vpop.permute.xlu0 %1479
    %1483 = vset.pattern.permute.xlu0 0
    %1484 = vperm.xlu0 %1483, %v1426
    %v1485 = vpop.permute.xlu0 %1484
    %1488 = vset.pattern.permute.xlu0 0
    %1489 = vperm.xlu0 %1488, %v1427
    %v1490 = vpop.permute.xlu0 %1489
    %1493 = vset.pattern.permute.xlu0 0
    %1494 = vperm.xlu0 %1493, %v1428
    %v1495 = vpop.permute.xlu0 %1494
    %1498 = vset.pattern.permute.xlu0 0
    %1499 = vperm.xlu0 %1498, %v1429
    %v1500 = vpop.permute.xlu0 %1499
    %1503 = vset.pattern.permute.xlu0 0
    %1504 = vperm.xlu0 %1503, %v1430
    %v1505 = vpop.permute.xlu0 %1504
    %1508 = vset.pattern.permute.xlu0 0
    %1509 = vperm.xlu0 %1508, %v1431
    %v1510 = vpop.permute.xlu0 %1509
    %1513 = vset.pattern.permute.xlu0 0
    %1514 = vperm.xlu0 %1513, %v1432
    %v1515 = vpop.permute.xlu0 %1514
    %1518 = vset.pattern.permute.xlu0 0
    %1519 = vperm.xlu0 %1518, %v1433
    %v1520 = vpop.permute.xlu0 %1519
    %1523 = vset.pattern.permute.xlu0 0
    %1524 = vperm.xlu0 %1523, %v1434
    %v1525 = vpop.permute.xlu0 %1524
    %1528 = vset.pattern.permute.xlu0 0
    %1529 = vperm.xlu0 %1528, %v1435
    %v1530 = vpop.permute.xlu0 %1529
    %1533 = vset.pattern.permute.xlu0 0
    %1534 = vperm.xlu0 %1533, %v1436
    %v1535 = vpop.permute.xlu0 %1534
    %1538 = vset.pattern.permute.xlu0 0
    %1539 = vperm.xlu0 %1538, %v1437
    %v1540 = vpop.permute.xlu0 %1539
    %1543 = vset.pattern.permute.xlu0 0
    %1544 = vperm.xlu0 %1543, %v1438
    %v1545 = vpop.permute.xlu0 %1544
    %1548 = vset.pattern.permute.xlu0 0
    %1549 = vperm.xlu0 %1548, %v1439
    %v1550 = vpop.permute.xlu0 %1549
    %1553 = vset.pattern.permute.xlu0 0
    %1554 = vperm.xlu0 %1553, %v1440
    %v1555 = vpop.permute.xlu0 %1554
    %1558 = vset.pattern.permute.xlu0 0
    %1559 = vperm.xlu0 %1558, %v1441
    %v1560 = vpop.permute.xlu0 %1559
    %1563 = vset.pattern.permute.xlu0 0
    %1564 = vperm.xlu0 %1563, %v1442
    %v1565 = vpop.permute.xlu0 %1564
    %1568 = vset.pattern.permute.xlu0 0
    %1569 = vperm.xlu0 %1568, %v1443
    %v1570 = vpop.permute.xlu0 %1569
    %1573 = vset.pattern.permute.xlu0 0
    %1574 = vperm.xlu0 %1573, %v1444
    %v1575 = vpop.permute.xlu0 %1574
    %1578 = vset.pattern.permute.xlu0 0
    %1579 = vperm.xlu0 %1578, %v1445
    %v1580 = vpop.permute.xlu0 %1579
    %1583 = vset.pattern.permute.xlu0 0
    %1584 = vperm.xlu0 %1583, %v1446
    %v1585 = vpop.permute.xlu0 %1584
    %1588 = vset.pattern.permute.xlu0 0
    %1589 = vperm.xlu0 %1588, %v1447
    %v1590 = vpop.permute.xlu0 %1589
    %1593 = vset.pattern.permute.xlu0 0
    %1594 = vperm.xlu0 %1593, %v1448
    %v1595 = vpop.permute.xlu0 %1594
    %1598 = vset.pattern.permute.xlu0 0
    %1599 = vperm.xlu0 %1598, %v1449
    %v1600 = vpop.permute.xlu0 %1599
    %1603 = vset.pattern.permute.xlu0 0
    %1604 = vperm.xlu0 %1603, %v1450
    %v1605 = vpop.permute.xlu0 %1604
    %1608 = vset.pattern.permute.xlu0 0
    %1609 = vperm.xlu0 %1608, %v1451
    %v1610 = vpop.permute.xlu0 %1609
    %v1644 = vunpack.c.l.b16 %v1388
    %v1645 = vunpack.c.l.b16 %v1389
    %v1646 = vunpack.c.l.b16 %v1390
    %v1647 = vunpack.c.l.b16 %v1391
    %v1648 = vunpack.c.l.b16 %v1392
    %v1649 = vunpack.c.l.b16 %v1393
    %v1650 = vunpack.c.l.b16 %v1394
    %v1651 = vunpack.c.l.b16 %v1395
    %v1652 = vunpack.c.l.b16 %v1396
    %v1653 = vunpack.c.l.b16 %v1397
    %v1654 = vunpack.c.l.b16 %v1398
    %v1655 = vunpack.c.l.b16 %v1399
    %v1656 = vunpack.c.l.b16 %v1400
    %v1657 = vunpack.c.l.b16 %v1401
    %v1658 = vunpack.c.l.b16 %v1402
    %v1659 = vunpack.c.l.b16 %v1403
    %v1660 = vunpack.c.l.b16 %v1404
    %v1661 = vunpack.c.l.b16 %v1405
    %v1662 = vunpack.c.l.b16 %v1406
    %v1663 = vunpack.c.l.b16 %v1407
    %v1664 = vunpack.c.l.b16 %v1408
    %v1665 = vunpack.c.l.b16 %v1409
    %v1666 = vunpack.c.l.b16 %v1410
    %v1667 = vunpack.c.l.b16 %v1411
    %v1668 = vunpack.c.l.b16 %v1412
    %v1669 = vunpack.c.l.b16 %v1413
    %v1670 = vunpack.c.l.b16 %v1414
    %v1671 = vunpack.c.l.b16 %v1415
    %v1672 = vunpack.c.l.b16 %v1416
    %v1673 = vunpack.c.l.b16 %v1417
    %v1674 = vunpack.c.l.b16 %v1418
    %v1675 = vunpack.c.l.b16 %v1419
    %v1676 = vpack.c.b16 %v1645, %v1644
    %v1677 = vpack.c.b16 %v1647, %v1646
    %v1678 = vpack.c.b16 %v1649, %v1648
    %v1679 = vpack.c.b16 %v1651, %v1650
    %v1680 = vpack.c.b16 %v1653, %v1652
    %v1681 = vpack.c.b16 %v1655, %v1654
    %v1682 = vpack.c.b16 %v1657, %v1656
    %v1683 = vpack.c.b16 %v1659, %v1658
    %v1684 = vpack.c.b16 %v1661, %v1660
    %v1685 = vpack.c.b16 %v1663, %v1662
    %v1686 = vpack.c.b16 %v1665, %v1664
    %v1687 = vpack.c.b16 %v1667, %v1666
    %v1688 = vpack.c.b16 %v1669, %v1668
    %v1689 = vpack.c.b16 %v1671, %v1670
    %v1690 = vpack.c.b16 %v1673, %v1672
    %v1691 = vpack.c.b16 %v1675, %v1674
    %vm1692 = vcmask 523264
    %v1694 = vsel %vm1692, %v1676, 0
    %v1697 = vsel %vm1692, %v1677, 0
    %v1700 = vsel %vm1692, %v1678, 0
    %v1703 = vsel %vm1692, %v1679, 0
    %v1706 = vsel %vm1692, %v1680, 0
    %v1709 = vsel %vm1692, %v1681, 0
    %v1712 = vsel %vm1692, %v1682, 0
    %v1715 = vsel %vm1692, %v1683, 0
    %v1718 = vsel %vm1692, %v1684, 0
    %v1721 = vsel %vm1692, %v1685, 0
    %v1724 = vsel %vm1692, %v1686, 0
    %v1727 = vsel %vm1692, %v1687, 0
    %v1730 = vsel %vm1692, %v1688, 0
    %v1733 = vsel %vm1692, %v1689, 0
    %v1736 = vsel %vm1692, %v1690, 0
    %v1739 = vsel %vm1692, %v1691, 0
    %1741 = vmatprep.subr.bf16.mxu0 %v1381
    %1742 = vmatpush1.bf16.msra.mxu0 %v1380
    %1743 = vmatprep.subr.bf16.mxu0 %v1383
    %1744 = vmatpush1.bf16.msra.mxu0 %v1382
    %1745 = vmatprep.subr.bf16.mxu0 %v1385
    %1746 = vmatpush1.bf16.msra.mxu0 %v1384
    %1747 = vmatprep.subr.bf16.mxu0 %v1387
    %1748 = vmatpush1.bf16.msra.mxu0 %v1386
    %1749 = vmatprep.subr.bf16.mxu0 0
    %1750 = vmatpush1.bf16.msra.mxu0 0
    %1751 = vmatprep.subr.bf16.mxu0 0
    %1752 = vmatpush1.bf16.msra.mxu0 0
    %1753 = vmatprep.subr.bf16.mxu0 0
    %1754 = vmatpush1.bf16.msra.mxu0 0
    %1755 = vmatprep.subr.bf16.mxu0 0
    %1756 = vmatpush1.bf16.msra.mxu0 0
    %1757 = vmatprep.subr.bf16.mxu0 0
    %1758 = vmatpush1.bf16.msra.mxu0 0
    %1759 = vmatprep.subr.bf16.mxu0 0
    %1760 = vmatpush1.bf16.msra.mxu0 0
    %1761 = vmatprep.subr.bf16.mxu0 0
    %1762 = vmatpush1.bf16.msra.mxu0 0
    %1763 = vmatprep.subr.bf16.mxu0 0
    %1764 = vmatpush1.bf16.msra.mxu0 0
    %1765 = vmatprep.subr.bf16.mxu0 0
    %1766 = vmatpush1.bf16.msra.mxu0 0
    %1767 = vmatprep.subr.bf16.mxu0 0
    %1768 = vmatpush1.bf16.msra.mxu0 0
    %1769 = vmatprep.subr.bf16.mxu0 0
    %1770 = vmatpush1.bf16.msra.mxu0 0
    %1771 = vmatprep.subr.bf16.mxu0 0
    %1772 = vmatpush1.bf16.msra.mxu0 0
    %1773 = vmatprep.mubr.bf16.mxu0 0
    %1774 = vmatmul.mubr.bf16.gmra.mrb[0].mxu0 %v1694
    %v1775 = vpop.f32.mrb[0].mxu0
    %v1776 = vadd.f32 %v1455, %v1775
    %v1777 = vpop.f32.mrb[0].mxu0
    %v1778 = vadd.f32 %v1455, %v1777
    %v1779 = vpop.f32.mrb[0].mxu0
    %v1780 = vadd.f32 %v1460, %v1779
    %v1781 = vpop.f32.mrb[0].mxu0
    %v1782 = vadd.f32 %v1460, %v1781
    %1783 = vmatprep.mubr.bf16.mxu0 0
    %1784 = vmatmul.mubr.bf16.gmra.mrb[0].mxu0 %v1697
    %v1785 = vpop.f32.mrb[0].mxu0
    %v1786 = vadd.f32 %v1465, %v1785
    %v1787 = vpop.f32.mrb[0].mxu0
    %v1788 = vadd.f32 %v1465, %v1787
    %v1789 = vpop.f32.mrb[0].mxu0
    %v1790 = vadd.f32 %v1470, %v1789
    %v1791 = vpop.f32.mrb[0].mxu0
    %v1792 = vadd.f32 %v1470, %v1791
    %1793 = vmatprep.mubr.bf16.mxu0 0
    %1794 = vmatmul.mubr.bf16.gmra.mrb[0].mxu0 %v1700
    %v1795 = vpop.f32.mrb[0].mxu0
    %v1796 = vadd.f32 %v1475, %v1795
    %v1797 = vpop.f32.mrb[0].mxu0
    %v1798 = vadd.f32 %v1475, %v1797
    %v1799 = vpop.f32.mrb[0].mxu0
    %v1800 = vadd.f32 %v1480, %v1799
    %v1801 = vpop.f32.mrb[0].mxu0
    %v1802 = vadd.f32 %v1480, %v1801
    %1803 = vmatprep.mubr.bf16.mxu0 0
    %1804 = vmatmul.mubr.bf16.gmra.mrb[0].mxu0 %v1703
    %v1805 = vpop.f32.mrb[0].mxu0
    %v1806 = vadd.f32 %v1485, %v1805
    %v1807 = vpop.f32.mrb[0].mxu0
    %v1808 = vadd.f32 %v1485, %v1807
    %v1809 = vpop.f32.mrb[0].mxu0
    %v1810 = vadd.f32 %v1490, %v1809
    %v1811 = vpop.f32.mrb[0].mxu0
    %v1812 = vadd.f32 %v1490, %v1811
    %1813 = vmatprep.mubr.bf16.mxu0 0
    %1814 = vmatmul.mubr.bf16.gmra.mrb[0].mxu0 %v1706
    %v1815 = vpop.f32.mrb[0].mxu0
    %v1816 = vadd.f32 %v1495, %v1815
    %v1817 = vpop.f32.mrb[0].mxu0
    %v1818 = vadd.f32 %v1495, %v1817
    %v1819 = vpop.f32.mrb[0].mxu0
    %v1820 = vadd.f32 %v1500, %v1819
    %v1821 = vpop.f32.mrb[0].mxu0
    %v1822 = vadd.f32 %v1500, %v1821
    %1823 = vmatprep.mubr.bf16.mxu0 0
    %1824 = vmatmul.mubr.bf16.gmra.mrb[0].mxu0 %v1709
    %v1825 = vpop.f32.mrb[0].mxu0
    %v1826 = vadd.f32 %v1505, %v1825
    %v1827 = vpop.f32.mrb[0].mxu0
    %v1828 = vadd.f32 %v1505, %v1827
    %v1829 = vpop.f32.mrb[0].mxu0
    %v1830 = vadd.f32 %v1510, %v1829
    %v1831 = vpop.f32.mrb[0].mxu0
    %v1832 = vadd.f32 %v1510, %v1831
    %1833 = vmatprep.mubr.bf16.mxu0 0
    %1834 = vmatmul.mubr.bf16.gmra.mrb[0].mxu0 %v1712
    %v1835 = vpop.f32.mrb[0].mxu0
    %v1836 = vadd.f32 %v1515, %v1835
    %v1837 = vpop.f32.mrb[0].mxu0
    %v1838 = vadd.f32 %v1515, %v1837
    %v1839 = vpop.f32.mrb[0].mxu0
    %v1840 = vadd.f32 %v1520, %v1839
    %v1841 = vpop.f32.mrb[0].mxu0
    %v1842 = vadd.f32 %v1520, %v1841
    %1843 = vmatprep.mubr.bf16.mxu0 0
    %1844 = vmatmul.mubr.bf16.gmra.mrb[0].mxu0 %v1715
    %v1845 = vpop.f32.mrb[0].mxu0
    %v1846 = vadd.f32 %v1525, %v1845
    %v1847 = vpop.f32.mrb[0].mxu0
    %v1848 = vadd.f32 %v1525, %v1847
    %v1849 = vpop.f32.mrb[0].mxu0
    %v1850 = vadd.f32 %v1530, %v1849
    %v1851 = vpop.f32.mrb[0].mxu0
    %v1852 = vadd.f32 %v1530, %v1851
    %1853 = vmatprep.mubr.bf16.mxu0 0
    %1854 = vmatmul.mubr.bf16.gmra.mrb[0].mxu0 %v1718
    %v1855 = vpop.f32.mrb[0].mxu0
    %v1856 = vadd.f32 %v1535, %v1855
    %v1857 = vpop.f32.mrb[0].mxu0
    %v1858 = vadd.f32 %v1535, %v1857
    %v1859 = vpop.f32.mrb[0].mxu0
    %v1860 = vadd.f32 %v1540, %v1859
    %v1861 = vpop.f32.mrb[0].mxu0
    %v1862 = vadd.f32 %v1540, %v1861
    %1863 = vmatprep.mubr.bf16.mxu0 0
    %1864 = vmatmul.mubr.bf16.gmra.mrb[0].mxu0 %v1721
    %v1865 = vpop.f32.mrb[0].mxu0
    %v1866 = vadd.f32 %v1545, %v1865
    %v1867 = vpop.f32.mrb[0].mxu0
    %v1868 = vadd.f32 %v1545, %v1867
    %v1869 = vpop.f32.mrb[0].mxu0
    %v1870 = vadd.f32 %v1550, %v1869
    %v1871 = vpop.f32.mrb[0].mxu0
    %v1872 = vadd.f32 %v1550, %v1871
    %1873 = vmatprep.mubr.bf16.mxu0 0
    %1874 = vmatmul.mubr.bf16.gmra.mrb[0].mxu0 %v1724
    %v1875 = vpop.f32.mrb[0].mxu0
    %v1876 = vadd.f32 %v1555, %v1875
    %v1877 = vpop.f32.mrb[0].mxu0
    %v1878 = vadd.f32 %v1555, %v1877
    %v1879 = vpop.f32.mrb[0].mxu0
    %v1880 = vadd.f32 %v1560, %v1879
    %v1881 = vpop.f32.mrb[0].mxu0
    %v1882 = vadd.f32 %v1560, %v1881
    %1883 = vmatprep.mubr.bf16.mxu0 0
    %1884 = vmatmul.mubr.bf16.gmra.mrb[0].mxu0 %v1727
    %v1885 = vpop.f32.mrb[0].mxu0
    %v1886 = vadd.f32 %v1565, %v1885
    %v1887 = vpop.f32.mrb[0].mxu0
    %v1888 = vadd.f32 %v1565, %v1887
    %v1889 = vpop.f32.mrb[0].mxu0
    %v1890 = vadd.f32 %v1570, %v1889
    %v1891 = vpop.f32.mrb[0].mxu0
    %v1892 = vadd.f32 %v1570, %v1891
    %1893 = vmatprep.mubr.bf16.mxu0 0
    %1894 = vmatmul.mubr.bf16.gmra.mrb[0].mxu0 %v1730
    %v1895 = vpop.f32.mrb[0].mxu0
    %v1896 = vadd.f32 %v1575, %v1895
    %v1897 = vpop.f32.mrb[0].mxu0
    %v1898 = vadd.f32 %v1575, %v1897
    %v1899 = vpop.f32.mrb[0].mxu0
    %v1900 = vadd.f32 %v1580, %v1899
    %v1901 = vpop.f32.mrb[0].mxu0
    %v1902 = vadd.f32 %v1580, %v1901
    %1903 = vmatprep.mubr.bf16.mxu0 0
    %1904 = vmatmul.mubr.bf16.gmra.mrb[0].mxu0 %v1733
    %v1905 = vpop.f32.mrb[0].mxu0
    %v1906 = vadd.f32 %v1585, %v1905
    %v1907 = vpop.f32.mrb[0].mxu0
    %v1908 = vadd.f32 %v1585, %v1907
    %v1909 = vpop.f32.mrb[0].mxu0
    %v1910 = vadd.f32 %v1590, %v1909
    %v1911 = vpop.f32.mrb[0].mxu0
    %v1912 = vadd.f32 %v1590, %v1911
    %1913 = vmatprep.mubr.bf16.mxu0 0
    %1914 = vmatmul.mubr.bf16.gmra.mrb[0].mxu0 %v1736
    %v1915 = vpop.f32.mrb[0].mxu0
    %v1916 = vadd.f32 %v1595, %v1915
    %v1917 = vpop.f32.mrb[0].mxu0
    %v1918 = vadd.f32 %v1595, %v1917
    %v1919 = vpop.f32.mrb[0].mxu0
    %v1920 = vadd.f32 %v1600, %v1919
    %v1921 = vpop.f32.mrb[0].mxu0
    %v1922 = vadd.f32 %v1600, %v1921
    %1923 = vmatprep.mubr.bf16.mxu0 0
    %1924 = vmatmul.mubr.bf16.gmra.mrb[0].mxu0 %v1739
    %v1925 = vpop.f32.mrb[0].mxu0
    %v1926 = vadd.f32 %v1605, %v1925
    %v1927 = vpop.f32.mrb[0].mxu0
    %v1928 = vadd.f32 %v1605, %v1927
    %v1929 = vpop.f32.mrb[0].mxu0
    %v1930 = vadd.f32 %v1610, %v1929
    %v1931 = vpop.f32.mrb[0].mxu0
    %v1932 = vadd.f32 %v1610, %v1931
    %1933 = vdwg.mxu0
    %1934 = vmax.xlane.f32.xlu0 %v1776
    %v1935 = vpop.xlane.xlu0 %1934
    %1936 = vmax.xlane.f32.xlu0 %v1780
    %v1937 = vpop.xlane.xlu0 %1936
    %1938 = vmax.xlane.f32.xlu0 %v1786
    %v1939 = vpop.xlane.xlu0 %1938
    %1940 = vmax.xlane.f32.xlu0 %v1790
    %v1941 = vpop.xlane.xlu0 %1940
    %1942 = vmax.xlane.f32.xlu0 %v1796
    %v1943 = vpop.xlane.xlu0 %1942
    %1944 = vmax.xlane.f32.xlu0 %v1800
    %v1945 = vpop.xlane.xlu0 %1944
    %1946 = vmax.xlane.f32.xlu0 %v1806
    %v1947 = vpop.xlane.xlu0 %1946
    %1948 = vmax.xlane.f32.xlu0 %v1810
    %v1949 = vpop.xlane.xlu0 %1948
    %1950 = vmax.xlane.f32.xlu0 %v1816
    %v1951 = vpop.xlane.xlu0 %1950
    %1952 = vmax.xlane.f32.xlu0 %v1820
    %v1953 = vpop.xlane.xlu0 %1952
    %1954 = vmax.xlane.f32.xlu0 %v1826
    %v1955 = vpop.xlane.xlu0 %1954
    %1956 = vmax.xlane.f32.xlu0 %v1830
    %v1957 = vpop.xlane.xlu0 %1956
    %1958 = vmax.xlane.f32.xlu0 %v1836
    %v1959 = vpop.xlane.xlu0 %1958
    %1960 = vmax.xlane.f32.xlu0 %v1840
    %v1961 = vpop.xlane.xlu0 %1960
    %1962 = vmax.xlane.f32.xlu0 %v1846
    %v1963 = vpop.xlane.xlu0 %1962
    %1964 = vmax.xlane.f32.xlu0 %v1850
    %v1965 = vpop.xlane.xlu0 %1964
    %1966 = vmax.xlane.f32.xlu0 %v1856
    %v1967 = vpop.xlane.xlu0 %1966
    %1968 = vmax.xlane.f32.xlu0 %v1860
    %v1969 = vpop.xlane.xlu0 %1968
    %1970 = vmax.xlane.f32.xlu0 %v1866
    %v1971 = vpop.xlane.xlu0 %1970
    %1972 = vmax.xlane.f32.xlu0 %v1870
    %v1973 = vpop.xlane.xlu0 %1972
    %1974 = vmax.xlane.f32.xlu0 %v1876
    %v1975 = vpop.xlane.xlu0 %1974
    %1976 = vmax.xlane.f32.xlu0 %v1880
    %v1977 = vpop.xlane.xlu0 %1976
    %1978 = vmax.xlane.f32.xlu0 %v1886
    %v1979 = vpop.xlane.xlu0 %1978
    %1980 = vmax.xlane.f32.xlu0 %v1890
    %v1981 = vpop.xlane.xlu0 %1980
    %1982 = vmax.xlane.f32.xlu0 %v1896
    %v1983 = vpop.xlane.xlu0 %1982
    %1984 = vmax.xlane.f32.xlu0 %v1900
    %v1985 = vpop.xlane.xlu0 %1984
    %1986 = vmax.xlane.f32.xlu0 %v1906
    %v1987 = vpop.xlane.xlu0 %1986
    %1988 = vmax.xlane.f32.xlu0 %v1910
    %v1989 = vpop.xlane.xlu0 %1988
    %1990 = vmax.xlane.f32.xlu0 %v1916
    %v1991 = vpop.xlane.xlu0 %1990
    %1992 = vmax.xlane.f32.xlu0 %v1920
    %v1993 = vpop.xlane.xlu0 %1992
    %1994 = vmax.xlane.f32.xlu0 %v1926
    %v1995 = vpop.xlane.xlu0 %1994
    %1996 = vmax.xlane.f32.xlu0 %v1930
    %v1997 = vpop.xlane.xlu0 %1996
    %1998 = vmax.xlane.f32.xlu0 %v1778
    %v1999 = vpop.xlane.xlu0 %1998
    %2000 = vmax.xlane.f32.xlu0 %v1782
    %v2001 = vpop.xlane.xlu0 %2000
    %2002 = vmax.xlane.f32.xlu0 %v1788
    %v2003 = vpop.xlane.xlu0 %2002
    %2004 = vmax.xlane.f32.xlu0 %v1792
    %v2005 = vpop.xlane.xlu0 %2004
    %2006 = vmax.xlane.f32.xlu0 %v1798
    %v2007 = vpop.xlane.xlu0 %2006
    %2008 = vmax.xlane.f32.xlu0 %v1802
    %v2009 = vpop.xlane.xlu0 %2008
    %2010 = vmax.xlane.f32.xlu0 %v1808
    %v2011 = vpop.xlane.xlu0 %2010
    %2012 = vmax.xlane.f32.xlu0 %v1812
    %v2013 = vpop.xlane.xlu0 %2012
    %2014 = vmax.xlane.f32.xlu0 %v1818
    %v2015 = vpop.xlane.xlu0 %2014
    %2016 = vmax.xlane.f32.xlu0 %v1822
    %v2017 = vpop.xlane.xlu0 %2016
    %2018 = vmax.xlane.f32.xlu0 %v1828
    %v2019 = vpop.xlane.xlu0 %2018
    %2020 = vmax.xlane.f32.xlu0 %v1832
    %v2021 = vpop.xlane.xlu0 %2020
    %2022 = vmax.xlane.f32.xlu0 %v1838
    %v2023 = vpop.xlane.xlu0 %2022
    %2024 = vmax.xlane.f32.xlu0 %v1842
    %v2025 = vpop.xlane.xlu0 %2024
    %2026 = vmax.xlane.f32.xlu0 %v1848
    %v2027 = vpop.xlane.xlu0 %2026
    %2028 = vmax.xlane.f32.xlu0 %v1852
    %v2029 = vpop.xlane.xlu0 %2028
    %2030 = vmax.xlane.f32.xlu0 %v1858
    %v2031 = vpop.xlane.xlu0 %2030
    %2032 = vmax.xlane.f32.xlu0 %v1862
    %v2033 = vpop.xlane.xlu0 %2032
    %2034 = vmax.xlane.f32.xlu0 %v1868
    %v2035 = vpop.xlane.xlu0 %2034
    %2036 = vmax.xlane.f32.xlu0 %v1872
    %v2037 = vpop.xlane.xlu0 %2036
    %2038 = vmax.xlane.f32.xlu0 %v1878
    %v2039 = vpop.xlane.xlu0 %2038
    %2040 = vmax.xlane.f32.xlu0 %v1882
    %v2041 = vpop.xlane.xlu0 %2040
    %2042 = vmax.xlane.f32.xlu0 %v1888
    %v2043 = vpop.xlane.xlu0 %2042
    %2044 = vmax.xlane.f32.xlu0 %v1892
    %v2045 = vpop.xlane.xlu0 %2044
    %2046 = vmax.xlane.f32.xlu0 %v1898
    %v2047 = vpop.xlane.xlu0 %2046
    %2048 = vmax.xlane.f32.xlu0 %v1902
    %v2049 = vpop.xlane.xlu0 %2048
    %2050 = vmax.xlane.f32.xlu0 %v1908
    %v2051 = vpop.xlane.xlu0 %2050
    %2052 = vmax.xlane.f32.xlu0 %v1912
    %v2053 = vpop.xlane.xlu0 %2052
    %2054 = vmax.xlane.f32.xlu0 %v1918
    %v2055 = vpop.xlane.xlu0 %2054
    %2056 = vmax.xlane.f32.xlu0 %v1922
    %v2057 = vpop.xlane.xlu0 %2056
    %2058 = vmax.xlane.f32.xlu0 %v1928
    %v2059 = vpop.xlane.xlu0 %2058
    %2060 = vmax.xlane.f32.xlu0 %v1932
    %v2061 = vpop.xlane.xlu0 %2060
    %vm2062 = vcmask 7168
    %v2063 = vsel %vm2062, %v1935, %v1999
    %v2064 = vsel %vm2062, %v1937, %v2001
    %v2065 = vsel %vm2062, %v1939, %v2003
    %v2066 = vsel %vm2062, %v1941, %v2005
    %v2067 = vsel %vm2062, %v1943, %v2007
    %v2068 = vsel %vm2062, %v1945, %v2009
    %v2069 = vsel %vm2062, %v1947, %v2011
    %v2070 = vsel %vm2062, %v1949, %v2013
    %v2071 = vsel %vm2062, %v1951, %v2015
    %v2072 = vsel %vm2062, %v1953, %v2017
    %v2073 = vsel %vm2062, %v1955, %v2019
    %v2074 = vsel %vm2062, %v1957, %v2021
    %v2075 = vsel %vm2062, %v1959, %v2023
    %v2076 = vsel %vm2062, %v1961, %v2025
    %v2077 = vsel %vm2062, %v1963, %v2027
    %v2078 = vsel %vm2062, %v1965, %v2029
    %v2079 = vsel %vm2062, %v1967, %v2031
    %v2080 = vsel %vm2062, %v1969, %v2033
    %v2081 = vsel %vm2062, %v1971, %v2035
    %v2082 = vsel %vm2062, %v1973, %v2037
    %v2083 = vsel %vm2062, %v1975, %v2039
    %v2084 = vsel %vm2062, %v1977, %v2041
    %v2085 = vsel %vm2062, %v1979, %v2043
    %v2086 = vsel %vm2062, %v1981, %v2045
    %v2087 = vsel %vm2062, %v1983, %v2047
    %v2088 = vsel %vm2062, %v1985, %v2049
    %v2089 = vsel %vm2062, %v1987, %v2051
    %v2090 = vsel %vm2062, %v1989, %v2053
    %v2091 = vsel %vm2062, %v1991, %v2055
    %v2092 = vsel %vm2062, %v1993, %v2057
    %v2093 = vsel %vm2062, %v1995, %v2059
    %v2094 = vsel %vm2062, %v1997, %v2061
    %v2095 = vld [vmem:[%s11] sm:$0xff]
    %v2096 = vld [vmem:[%s11 + $0x8] sm:$0xff]
    %v2097 = vld [vmem:[%s11 + $0x10] sm:$0xff]
    %v2098 = vld [vmem:[%s11 + $0x18] sm:$0xff]
    %v2099 = vld [vmem:[%s11 + $0x20] sm:$0xff]
    %v2100 = vld [vmem:[%s11 + $0x28] sm:$0xff]
    %v2101 = vld [vmem:[%s11 + $0x30] sm:$0xff]
    %v2102 = vld [vmem:[%s11 + $0x38] sm:$0xff]
    %v2103 = vld [vmem:[%s11 + $0x40] sm:$0xff]
    %v2104 = vld [vmem:[%s11 + $0x48] sm:$0xff]
    %v2105 = vld [vmem:[%s11 + $0x50] sm:$0xff]
    %v2106 = vld [vmem:[%s11 + $0x58] sm:$0xff]
    %v2107 = vld [vmem:[%s11 + $0x60] sm:$0xff]
    %v2108 = vld [vmem:[%s11 + $0x68] sm:$0xff]
    %v2109 = vld [vmem:[%s11 + $0x70] sm:$0xff]
    %v2110 = vld [vmem:[%s11 + $0x78] sm:$0xff]
    %v2111 = vld [vmem:[%s11 + $0x80] sm:$0xff]
    %v2112 = vld [vmem:[%s11 + $0x88] sm:$0xff]
    %v2113 = vld [vmem:[%s11 + $0x90] sm:$0xff]
    %v2114 = vld [vmem:[%s11 + $0x98] sm:$0xff]
    %v2115 = vld [vmem:[%s11 + $0xa0] sm:$0xff]
    %v2116 = vld [vmem:[%s11 + $0xa8] sm:$0xff]
    %v2117 = vld [vmem:[%s11 + $0xb0] sm:$0xff]
    %v2118 = vld [vmem:[%s11 + $0xb8] sm:$0xff]
    %v2119 = vld [vmem:[%s11 + $0xc0] sm:$0xff]
    %v2120 = vld [vmem:[%s11 + $0xc8] sm:$0xff]
    %v2121 = vld [vmem:[%s11 + $0xd0] sm:$0xff]
    %v2122 = vld [vmem:[%s11 + $0xd8] sm:$0xff]
    %v2123 = vld [vmem:[%s11 + $0xe0] sm:$0xff]
    %v2124 = vld [vmem:[%s11 + $0xe8] sm:$0xff]
    %v2125 = vld [vmem:[%s11 + $0xf0] sm:$0xff]
    %v2126 = vld [vmem:[%s11 + $0xf8] sm:$0xff]
    %v2127 = vpack.c.bf16 %v2064, %v2063
    %v2128 = vpack.c.bf16 %v2066, %v2065
    %v2129 = vpack.c.bf16 %v2068, %v2067
    %v2130 = vpack.c.bf16 %v2070, %v2069
    %v2131 = vpack.c.bf16 %v2072, %v2071
    %v2132 = vpack.c.bf16 %v2074, %v2073
    %v2133 = vpack.c.bf16 %v2076, %v2075
    %v2134 = vpack.c.bf16 %v2078, %v2077
    %v2135 = vpack.c.bf16 %v2080, %v2079
    %v2136 = vpack.c.bf16 %v2082, %v2081
    %v2137 = vpack.c.bf16 %v2084, %v2083
    %v2138 = vpack.c.bf16 %v2086, %v2085
    %v2139 = vpack.c.bf16 %v2088, %v2087
    %v2140 = vpack.c.bf16 %v2090, %v2089
    %v2141 = vpack.c.bf16 %v2092, %v2091
    %v2142 = vpack.c.bf16 %v2094, %v2093
    %v2175 = vunpack.c.l.b16 %v2095
    %v2176 = vunpack.c.h.b16 %v2095
    %v2177 = vunpack.c.l.b16 %v2096
    %v2178 = vunpack.c.h.b16 %v2096
    %v2179 = vunpack.c.l.b16 %v2097
    %v2180 = vunpack.c.h.b16 %v2097
    %v2181 = vunpack.c.l.b16 %v2098
    %v2182 = vunpack.c.h.b16 %v2098
    %v2183 = vunpack.c.l.b16 %v2099
    %v2184 = vunpack.c.h.b16 %v2099
    %v2185 = vunpack.c.l.b16 %v2100
    %v2186 = vunpack.c.h.b16 %v2100
    %v2187 = vunpack.c.l.b16 %v2101
    %v2188 = vunpack.c.h.b16 %v2101
    %v2189 = vunpack.c.l.b16 %v2102
    %v2190 = vunpack.c.h.b16 %v2102
    %v2191 = vunpack.c.l.b16 %v2103
    %v2192 = vunpack.c.h.b16 %v2103
    %v2193 = vunpack.c.l.b16 %v2104
    %v2194 = vunpack.c.h.b16 %v2104
    %v2195 = vunpack.c.l.b16 %v2105
    %v2196 = vunpack.c.h.b16 %v2105
    %v2197 = vunpack.c.l.b16 %v2106
    %v2198 = vunpack.c.h.b16 %v2106
    %v2199 = vunpack.c.l.b16 %v2107
    %v2200 = vunpack.c.h.b16 %v2107
    %v2201 = vunpack.c.l.b16 %v2108
    %v2202 = vunpack.c.h.b16 %v2108
    %v2203 = vunpack.c.l.b16 %v2109
    %v2204 = vunpack.c.h.b16 %v2109
    %v2205 = vunpack.c.l.b16 %v2110
    %v2206 = vunpack.c.h.b16 %v2110
    %v2207 = vunpack.c.l.b16 %v2111
    %v2208 = vunpack.c.h.b16 %v2111
    %v2209 = vunpack.c.l.b16 %v2112
    %v2210 = vunpack.c.h.b16 %v2112
    %v2211 = vunpack.c.l.b16 %v2113
    %v2212 = vunpack.c.h.b16 %v2113
    %v2213 = vunpack.c.l.b16 %v2114
    %v2214 = vunpack.c.h.b16 %v2114
    %v2215 = vunpack.c.l.b16 %v2115
    %v2216 = vunpack.c.h.b16 %v2115
    %v2217 = vunpack.c.l.b16 %v2116
    %v2218 = vunpack.c.h.b16 %v2116
    %v2219 = vunpack.c.l.b16 %v2117
    %v2220 = vunpack.c.h.b16 %v2117
    %v2221 = vunpack.c.l.b16 %v2118
    %v2222 = vunpack.c.h.b16 %v2118
    %v2223 = vunpack.c.l.b16 %v2119
    %v2224 = vunpack.c.h.b16 %v2119
    %v2225 = vunpack.c.l.b16 %v2120
    %v2226 = vunpack.c.h.b16 %v2120
    %v2227 = vunpack.c.l.b16 %v2121
    %v2228 = vunpack.c.h.b16 %v2121
    %v2229 = vunpack.c.l.b16 %v2122
    %v2230 = vunpack.c.h.b16 %v2122
    %v2231 = vunpack.c.l.b16 %v2123
    %v2232 = vunpack.c.h.b16 %v2123
    %v2233 = vunpack.c.l.b16 %v2124
    %v2234 = vunpack.c.h.b16 %v2124
    %v2235 = vunpack.c.l.b16 %v2125
    %v2236 = vunpack.c.h.b16 %v2125
    %v2237 = vunpack.c.l.b16 %v2126
    %v2238 = vunpack.c.h.b16 %v2126
    %v2239 = vpack.c.b16 %v2177, %v2175
    %v2240 = vpack.c.b16 %v2178, %v2176
    %v2241 = vpack.c.b16 %v2181, %v2179
    %v2242 = vpack.c.b16 %v2182, %v2180
    %v2243 = vpack.c.b16 %v2185, %v2183
    %v2244 = vpack.c.b16 %v2186, %v2184
    %v2245 = vpack.c.b16 %v2189, %v2187
    %v2246 = vpack.c.b16 %v2190, %v2188
    %v2247 = vpack.c.b16 %v2193, %v2191
    %v2248 = vpack.c.b16 %v2194, %v2192
    %v2249 = vpack.c.b16 %v2197, %v2195
    %v2250 = vpack.c.b16 %v2198, %v2196
    %v2251 = vpack.c.b16 %v2201, %v2199
    %v2252 = vpack.c.b16 %v2202, %v2200
    %v2253 = vpack.c.b16 %v2205, %v2203
    %v2254 = vpack.c.b16 %v2206, %v2204
    %v2255 = vpack.c.b16 %v2209, %v2207
    %v2256 = vpack.c.b16 %v2210, %v2208
    %v2257 = vpack.c.b16 %v2213, %v2211
    %v2258 = vpack.c.b16 %v2214, %v2212
    %v2259 = vpack.c.b16 %v2217, %v2215
    %v2260 = vpack.c.b16 %v2218, %v2216
    %v2261 = vpack.c.b16 %v2221, %v2219
    %v2262 = vpack.c.b16 %v2222, %v2220
    %v2263 = vpack.c.b16 %v2225, %v2223
    %v2264 = vpack.c.b16 %v2226, %v2224
    %v2265 = vpack.c.b16 %v2229, %v2227
    %v2266 = vpack.c.b16 %v2230, %v2228
    %v2267 = vpack.c.b16 %v2233, %v2231
    %v2268 = vpack.c.b16 %v2234, %v2232
    %v2269 = vpack.c.b16 %v2237, %v2235
    %v2270 = vpack.c.b16 %v2238, %v2236
    %2303 = vmatprep.subr.bf16.mxu0 0
    %2304 = vmatpush1.bf16.msra.mxu0 %v2127
    %2305 = vmatprep.subr.bf16.mxu0 0
    %2306 = vmatpush1.bf16.msra.mxu0 %v2128
    %2307 = vmatprep.subr.bf16.mxu0 0
    %2308 = vmatpush1.bf16.msra.mxu0 %v2129
    %2309 = vmatprep.subr.bf16.mxu0 0
    %2310 = vmatpush1.bf16.msra.mxu0 %v2130
    %2311 = vmatprep.subr.bf16.mxu0 0
    %2312 = vmatpush1.bf16.msra.mxu0 %v2131
    %2313 = vmatprep.subr.bf16.mxu0 0
    %2314 = vmatpush1.bf16.msra.mxu0 %v2132
    %2315 = vmatprep.subr.bf16.mxu0 0
    %2316 = vmatpush1.bf16.msra.mxu0 %v2133
    %2317 = vmatprep.subr.bf16.mxu0 0
    %2318 = vmatpush1.bf16.msra.mxu0 %v2134
    %2319 = vmatprep.subr.bf16.mxu0 0
    %2320 = vmatpush1.bf16.msra.mxu0 %v2135
    %2321 = vmatprep.subr.bf16.mxu0 0
    %2322 = vmatpush1.bf16.msra.mxu0 %v2136
    %2323 = vmatprep.subr.bf16.mxu0 0
    %2324 = vmatpush1.bf16.msra.mxu0 %v2137
    %2325 = vmatprep.subr.bf16.mxu0 0
    %2326 = vmatpush1.bf16.msra.mxu0 %v2138
    %2327 = vmatprep.subr.bf16.mxu0 0
    %2328 = vmatpush1.bf16.msra.mxu0 %v2139
    %2329 = vmatprep.subr.bf16.mxu0 0
    %2330 = vmatpush1.bf16.msra.mxu0 %v2140
    %2331 = vmatprep.subr.bf16.mxu0 0
    %2332 = vmatpush1.bf16.msra.mxu0 %v2141
    %2333 = vmatprep.subr.bf16.mxu0 0
    %2334 = vmatpush1.bf16.msra.mxu0 %v2142
    %2335 = vmatprep.mubr.bf16.mxu0 %v2240
    %2336 = vmatmul.mubr.bf16.gmra.mrb[0].mxu0 %v2239
    %v2337 = vpop.f32.mrb[0].mxu0
    %v2338 = vadd.f32 0.0, %v2337
    %v2339 = vpop.f32.mrb[0].mxu0
    %v2340 = vpop.f32.mrb[0].mxu0
    %v2341 = vadd.f32 0.0, %v2340
    %v2342 = vpop.f32.mrb[0].mxu0
    %2343 = vmatprep.mubr.bf16.mxu0 %v2242
    %2344 = vmatmul.mubr.bf16.gmra.mrb[0].mxu0 %v2241
    %v2345 = vpop.f32.mrb[0].mxu0
    %v2346 = vadd.f32 0.0, %v2345
    %v2347 = vpop.f32.mrb[0].mxu0
    %v2348 = vpop.f32.mrb[0].mxu0
    %v2349 = vadd.f32 0.0, %v2348
    %v2350 = vpop.f32.mrb[0].mxu0
    %2351 = vmatprep.mubr.bf16.mxu0 %v2244
    %2352 = vmatmul.mubr.bf16.gmra.mrb[0].mxu0 %v2243
    %v2353 = vpop.f32.mrb[0].mxu0
    %v2354 = vadd.f32 0.0, %v2353
    %v2355 = vpop.f32.mrb[0].mxu0
    %v2356 = vpop.f32.mrb[0].mxu0
    %v2357 = vadd.f32 0.0, %v2356
    %v2358 = vpop.f32.mrb[0].mxu0
    %2359 = vmatprep.mubr.bf16.mxu0 %v2246
    %2360 = vmatmul.mubr.bf16.gmra.mrb[0].mxu0 %v2245
    %v2361 = vpop.f32.mrb[0].mxu0
    %v2362 = vadd.f32 0.0, %v2361
    %v2363 = vpop.f32.mrb[0].mxu0
    %v2364 = vpop.f32.mrb[0].mxu0
    %v2365 = vadd.f32 0.0, %v2364
    %v2366 = vpop.f32.mrb[0].mxu0
    %2367 = vmatprep.mubr.bf16.mxu0 %v2248
    %2368 = vmatmul.mubr.bf16.gmra.mrb[0].mxu0 %v2247
    %v2369 = vpop.f32.mrb[0].mxu0
    %v2370 = vadd.f32 0.0, %v2369
    %v2371 = vpop.f32.mrb[0].mxu0
    %v2372 = vpop.f32.mrb[0].mxu0
    %v2373 = vadd.f32 0.0, %v2372
    %v2374 = vpop.f32.mrb[0].mxu0
    %2375 = vmatprep.mubr.bf16.mxu0 %v2250
    %2376 = vmatmul.mubr.bf16.gmra.mrb[0].mxu0 %v2249
    %v2377 = vpop.f32.mrb[0].mxu0
    %v2378 = vadd.f32 0.0, %v2377
    %v2379 = vpop.f32.mrb[0].mxu0
    %v2380 = vpop.f32.mrb[0].mxu0
    %v2381 = vadd.f32 0.0, %v2380
    %v2382 = vpop.f32.mrb[0].mxu0
    %2383 = vmatprep.mubr.bf16.mxu0 %v2252
    %2384 = vmatmul.mubr.bf16.gmra.mrb[0].mxu0 %v2251
    %v2385 = vpop.f32.mrb[0].mxu0
    %v2386 = vadd.f32 0.0, %v2385
    %v2387 = vpop.f32.mrb[0].mxu0
    %v2388 = vpop.f32.mrb[0].mxu0
    %v2389 = vadd.f32 0.0, %v2388
    %v2390 = vpop.f32.mrb[0].mxu0
    %2391 = vmatprep.mubr.bf16.mxu0 %v2254
    %2392 = vmatmul.mubr.bf16.gmra.mrb[0].mxu0 %v2253
    %v2393 = vpop.f32.mrb[0].mxu0
    %v2394 = vadd.f32 0.0, %v2393
    %v2395 = vpop.f32.mrb[0].mxu0
    %v2396 = vpop.f32.mrb[0].mxu0
    %v2397 = vadd.f32 0.0, %v2396
    %v2398 = vpop.f32.mrb[0].mxu0
    %2399 = vmatprep.mubr.bf16.mxu0 %v2256
    %2400 = vmatmul.mubr.bf16.gmra.mrb[0].mxu0 %v2255
    %v2401 = vpop.f32.mrb[0].mxu0
    %v2402 = vadd.f32 0.0, %v2401
    %v2403 = vpop.f32.mrb[0].mxu0
    %v2404 = vpop.f32.mrb[0].mxu0
    %v2405 = vadd.f32 0.0, %v2404
    %v2406 = vpop.f32.mrb[0].mxu0
    %2407 = vmatprep.mubr.bf16.mxu0 %v2258
    %2408 = vmatmul.mubr.bf16.gmra.mrb[0].mxu0 %v2257
    %v2409 = vpop.f32.mrb[0].mxu0
    %v2410 = vadd.f32 0.0, %v2409
    %v2411 = vpop.f32.mrb[0].mxu0
    %v2412 = vpop.f32.mrb[0].mxu0
    %v2413 = vadd.f32 0.0, %v2412
    %v2414 = vpop.f32.mrb[0].mxu0
    %2415 = vmatprep.mubr.bf16.mxu0 %v2260
    %2416 = vmatmul.mubr.bf16.gmra.mrb[0].mxu0 %v2259
    %v2417 = vpop.f32.mrb[0].mxu0
    %v2418 = vadd.f32 0.0, %v2417
    %v2419 = vpop.f32.mrb[0].mxu0
    %v2420 = vpop.f32.mrb[0].mxu0
    %v2421 = vadd.f32 0.0, %v2420
    %v2422 = vpop.f32.mrb[0].mxu0
    %2423 = vmatprep.mubr.bf16.mxu0 %v2262
    %2424 = vmatmul.mubr.bf16.gmra.mrb[0].mxu0 %v2261
    %v2425 = vpop.f32.mrb[0].mxu0
    %v2426 = vadd.f32 0.0, %v2425
    %v2427 = vpop.f32.mrb[0].mxu0
    %v2428 = vpop.f32.mrb[0].mxu0
    %v2429 = vadd.f32 0.0, %v2428
    %v2430 = vpop.f32.mrb[0].mxu0
    %2431 = vmatprep.mubr.bf16.mxu0 %v2264
    %2432 = vmatmul.mubr.bf16.gmra.mrb[0].mxu0 %v2263
    %v2433 = vpop.f32.mrb[0].mxu0
    %v2434 = vadd.f32 0.0, %v2433
    %v2435 = vpop.f32.mrb[0].mxu0
    %v2436 = vpop.f32.mrb[0].mxu0
    %v2437 = vadd.f32 0.0, %v2436
    %v2438 = vpop.f32.mrb[0].mxu0
    %2439 = vmatprep.mubr.bf16.mxu0 %v2266
    %2440 = vmatmul.mubr.bf16.gmra.mrb[0].mxu0 %v2265
    %v2441 = vpop.f32.mrb[0].mxu0
    %v2442 = vadd.f32 0.0, %v2441
    %v2443 = vpop.f32.mrb[0].mxu0
    %v2444 = vpop.f32.mrb[0].mxu0
    %v2445 = vadd.f32 0.0, %v2444
    %v2446 = vpop.f32.mrb[0].mxu0
    %2447 = vmatprep.mubr.bf16.mxu0 %v2268
    %2448 = vmatmul.mubr.bf16.gmra.mrb[0].mxu0 %v2267
    %v2449 = vpop.f32.mrb[0].mxu0
    %v2450 = vadd.f32 0.0, %v2449
    %v2451 = vpop.f32.mrb[0].mxu0
    %v2452 = vpop.f32.mrb[0].mxu0
    %v2453 = vadd.f32 0.0, %v2452
    %v2454 = vpop.f32.mrb[0].mxu0
    %2455 = vmatprep.mubr.bf16.mxu0 %v2270
    %2456 = vmatmul.mubr.bf16.gmra.mrb[0].mxu0 %v2269
    %v2457 = vpop.f32.mrb[0].mxu0
    %v2458 = vadd.f32 0.0, %v2457
    %v2459 = vpop.f32.mrb[0].mxu0
    %v2460 = vpop.f32.mrb[0].mxu0
    %v2461 = vadd.f32 0.0, %v2460
    %v2462 = vpop.f32.mrb[0].mxu0
    %2463 = vdwg.mxu0
    %v2464 = vpack.c.bf16 %v2341, %v2338
    %v2465 = vpack.c.bf16 %v2349, %v2346
    %v2466 = vpack.c.bf16 %v2357, %v2354
    %v2467 = vpack.c.bf16 %v2365, %v2362
    %v2468 = vpack.c.bf16 %v2373, %v2370
    %v2469 = vpack.c.bf16 %v2381, %v2378
    %v2470 = vpack.c.bf16 %v2389, %v2386
    %v2471 = vpack.c.bf16 %v2397, %v2394
    %v2472 = vpack.c.bf16 %v2405, %v2402
    %v2473 = vpack.c.bf16 %v2413, %v2410
    %v2474 = vpack.c.bf16 %v2421, %v2418
    %v2475 = vpack.c.bf16 %v2429, %v2426
    %v2476 = vpack.c.bf16 %v2437, %v2434
    %v2477 = vpack.c.bf16 %v2445, %v2442
    %v2478 = vpack.c.bf16 %v2453, %v2450
    %v2479 = vpack.c.bf16 %v2461, %v2458
    %v2480 = vld [vmem:[%s18] sm:$0x3]
    %v2483 = vunpack.c.l.s4 1966171168
    %v2484 = vunpack.c.0.s8 %v2483
    %v2485 = vlaneseq
    %v2486 = vshrl.u32 %v2485, 7
    %v2487 = vsub.s32 %v2484, %v2486
    %v2488 = vrot.slane %v2480, %v2487
    %v2489 = vcombine.high %v2488, %v2488
    %v2491 = vunpack.c.l.s4 1966171168
    %v2492 = vunpack.c.0.s8 %v2491
    %v2493 = vlaneseq
    %v2494 = vshrl.u32 %v2493, 7
    %v2495 = vsub.s32 %v2492, %v2494
    %v2496 = vrot.slane %v2488, %v2495
    %v2498 = vunpack.c.l.s4 1966171168
    %v2499 = vunpack.c.0.s8 %v2498
    %v2500 = vlaneseq
    %v2501 = vshrl.u32 %v2500, 7
    %v2502 = vsub.s32 %v2499, %v2501
    %v2503 = vrot.slane %v2489, %v2502
    %vm2504 = vcmask 15360
    %v2506 = vsel %vm2504, %v2464, 0
    %v2509 = vsel %vm2504, %v2465, 0
    %v2512 = vsel %vm2504, %v2466, 0
    %v2515 = vsel %vm2504, %v2467, 0
    %v2518 = vsel %vm2504, %v2468, 0
    %v2521 = vsel %vm2504, %v2469, 0
    %v2524 = vsel %vm2504, %v2470, 0
    %v2527 = vsel %vm2504, %v2471, 0
    %v2530 = vsel %vm2504, %v2472, 0
    %v2533 = vsel %vm2504, %v2473, 0
    %v2536 = vsel %vm2504, %v2474, 0
    %v2539 = vsel %vm2504, %v2475, 0
    %v2542 = vsel %vm2504, %v2476, 0
    %v2545 = vsel %vm2504, %v2477, 0
    %v2548 = vsel %vm2504, %v2478, 0
    %v2551 = vsel %vm2504, %v2479, 0
    %vm2553 = vcmask 1040384
    %v2555 = vsel %vm2553, %v2496, 0
    %v2558 = vsel %vm2553, %v2503, 0
    %2560 = vmatprep.subr.bf16.mxu0 %v2558
    %2561 = vmatpush1.bf16.msra.mxu0 %v2555
    %2562 = vmatprep.subr.bf16.mxu0 0
    %2563 = vmatpush1.bf16.msra.mxu0 0
    %2564 = vmatprep.subr.bf16.mxu0 0
    %2565 = vmatpush1.bf16.msra.mxu0 0
    %2566 = vmatprep.subr.bf16.mxu0 0
    %2567 = vmatpush1.bf16.msra.mxu0 0
    %2568 = vmatprep.subr.bf16.mxu0 0
    %2569 = vmatpush1.bf16.msra.mxu0 0
    %2570 = vmatprep.subr.bf16.mxu0 0
    %2571 = vmatpush1.bf16.msra.mxu0 0
    %2572 = vmatprep.subr.bf16.mxu0 0
    %2573 = vmatpush1.bf16.msra.mxu0 0
    %2574 = vmatprep.subr.bf16.mxu0 0
    %2575 = vmatpush1.bf16.msra.mxu0 0
    %2576 = vmatprep.subr.bf16.mxu0 0
    %2577 = vmatpush1.bf16.msra.mxu0 0
    %2578 = vmatprep.subr.bf16.mxu0 0
    %2579 = vmatpush1.bf16.msra.mxu0 0
    %2580 = vmatprep.subr.bf16.mxu0 0
    %2581 = vmatpush1.bf16.msra.mxu0 0
    %2582 = vmatprep.subr.bf16.mxu0 0
    %2583 = vmatpush1.bf16.msra.mxu0 0
    %2584 = vmatprep.subr.bf16.mxu0 0
    %2585 = vmatpush1.bf16.msra.mxu0 0
    %2586 = vmatprep.subr.bf16.mxu0 0
    %2587 = vmatpush1.bf16.msra.mxu0 0
    %2588 = vmatprep.subr.bf16.mxu0 0
    %2589 = vmatpush1.bf16.msra.mxu0 0
    %2590 = vmatprep.subr.bf16.mxu0 0
    %2591 = vmatpush1.bf16.msra.mxu0 0
    %2592 = vmatprep.mubr.bf16.mxu0 0
    %2593 = vmatmul.mubr.bf16.gmra.mrb[0].mxu0 %v2506
    %v2594 = vpop.f32.mrb[0].mxu0
    %v2595 = vadd.f32 0.0, %v2594
    %v2596 = vpop.f32.mrb[0].mxu0
    %v2597 = vadd.f32 0.0, %v2596
    %v2598 = vpop.f32.mrb[0].mxu0
    %v2599 = vadd.f32 0.0, %v2598
    %v2600 = vpop.f32.mrb[0].mxu0
    %v2601 = vadd.f32 0.0, %v2600
    %2602 = vmatprep.mubr.bf16.mxu0 0
    %2603 = vmatmul.mubr.bf16.gmra.mrb[0].mxu0 %v2509
    %v2604 = vpop.f32.mrb[0].mxu0
    %v2605 = vadd.f32 0.0, %v2604
    %v2606 = vpop.f32.mrb[0].mxu0
    %v2607 = vadd.f32 0.0, %v2606
    %v2608 = vpop.f32.mrb[0].mxu0
    %v2609 = vadd.f32 0.0, %v2608
    %v2610 = vpop.f32.mrb[0].mxu0
    %v2611 = vadd.f32 0.0, %v2610
    %2612 = vmatprep.mubr.bf16.mxu0 0
    %2613 = vmatmul.mubr.bf16.gmra.mrb[0].mxu0 %v2512
    %v2614 = vpop.f32.mrb[0].mxu0
    %v2615 = vadd.f32 0.0, %v2614
    %v2616 = vpop.f32.mrb[0].mxu0
    %v2617 = vadd.f32 0.0, %v2616
    %v2618 = vpop.f32.mrb[0].mxu0
    %v2619 = vadd.f32 0.0, %v2618
    %v2620 = vpop.f32.mrb[0].mxu0
    %v2621 = vadd.f32 0.0, %v2620
    %2622 = vmatprep.mubr.bf16.mxu0 0
    %2623 = vmatmul.mubr.bf16.gmra.mrb[0].mxu0 %v2515
    %v2624 = vpop.f32.mrb[0].mxu0
    %v2625 = vadd.f32 0.0, %v2624
    %v2626 = vpop.f32.mrb[0].mxu0
    %v2627 = vadd.f32 0.0, %v2626
    %v2628 = vpop.f32.mrb[0].mxu0
    %v2629 = vadd.f32 0.0, %v2628
    %v2630 = vpop.f32.mrb[0].mxu0
    %v2631 = vadd.f32 0.0, %v2630
    %2632 = vmatprep.mubr.bf16.mxu0 0
    %2633 = vmatmul.mubr.bf16.gmra.mrb[0].mxu0 %v2518
    %v2634 = vpop.f32.mrb[0].mxu0
    %v2635 = vadd.f32 0.0, %v2634
    %v2636 = vpop.f32.mrb[0].mxu0
    %v2637 = vadd.f32 0.0, %v2636
    %v2638 = vpop.f32.mrb[0].mxu0
    %v2639 = vadd.f32 0.0, %v2638
    %v2640 = vpop.f32.mrb[0].mxu0
    %v2641 = vadd.f32 0.0, %v2640
    %2642 = vmatprep.mubr.bf16.mxu0 0
    %2643 = vmatmul.mubr.bf16.gmra.mrb[0].mxu0 %v2521
    %v2644 = vpop.f32.mrb[0].mxu0
    %v2645 = vadd.f32 0.0, %v2644
    %v2646 = vpop.f32.mrb[0].mxu0
    %v2647 = vadd.f32 0.0, %v2646
    %v2648 = vpop.f32.mrb[0].mxu0
    %v2649 = vadd.f32 0.0, %v2648
    %v2650 = vpop.f32.mrb[0].mxu0
    %v2651 = vadd.f32 0.0, %v2650
    %2652 = vmatprep.mubr.bf16.mxu0 0
    %2653 = vmatmul.mubr.bf16.gmra.mrb[0].mxu0 %v2524
    %v2654 = vpop.f32.mrb[0].mxu0
    %v2655 = vadd.f32 0.0, %v2654
    %v2656 = vpop.f32.mrb[0].mxu0
    %v2657 = vadd.f32 0.0, %v2656
    %v2658 = vpop.f32.mrb[0].mxu0
    %v2659 = vadd.f32 0.0, %v2658
    %v2660 = vpop.f32.mrb[0].mxu0
    %v2661 = vadd.f32 0.0, %v2660
    %2662 = vmatprep.mubr.bf16.mxu0 0
    %2663 = vmatmul.mubr.bf16.gmra.mrb[0].mxu0 %v2527
    %v2664 = vpop.f32.mrb[0].mxu0
    %v2665 = vadd.f32 0.0, %v2664
    %v2666 = vpop.f32.mrb[0].mxu0
    %v2667 = vadd.f32 0.0, %v2666
    %v2668 = vpop.f32.mrb[0].mxu0
    %v2669 = vadd.f32 0.0, %v2668
    %v2670 = vpop.f32.mrb[0].mxu0
    %v2671 = vadd.f32 0.0, %v2670
    %2672 = vmatprep.mubr.bf16.mxu0 0
    %2673 = vmatmul.mubr.bf16.gmra.mrb[0].mxu0 %v2530
    %v2674 = vpop.f32.mrb[0].mxu0
    %v2675 = vadd.f32 0.0, %v2674
    %v2676 = vpop.f32.mrb[0].mxu0
    %v2677 = vadd.f32 0.0, %v2676
    %v2678 = vpop.f32.mrb[0].mxu0
    %v2679 = vadd.f32 0.0, %v2678
    %v2680 = vpop.f32.mrb[0].mxu0
    %v2681 = vadd.f32 0.0, %v2680
    %2682 = vmatprep.mubr.bf16.mxu0 0
    %2683 = vmatmul.mubr.bf16.gmra.mrb[0].mxu0 %v2533
    %v2684 = vpop.f32.mrb[0].mxu0
    %v2685 = vadd.f32 0.0, %v2684
    %v2686 = vpop.f32.mrb[0].mxu0
    %v2687 = vadd.f32 0.0, %v2686
    %v2688 = vpop.f32.mrb[0].mxu0
    %v2689 = vadd.f32 0.0, %v2688
    %v2690 = vpop.f32.mrb[0].mxu0
    %v2691 = vadd.f32 0.0, %v2690
    %2692 = vmatprep.mubr.bf16.mxu0 0
    %2693 = vmatmul.mubr.bf16.gmra.mrb[0].mxu0 %v2536
    %v2694 = vpop.f32.mrb[0].mxu0
    %v2695 = vadd.f32 0.0, %v2694
    %v2696 = vpop.f32.mrb[0].mxu0
    %v2697 = vadd.f32 0.0, %v2696
    %v2698 = vpop.f32.mrb[0].mxu0
    %v2699 = vadd.f32 0.0, %v2698
    %v2700 = vpop.f32.mrb[0].mxu0
    %v2701 = vadd.f32 0.0, %v2700
    %2702 = vmatprep.mubr.bf16.mxu0 0
    %2703 = vmatmul.mubr.bf16.gmra.mrb[0].mxu0 %v2539
    %v2704 = vpop.f32.mrb[0].mxu0
    %v2705 = vadd.f32 0.0, %v2704
    %v2706 = vpop.f32.mrb[0].mxu0
    %v2707 = vadd.f32 0.0, %v2706
    %v2708 = vpop.f32.mrb[0].mxu0
    %v2709 = vadd.f32 0.0, %v2708
    %v2710 = vpop.f32.mrb[0].mxu0
    %v2711 = vadd.f32 0.0, %v2710
    %2712 = vmatprep.mubr.bf16.mxu0 0
    %2713 = vmatmul.mubr.bf16.gmra.mrb[0].mxu0 %v2542
    %v2714 = vpop.f32.mrb[0].mxu0
    %v2715 = vadd.f32 0.0, %v2714
    %v2716 = vpop.f32.mrb[0].mxu0
    %v2717 = vadd.f32 0.0, %v2716
    %v2718 = vpop.f32.mrb[0].mxu0
    %v2719 = vadd.f32 0.0, %v2718
    %v2720 = vpop.f32.mrb[0].mxu0
    %v2721 = vadd.f32 0.0, %v2720
    %2722 = vmatprep.mubr.bf16.mxu0 0
    %2723 = vmatmul.mubr.bf16.gmra.mrb[0].mxu0 %v2545
    %v2724 = vpop.f32.mrb[0].mxu0
    %v2725 = vadd.f32 0.0, %v2724
    %v2726 = vpop.f32.mrb[0].mxu0
    %v2727 = vadd.f32 0.0, %v2726
    %v2728 = vpop.f32.mrb[0].mxu0
    %v2729 = vadd.f32 0.0, %v2728
    %v2730 = vpop.f32.mrb[0].mxu0
    %v2731 = vadd.f32 0.0, %v2730
    %2732 = vmatprep.mubr.bf16.mxu0 0
    %2733 = vmatmul.mubr.bf16.gmra.mrb[0].mxu0 %v2548
    %v2734 = vpop.f32.mrb[0].mxu0
    %v2735 = vadd.f32 0.0, %v2734
    %v2736 = vpop.f32.mrb[0].mxu0
    %v2737 = vadd.f32 0.0, %v2736
    %v2738 = vpop.f32.mrb[0].mxu0
    %v2739 = vadd.f32 0.0, %v2738
    %v2740 = vpop.f32.mrb[0].mxu0
    %v2741 = vadd.f32 0.0, %v2740
    %2742 = vmatprep.mubr.bf16.mxu0 0
    %2743 = vmatmul.mubr.bf16.gmra.mrb[0].mxu0 %v2551
    %v2744 = vpop.f32.mrb[0].mxu0
    %v2745 = vadd.f32 0.0, %v2744
    %v2746 = vpop.f32.mrb[0].mxu0
    %v2747 = vadd.f32 0.0, %v2746
    %v2748 = vpop.f32.mrb[0].mxu0
    %v2749 = vadd.f32 0.0, %v2748
    %v2750 = vpop.f32.mrb[0].mxu0
    %v2751 = vadd.f32 0.0, %v2750
    %2752 = vdwg.mxu0
    %v2753 = vld [vmem:[%s12] sm:$0xf]
    %v2754 = vld [vmem:[%s12 + $0x4] sm:$0xf]
    %v2755 = vld [vmem:[%s12 + $0x8] sm:$0xf]
    %v2756 = vld [vmem:[%s12 + $0xc] sm:$0xf]
    %v2757 = vld [vmem:[%s12 + $0x10] sm:$0xf]
    %v2758 = vld [vmem:[%s12 + $0x14] sm:$0xf]
    %v2759 = vld [vmem:[%s12 + $0x18] sm:$0xf]
    %v2760 = vld [vmem:[%s12 + $0x1c] sm:$0xf]
    %v2761 = vld [vmem:[%s12 + $0x20] sm:$0xf]
    %v2762 = vld [vmem:[%s12 + $0x24] sm:$0xf]
    %v2763 = vld [vmem:[%s12 + $0x28] sm:$0xf]
    %v2764 = vld [vmem:[%s12 + $0x2c] sm:$0xf]
    %v2765 = vld [vmem:[%s12 + $0x30] sm:$0xf]
    %v2766 = vld [vmem:[%s12 + $0x34] sm:$0xf]
    %v2767 = vld [vmem:[%s12 + $0x38] sm:$0xf]
    %v2768 = vld [vmem:[%s12 + $0x3c] sm:$0xf]
    %v2769 = vld [vmem:[%s12 + $0x40] sm:$0xf]
    %v2770 = vld [vmem:[%s12 + $0x44] sm:$0xf]
    %v2771 = vld [vmem:[%s12 + $0x48] sm:$0xf]
    %v2772 = vld [vmem:[%s12 + $0x4c] sm:$0xf]
    %v2773 = vld [vmem:[%s12 + $0x50] sm:$0xf]
    %v2774 = vld [vmem:[%s12 + $0x54] sm:$0xf]
    %v2775 = vld [vmem:[%s12 + $0x58] sm:$0xf]
    %v2776 = vld [vmem:[%s12 + $0x5c] sm:$0xf]
    %v2777 = vld [vmem:[%s12 + $0x60] sm:$0xf]
    %v2778 = vld [vmem:[%s12 + $0x64] sm:$0xf]
    %v2779 = vld [vmem:[%s12 + $0x68] sm:$0xf]
    %v2780 = vld [vmem:[%s12 + $0x6c] sm:$0xf]
    %v2781 = vld [vmem:[%s12 + $0x70] sm:$0xf]
    %v2782 = vld [vmem:[%s12 + $0x74] sm:$0xf]
    %v2783 = vld [vmem:[%s12 + $0x78] sm:$0xf]
    %v2784 = vld [vmem:[%s12 + $0x7c] sm:$0xf]
    %v2817 = vunpack.c.l.b16 %v2753
    %v2818 = vunpack.c.l.b16 %v2754
    %v2819 = vunpack.c.l.b16 %v2755
    %v2820 = vunpack.c.l.b16 %v2756
    %v2821 = vunpack.c.l.b16 %v2757
    %v2822 = vunpack.c.l.b16 %v2758
    %v2823 = vunpack.c.l.b16 %v2759
    %v2824 = vunpack.c.l.b16 %v2760
    %v2825 = vunpack.c.l.b16 %v2761
    %v2826 = vunpack.c.l.b16 %v2762
    %v2827 = vunpack.c.l.b16 %v2763
    %v2828 = vunpack.c.l.b16 %v2764
    %v2829 = vunpack.c.l.b16 %v2765
    %v2830 = vunpack.c.l.b16 %v2766
    %v2831 = vunpack.c.l.b16 %v2767
    %v2832 = vunpack.c.l.b16 %v2768
    %v2833 = vunpack.c.l.b16 %v2769
    %v2834 = vunpack.c.l.b16 %v2770
    %v2835 = vunpack.c.l.b16 %v2771
    %v2836 = vunpack.c.l.b16 %v2772
    %v2837 = vunpack.c.l.b16 %v2773
    %v2838 = vunpack.c.l.b16 %v2774
    %v2839 = vunpack.c.l.b16 %v2775
    %v2840 = vunpack.c.l.b16 %v2776
    %v2841 = vunpack.c.l.b16 %v2777
    %v2842 = vunpack.c.l.b16 %v2778
    %v2843 = vunpack.c.l.b16 %v2779
    %v2844 = vunpack.c.l.b16 %v2780
    %v2845 = vunpack.c.l.b16 %v2781
    %v2846 = vunpack.c.l.b16 %v2782
    %v2847 = vunpack.c.l.b16 %v2783
    %v2848 = vunpack.c.l.b16 %v2784
    %v2849 = vpack.c.b16 %v2818, %v2817
    %v2850 = vpack.c.b16 %v2820, %v2819
    %v2851 = vpack.c.b16 %v2822, %v2821
    %v2852 = vpack.c.b16 %v2824, %v2823
    %v2853 = vpack.c.b16 %v2826, %v2825
    %v2854 = vpack.c.b16 %v2828, %v2827
    %v2855 = vpack.c.b16 %v2830, %v2829
    %v2856 = vpack.c.b16 %v2832, %v2831
    %v2857 = vpack.c.b16 %v2834, %v2833
    %v2858 = vpack.c.b16 %v2836, %v2835
    %v2859 = vpack.c.b16 %v2838, %v2837
    %v2860 = vpack.c.b16 %v2840, %v2839
    %v2861 = vpack.c.b16 %v2842, %v2841
    %v2862 = vpack.c.b16 %v2844, %v2843
    %v2863 = vpack.c.b16 %v2846, %v2845
    %v2864 = vpack.c.b16 %v2848, %v2847
    %v2866 = vsel %vm1692, %v2849, 0
    %v2869 = vsel %vm1692, %v2850, 0
    %v2872 = vsel %vm1692, %v2851, 0
    %v2875 = vsel %vm1692, %v2852, 0
    %v2878 = vsel %vm1692, %v2853, 0
    %v2881 = vsel %vm1692, %v2854, 0
    %v2884 = vsel %vm1692, %v2855, 0
    %v2887 = vsel %vm1692, %v2856, 0
    %v2890 = vsel %vm1692, %v2857, 0
    %v2893 = vsel %vm1692, %v2858, 0
    %v2896 = vsel %vm1692, %v2859, 0
    %v2899 = vsel %vm1692, %v2860, 0
    %v2902 = vsel %vm1692, %v2861, 0
    %v2905 = vsel %vm1692, %v2862, 0
    %v2908 = vsel %vm1692, %v2863, 0
    %v2911 = vsel %vm1692, %v2864, 0
    %2913 = vmatprep.subr.bf16.mxu0 %v1381
    %2914 = vmatpush1.bf16.msra.mxu0 %v1380
    %2915 = vmatprep.subr.bf16.mxu0 %v1383
    %2916 = vmatpush1.bf16.msra.mxu0 %v1382
    %2917 = vmatprep.subr.bf16.mxu0 %v1385
    %2918 = vmatpush1.bf16.msra.mxu0 %v1384
    %2919 = vmatprep.subr.bf16.mxu0 %v1387
    %2920 = vmatpush1.bf16.msra.mxu0 %v1386
    %2921 = vmatprep.subr.bf16.mxu0 0
    %2922 = vmatpush1.bf16.msra.mxu0 0
    %2923 = vmatprep.subr.bf16.mxu0 0
    %2924 = vmatpush1.bf16.msra.mxu0 0
    %2925 = vmatprep.subr.bf16.mxu0 0
    %2926 = vmatpush1.bf16.msra.mxu0 0
    %2927 = vmatprep.subr.bf16.mxu0 0
    %2928 = vmatpush1.bf16.msra.mxu0 0
    %2929 = vmatprep.subr.bf16.mxu0 0
    %2930 = vmatpush1.bf16.msra.mxu0 0
    %2931 = vmatprep.subr.bf16.mxu0 0
    %2932 = vmatpush1.bf16.msra.mxu0 0
    %2933 = vmatprep.subr.bf16.mxu0 0
    %2934 = vmatpush1.bf16.msra.mxu0 0
    %2935 = vmatprep.subr.bf16.mxu0 0
    %2936 = vmatpush1.bf16.msra.mxu0 0
    %2937 = vmatprep.subr.bf16.mxu0 0
    %2938 = vmatpush1.bf16.msra.mxu0 0
    %2939 = vmatprep.subr.bf16.mxu0 0
    %2940 = vmatpush1.bf16.msra.mxu0 0
    %2941 = vmatprep.subr.bf16.mxu0 0
    %2942 = vmatpush1.bf16.msra.mxu0 0
    %2943 = vmatprep.subr.bf16.mxu0 0
    %2944 = vmatpush1.bf16.msra.mxu0 0
    %2945 = vmatprep.mubr.bf16.mxu0 0
    %2946 = vmatmul.mubr.bf16.gmra.mrb[0].mxu0 %v2866
    %v2947 = vpop.f32.mrb[0].mxu0
    %v2948 = vadd.f32 %v2595, %v2947
    %v2949 = vpop.f32.mrb[0].mxu0
    %v2950 = vadd.f32 %v2597, %v2949
    %v2951 = vpop.f32.mrb[0].mxu0
    %v2952 = vadd.f32 %v2599, %v2951
    %v2953 = vpop.f32.mrb[0].mxu0
    %v2954 = vadd.f32 %v2601, %v2953
    %2955 = vmatprep.mubr.bf16.mxu0 0
    %2956 = vmatmul.mubr.bf16.gmra.mrb[0].mxu0 %v2869
    %v2957 = vpop.f32.mrb[0].mxu0
    %v2958 = vadd.f32 %v2605, %v2957
    %v2959 = vpop.f32.mrb[0].mxu0
    %v2960 = vadd.f32 %v2607, %v2959
    %v2961 = vpop.f32.mrb[0].mxu0
    %v2962 = vadd.f32 %v2609, %v2961
    %v2963 = vpop.f32.mrb[0].mxu0
    %v2964 = vadd.f32 %v2611, %v2963
    %2965 = vmatprep.mubr.bf16.mxu0 0
    %2966 = vmatmul.mubr.bf16.gmra.mrb[0].mxu0 %v2872
    %v2967 = vpop.f32.mrb[0].mxu0
    %v2968 = vadd.f32 %v2615, %v2967
    %v2969 = vpop.f32.mrb[0].mxu0
    %v2970 = vadd.f32 %v2617, %v2969
    %v2971 = vpop.f32.mrb[0].mxu0
    %v2972 = vadd.f32 %v2619, %v2971
    %v2973 = vpop.f32.mrb[0].mxu0
    %v2974 = vadd.f32 %v2621, %v2973
    %2975 = vmatprep.mubr.bf16.mxu0 0
    %2976 = vmatmul.mubr.bf16.gmra.mrb[0].mxu0 %v2875
    %v2977 = vpop.f32.mrb[0].mxu0
    %v2978 = vadd.f32 %v2625, %v2977
    %v2979 = vpop.f32.mrb[0].mxu0
    %v2980 = vadd.f32 %v2627, %v2979
    %v2981 = vpop.f32.mrb[0].mxu0
    %v2982 = vadd.f32 %v2629, %v2981
    %v2983 = vpop.f32.mrb[0].mxu0
    %v2984 = vadd.f32 %v2631, %v2983
    %2985 = vmatprep.mubr.bf16.mxu0 0
    %2986 = vmatmul.mubr.bf16.gmra.mrb[0].mxu0 %v2878
    %v2987 = vpop.f32.mrb[0].mxu0
    %v2988 = vadd.f32 %v2635, %v2987
    %v2989 = vpop.f32.mrb[0].mxu0
    %v2990 = vadd.f32 %v2637, %v2989
    %v2991 = vpop.f32.mrb[0].mxu0
    %v2992 = vadd.f32 %v2639, %v2991
    %v2993 = vpop.f32.mrb[0].mxu0
    %v2994 = vadd.f32 %v2641, %v2993
    %2995 = vmatprep.mubr.bf16.mxu0 0
    %2996 = vmatmul.mubr.bf16.gmra.mrb[0].mxu0 %v2881
    %v2997 = vpop.f32.mrb[0].mxu0
    %v2998 = vadd.f32 %v2645, %v2997
    %v2999 = vpop.f32.mrb[0].mxu0
    %v3000 = vadd.f32 %v2647, %v2999
    %v3001 = vpop.f32.mrb[0].mxu0
    %v3002 = vadd.f32 %v2649, %v3001
    %v3003 = vpop.f32.mrb[0].mxu0
    %v3004 = vadd.f32 %v2651, %v3003
    %3005 = vmatprep.mubr.bf16.mxu0 0
    %3006 = vmatmul.mubr.bf16.gmra.mrb[0].mxu0 %v2884
    %v3007 = vpop.f32.mrb[0].mxu0
    %v3008 = vadd.f32 %v2655, %v3007
    %v3009 = vpop.f32.mrb[0].mxu0
    %v3010 = vadd.f32 %v2657, %v3009
    %v3011 = vpop.f32.mrb[0].mxu0
    %v3012 = vadd.f32 %v2659, %v3011
    %v3013 = vpop.f32.mrb[0].mxu0
    %v3014 = vadd.f32 %v2661, %v3013
    %3015 = vmatprep.mubr.bf16.mxu0 0
    %3016 = vmatmul.mubr.bf16.gmra.mrb[0].mxu0 %v2887
    %v3017 = vpop.f32.mrb[0].mxu0
    %v3018 = vadd.f32 %v2665, %v3017
    %v3019 = vpop.f32.mrb[0].mxu0
    %v3020 = vadd.f32 %v2667, %v3019
    %v3021 = vpop.f32.mrb[0].mxu0
    %v3022 = vadd.f32 %v2669, %v3021
    %v3023 = vpop.f32.mrb[0].mxu0
    %v3024 = vadd.f32 %v2671, %v3023
    %3025 = vmatprep.mubr.bf16.mxu0 0
    %3026 = vmatmul.mubr.bf16.gmra.mrb[0].mxu0 %v2890
    %v3027 = vpop.f32.mrb[0].mxu0
    %v3028 = vadd.f32 %v2675, %v3027
    %v3029 = vpop.f32.mrb[0].mxu0
    %v3030 = vadd.f32 %v2677, %v3029
    %v3031 = vpop.f32.mrb[0].mxu0
    %v3032 = vadd.f32 %v2679, %v3031
    %v3033 = vpop.f32.mrb[0].mxu0
    %v3034 = vadd.f32 %v2681, %v3033
    %3035 = vmatprep.mubr.bf16.mxu0 0
    %3036 = vmatmul.mubr.bf16.gmra.mrb[0].mxu0 %v2893
    %v3037 = vpop.f32.mrb[0].mxu0
    %v3038 = vadd.f32 %v2685, %v3037
    %v3039 = vpop.f32.mrb[0].mxu0
    %v3040 = vadd.f32 %v2687, %v3039
    %v3041 = vpop.f32.mrb[0].mxu0
    %v3042 = vadd.f32 %v2689, %v3041
    %v3043 = vpop.f32.mrb[0].mxu0
    %v3044 = vadd.f32 %v2691, %v3043
    %3045 = vmatprep.mubr.bf16.mxu0 0
    %3046 = vmatmul.mubr.bf16.gmra.mrb[0].mxu0 %v2896
    %v3047 = vpop.f32.mrb[0].mxu0
    %v3048 = vadd.f32 %v2695, %v3047
    %v3049 = vpop.f32.mrb[0].mxu0
    %v3050 = vadd.f32 %v2697, %v3049
    %v3051 = vpop.f32.mrb[0].mxu0
    %v3052 = vadd.f32 %v2699, %v3051
    %v3053 = vpop.f32.mrb[0].mxu0
    %v3054 = vadd.f32 %v2701, %v3053
    %3055 = vmatprep.mubr.bf16.mxu0 0
    %3056 = vmatmul.mubr.bf16.gmra.mrb[0].mxu0 %v2899
    %v3057 = vpop.f32.mrb[0].mxu0
    %v3058 = vadd.f32 %v2705, %v3057
    %v3059 = vpop.f32.mrb[0].mxu0
    %v3060 = vadd.f32 %v2707, %v3059
    %v3061 = vpop.f32.mrb[0].mxu0
    %v3062 = vadd.f32 %v2709, %v3061
    %v3063 = vpop.f32.mrb[0].mxu0
    %v3064 = vadd.f32 %v2711, %v3063
    %3065 = vmatprep.mubr.bf16.mxu0 0
    %3066 = vmatmul.mubr.bf16.gmra.mrb[0].mxu0 %v2902
    %v3067 = vpop.f32.mrb[0].mxu0
    %v3068 = vadd.f32 %v2715, %v3067
    %v3069 = vpop.f32.mrb[0].mxu0
    %v3070 = vadd.f32 %v2717, %v3069
    %v3071 = vpop.f32.mrb[0].mxu0
    %v3072 = vadd.f32 %v2719, %v3071
    %v3073 = vpop.f32.mrb[0].mxu0
    %v3074 = vadd.f32 %v2721, %v3073
    %3075 = vmatprep.mubr.bf16.mxu0 0
    %3076 = vmatmul.mubr.bf16.gmra.mrb[0].mxu0 %v2905
    %v3077 = vpop.f32.mrb[0].mxu0
    %v3078 = vadd.f32 %v2725, %v3077
    %v3079 = vpop.f32.mrb[0].mxu0
    %v3080 = vadd.f32 %v2727, %v3079
    %v3081 = vpop.f32.mrb[0].mxu0
    %v3082 = vadd.f32 %v2729, %v3081
    %v3083 = vpop.f32.mrb[0].mxu0
    %v3084 = vadd.f32 %v2731, %v3083
    %3085 = vmatprep.mubr.bf16.mxu0 0
    %3086 = vmatmul.mubr.bf16.gmra.mrb[0].mxu0 %v2908
    %v3087 = vpop.f32.mrb[0].mxu0
    %v3088 = vadd.f32 %v2735, %v3087
    %v3089 = vpop.f32.mrb[0].mxu0
    %v3090 = vadd.f32 %v2737, %v3089
    %v3091 = vpop.f32.mrb[0].mxu0
    %v3092 = vadd.f32 %v2739, %v3091
    %v3093 = vpop.f32.mrb[0].mxu0
    %v3094 = vadd.f32 %v2741, %v3093
    %3095 = vmatprep.mubr.bf16.mxu0 0
    %3096 = vmatmul.mubr.bf16.gmra.mrb[0].mxu0 %v2911
    %v3097 = vpop.f32.mrb[0].mxu0
    %v3098 = vadd.f32 %v2745, %v3097
    %v3099 = vpop.f32.mrb[0].mxu0
    %v3100 = vadd.f32 %v2747, %v3099
    %v3101 = vpop.f32.mrb[0].mxu0
    %v3102 = vadd.f32 %v2749, %v3101
    %v3103 = vpop.f32.mrb[0].mxu0
    %v3104 = vadd.f32 %v2751, %v3103
    %3105 = vdwg.mxu0
    %v3106 = vld [vmem:[%s13] sm:$0xff]
    %v3107 = vld [vmem:[%s13 + $0x8] sm:$0xff]
    %v3108 = vld [vmem:[%s13 + $0x10] sm:$0xff]
    %v3109 = vld [vmem:[%s13 + $0x18] sm:$0xff]
    %v3110 = vld [vmem:[%s13 + $0x20] sm:$0xff]
    %v3111 = vld [vmem:[%s13 + $0x28] sm:$0xff]
    %v3112 = vld [vmem:[%s13 + $0x30] sm:$0xff]
    %v3113 = vld [vmem:[%s13 + $0x38] sm:$0xff]
    %v3114 = vld [vmem:[%s13 + $0x40] sm:$0xff]
    %v3115 = vld [vmem:[%s13 + $0x48] sm:$0xff]
    %v3116 = vld [vmem:[%s13 + $0x50] sm:$0xff]
    %v3117 = vld [vmem:[%s13 + $0x58] sm:$0xff]
    %v3118 = vld [vmem:[%s13 + $0x60] sm:$0xff]
    %v3119 = vld [vmem:[%s13 + $0x68] sm:$0xff]
    %v3120 = vld [vmem:[%s13 + $0x70] sm:$0xff]
    %v3121 = vld [vmem:[%s13 + $0x78] sm:$0xff]
    %v3122 = vld [vmem:[%s13 + $0x80] sm:$0xff]
    %v3123 = vld [vmem:[%s13 + $0x88] sm:$0xff]
    %v3124 = vld [vmem:[%s13 + $0x90] sm:$0xff]
    %v3125 = vld [vmem:[%s13 + $0x98] sm:$0xff]
    %v3126 = vld [vmem:[%s13 + $0xa0] sm:$0xff]
    %v3127 = vld [vmem:[%s13 + $0xa8] sm:$0xff]
    %v3128 = vld [vmem:[%s13 + $0xb0] sm:$0xff]
    %v3129 = vld [vmem:[%s13 + $0xb8] sm:$0xff]
    %v3130 = vld [vmem:[%s13 + $0xc0] sm:$0xff]
    %v3131 = vld [vmem:[%s13 + $0xc8] sm:$0xff]
    %v3132 = vld [vmem:[%s13 + $0xd0] sm:$0xff]
    %v3133 = vld [vmem:[%s13 + $0xd8] sm:$0xff]
    %v3134 = vld [vmem:[%s13 + $0xe0] sm:$0xff]
    %v3135 = vld [vmem:[%s13 + $0xe8] sm:$0xff]
    %v3136 = vld [vmem:[%s13 + $0xf0] sm:$0xff]
    %v3137 = vld [vmem:[%s13 + $0xf8] sm:$0xff]
    %3139 = vset.pattern.permute.xlu0 0
    %3140 = vperm.xlu0 %3139, %v3106
    %v3141 = vpop.permute.xlu0 %3140
    %3144 = vset.pattern.permute.xlu0 0
    %3145 = vperm.xlu0 %3144, %v3107
    %v3146 = vpop.permute.xlu0 %3145
    %3149 = vset.pattern.permute.xlu0 0
    %3150 = vperm.xlu0 %3149, %v3108
    %v3151 = vpop.permute.xlu0 %3150
    %3154 = vset.pattern.permute.xlu0 0
    %3155 = vperm.xlu0 %3154, %v3109
    %v3156 = vpop.permute.xlu0 %3155
    %3159 = vset.pattern.permute.xlu0 0
    %3160 = vperm.xlu0 %3159, %v3110
    %v3161 = vpop.permute.xlu0 %3160
    %3164 = vset.pattern.permute.xlu0 0
    %3165 = vperm.xlu0 %3164, %v3111
    %v3166 = vpop.permute.xlu0 %3165
    %3169 = vset.pattern.permute.xlu0 0
    %3170 = vperm.xlu0 %3169, %v3112
    %v3171 = vpop.permute.xlu0 %3170
    %3174 = vset.pattern.permute.xlu0 0
    %3175 = vperm.xlu0 %3174, %v3113
    %v3176 = vpop.permute.xlu0 %3175
    %3179 = vset.pattern.permute.xlu0 0
    %3180 = vperm.xlu0 %3179, %v3114
    %v3181 = vpop.permute.xlu0 %3180
    %3184 = vset.pattern.permute.xlu0 0
    %3185 = vperm.xlu0 %3184, %v3115
    %v3186 = vpop.permute.xlu0 %3185
    %3189 = vset.pattern.permute.xlu0 0
    %3190 = vperm.xlu0 %3189, %v3116
    %v3191 = vpop.permute.xlu0 %3190
    %3194 = vset.pattern.permute.xlu0 0
    %3195 = vperm.xlu0 %3194, %v3117
    %v3196 = vpop.permute.xlu0 %3195
    %3199 = vset.pattern.permute.xlu0 0
    %3200 = vperm.xlu0 %3199, %v3118
    %v3201 = vpop.permute.xlu0 %3200
    %3204 = vset.pattern.permute.xlu0 0
    %3205 = vperm.xlu0 %3204, %v3119
    %v3206 = vpop.permute.xlu0 %3205
    %3209 = vset.pattern.permute.xlu0 0
    %3210 = vperm.xlu0 %3209, %v3120
    %v3211 = vpop.permute.xlu0 %3210
    %3214 = vset.pattern.permute.xlu0 0
    %3215 = vperm.xlu0 %3214, %v3121
    %v3216 = vpop.permute.xlu0 %3215
    %3219 = vset.pattern.permute.xlu0 0
    %3220 = vperm.xlu0 %3219, %v3122
    %v3221 = vpop.permute.xlu0 %3220
    %3224 = vset.pattern.permute.xlu0 0
    %3225 = vperm.xlu0 %3224, %v3123
    %v3226 = vpop.permute.xlu0 %3225
    %3229 = vset.pattern.permute.xlu0 0
    %3230 = vperm.xlu0 %3229, %v3124
    %v3231 = vpop.permute.xlu0 %3230
    %3234 = vset.pattern.permute.xlu0 0
    %3235 = vperm.xlu0 %3234, %v3125
    %v3236 = vpop.permute.xlu0 %3235
    %3239 = vset.pattern.permute.xlu0 0
    %3240 = vperm.xlu0 %3239, %v3126
    %v3241 = vpop.permute.xlu0 %3240
    %3244 = vset.pattern.permute.xlu0 0
    %3245 = vperm.xlu0 %3244, %v3127
    %v3246 = vpop.permute.xlu0 %3245
    %3249 = vset.pattern.permute.xlu0 0
    %3250 = vperm.xlu0 %3249, %v3128
    %v3251 = vpop.permute.xlu0 %3250
    %3254 = vset.pattern.permute.xlu0 0
    %3255 = vperm.xlu0 %3254, %v3129
    %v3256 = vpop.permute.xlu0 %3255
    %3259 = vset.pattern.permute.xlu0 0
    %3260 = vperm.xlu0 %3259, %v3130
    %v3261 = vpop.permute.xlu0 %3260
    %3264 = vset.pattern.permute.xlu0 0
    %3265 = vperm.xlu0 %3264, %v3131
    %v3266 = vpop.permute.xlu0 %3265
    %3269 = vset.pattern.permute.xlu0 0
    %3270 = vperm.xlu0 %3269, %v3132
    %v3271 = vpop.permute.xlu0 %3270
    %3274 = vset.pattern.permute.xlu0 0
    %3275 = vperm.xlu0 %3274, %v3133
    %v3276 = vpop.permute.xlu0 %3275
    %3279 = vset.pattern.permute.xlu0 0
    %3280 = vperm.xlu0 %3279, %v3134
    %v3281 = vpop.permute.xlu0 %3280
    %3284 = vset.pattern.permute.xlu0 0
    %3285 = vperm.xlu0 %3284, %v3135
    %v3286 = vpop.permute.xlu0 %3285
    %3289 = vset.pattern.permute.xlu0 0
    %3290 = vperm.xlu0 %3289, %v3136
    %v3291 = vpop.permute.xlu0 %3290
    %3294 = vset.pattern.permute.xlu0 0
    %3295 = vperm.xlu0 %3294, %v3137
    %v3296 = vpop.permute.xlu0 %3295
    %v3298 = vadd.f32 %v2948, %v3141
    %v3299 = vadd.f32 %v2950, %v3141
    %v3300 = vadd.f32 %v2952, %v3146
    %v3301 = vadd.f32 %v2954, %v3146
    %v3302 = vadd.f32 %v2958, %v3151
    %v3303 = vadd.f32 %v2960, %v3151
    %v3304 = vadd.f32 %v2962, %v3156
    %v3305 = vadd.f32 %v2964, %v3156
    %v3306 = vadd.f32 %v2968, %v3161
    %v3307 = vadd.f32 %v2970, %v3161
    %v3308 = vadd.f32 %v2972, %v3166
    %v3309 = vadd.f32 %v2974, %v3166
    %v3310 = vadd.f32 %v2978, %v3171
    %v3311 = vadd.f32 %v2980, %v3171
    %v3312 = vadd.f32 %v2982, %v3176
    %v3313 = vadd.f32 %v2984, %v3176
    %v3314 = vadd.f32 %v2988, %v3181
    %v3315 = vadd.f32 %v2990, %v3181
    %v3316 = vadd.f32 %v2992, %v3186
    %v3317 = vadd.f32 %v2994, %v3186
    %v3318 = vadd.f32 %v2998, %v3191
    %v3319 = vadd.f32 %v3000, %v3191
    %v3320 = vadd.f32 %v3002, %v3196
    %v3321 = vadd.f32 %v3004, %v3196
    %v3322 = vadd.f32 %v3008, %v3201
    %v3323 = vadd.f32 %v3010, %v3201
    %v3324 = vadd.f32 %v3012, %v3206
    %v3325 = vadd.f32 %v3014, %v3206
    %v3326 = vadd.f32 %v3018, %v3211
    %v3327 = vadd.f32 %v3020, %v3211
    %v3328 = vadd.f32 %v3022, %v3216
    %v3329 = vadd.f32 %v3024, %v3216
    %v3330 = vadd.f32 %v3028, %v3221
    %v3331 = vadd.f32 %v3030, %v3221
    %v3332 = vadd.f32 %v3032, %v3226
    %v3333 = vadd.f32 %v3034, %v3226
    %v3334 = vadd.f32 %v3038, %v3231
    %v3335 = vadd.f32 %v3040, %v3231
    %v3336 = vadd.f32 %v3042, %v3236
    %v3337 = vadd.f32 %v3044, %v3236
    %v3338 = vadd.f32 %v3048, %v3241
    %v3339 = vadd.f32 %v3050, %v3241
    %v3340 = vadd.f32 %v3052, %v3246
    %v3341 = vadd.f32 %v3054, %v3246
    %v3342 = vadd.f32 %v3058, %v3251
    %v3343 = vadd.f32 %v3060, %v3251
    %v3344 = vadd.f32 %v3062, %v3256
    %v3345 = vadd.f32 %v3064, %v3256
    %v3346 = vadd.f32 %v3068, %v3261
    %v3347 = vadd.f32 %v3070, %v3261
    %v3348 = vadd.f32 %v3072, %v3266
    %v3349 = vadd.f32 %v3074, %v3266
    %v3350 = vadd.f32 %v3078, %v3271
    %v3351 = vadd.f32 %v3080, %v3271
    %v3352 = vadd.f32 %v3082, %v3276
    %v3353 = vadd.f32 %v3084, %v3276
    %v3354 = vadd.f32 %v3088, %v3281
    %v3355 = vadd.f32 %v3090, %v3281
    %v3356 = vadd.f32 %v3092, %v3286
    %v3357 = vadd.f32 %v3094, %v3286
    %v3358 = vadd.f32 %v3098, %v3291
    %v3359 = vadd.f32 %v3100, %v3291
    %v3360 = vadd.f32 %v3102, %v3296
    %v3361 = vadd.f32 %v3104, %v3296
    %v3362 = vmax.f32 %v3298, 0.0
    %v3363 = vmax.f32 %v3299, 0.0
    %v3364 = vmax.f32 %v3300, 0.0
    %v3365 = vmax.f32 %v3301, 0.0
    %v3366 = vmax.f32 %v3302, 0.0
    %v3367 = vmax.f32 %v3303, 0.0
    %v3368 = vmax.f32 %v3304, 0.0
    %v3369 = vmax.f32 %v3305, 0.0
    %v3370 = vmax.f32 %v3306, 0.0
    %v3371 = vmax.f32 %v3307, 0.0
    %v3372 = vmax.f32 %v3308, 0.0
    %v3373 = vmax.f32 %v3309, 0.0
    %v3374 = vmax.f32 %v3310, 0.0
    %v3375 = vmax.f32 %v3311, 0.0
    %v3376 = vmax.f32 %v3312, 0.0
    %v3377 = vmax.f32 %v3313, 0.0
    %v3378 = vmax.f32 %v3314, 0.0
    %v3379 = vmax.f32 %v3315, 0.0
    %v3380 = vmax.f32 %v3316, 0.0
    %v3381 = vmax.f32 %v3317, 0.0
    %v3382 = vmax.f32 %v3318, 0.0
    %v3383 = vmax.f32 %v3319, 0.0
    %v3384 = vmax.f32 %v3320, 0.0
    %v3385 = vmax.f32 %v3321, 0.0
    %v3386 = vmax.f32 %v3322, 0.0
    %v3387 = vmax.f32 %v3323, 0.0
    %v3388 = vmax.f32 %v3324, 0.0
    %v3389 = vmax.f32 %v3325, 0.0
    %v3390 = vmax.f32 %v3326, 0.0
    %v3391 = vmax.f32 %v3327, 0.0
    %v3392 = vmax.f32 %v3328, 0.0
    %v3393 = vmax.f32 %v3329, 0.0
    %v3394 = vmax.f32 %v3330, 0.0
    %v3395 = vmax.f32 %v3331, 0.0
    %v3396 = vmax.f32 %v3332, 0.0
    %v3397 = vmax.f32 %v3333, 0.0
    %v3398 = vmax.f32 %v3334, 0.0
    %v3399 = vmax.f32 %v3335, 0.0
    %v3400 = vmax.f32 %v3336, 0.0
    %v3401 = vmax.f32 %v3337, 0.0
    %v3402 = vmax.f32 %v3338, 0.0
    %v3403 = vmax.f32 %v3339, 0.0
    %v3404 = vmax.f32 %v3340, 0.0
    %v3405 = vmax.f32 %v3341, 0.0
    %v3406 = vmax.f32 %v3342, 0.0
    %v3407 = vmax.f32 %v3343, 0.0
    %v3408 = vmax.f32 %v3344, 0.0
    %v3409 = vmax.f32 %v3345, 0.0
    %v3410 = vmax.f32 %v3346, 0.0
    %v3411 = vmax.f32 %v3347, 0.0
    %v3412 = vmax.f32 %v3348, 0.0
    %v3413 = vmax.f32 %v3349, 0.0
    %v3414 = vmax.f32 %v3350, 0.0
    %v3415 = vmax.f32 %v3351, 0.0
    %v3416 = vmax.f32 %v3352, 0.0
    %v3417 = vmax.f32 %v3353, 0.0
    %v3418 = vmax.f32 %v3354, 0.0
    %v3419 = vmax.f32 %v3355, 0.0
    %v3420 = vmax.f32 %v3356, 0.0
    %v3421 = vmax.f32 %v3357, 0.0
    %v3422 = vmax.f32 %v3358, 0.0
    %v3423 = vmax.f32 %v3359, 0.0
    %v3424 = vmax.f32 %v3360, 0.0
    %v3425 = vmax.f32 %v3361, 0.0
    %v3426 = vld [vmem:[%s14] sm:$0xff]
    %v3427 = vld [vmem:[%s14 + $0x8] sm:$0xff]
    %v3428 = vld [vmem:[%s14 + $0x10] sm:$0xff]
    %v3429 = vld [vmem:[%s14 + $0x18] sm:$0xff]
    %v3430 = vld [vmem:[%s14 + $0x20] sm:$0xff]
    %v3431 = vld [vmem:[%s14 + $0x28] sm:$0xff]
    %v3432 = vld [vmem:[%s14 + $0x30] sm:$0xff]
    %v3433 = vld [vmem:[%s14 + $0x38] sm:$0xff]
    %v3434 = vpack.c.bf16 %v3364, %v3362
    %v3435 = vpack.c.bf16 %v3365, %v3363
    %v3436 = vpack.c.bf16 %v3368, %v3366
    %v3437 = vpack.c.bf16 %v3369, %v3367
    %v3438 = vpack.c.bf16 %v3372, %v3370
    %v3439 = vpack.c.bf16 %v3373, %v3371
    %v3440 = vpack.c.bf16 %v3376, %v3374
    %v3441 = vpack.c.bf16 %v3377, %v3375
    %v3442 = vpack.c.bf16 %v3380, %v3378
    %v3443 = vpack.c.bf16 %v3381, %v3379
    %v3444 = vpack.c.bf16 %v3384, %v3382
    %v3445 = vpack.c.bf16 %v3385, %v3383
    %v3446 = vpack.c.bf16 %v3388, %v3386
    %v3447 = vpack.c.bf16 %v3389, %v3387
    %v3448 = vpack.c.bf16 %v3392, %v3390
    %v3449 = vpack.c.bf16 %v3393, %v3391
    %v3450 = vpack.c.bf16 %v3396, %v3394
    %v3451 = vpack.c.bf16 %v3397, %v3395
    %v3452 = vpack.c.bf16 %v3400, %v3398
    %v3453 = vpack.c.bf16 %v3401, %v3399
    %v3454 = vpack.c.bf16 %v3404, %v3402
    %v3455 = vpack.c.bf16 %v3405, %v3403
    %v3456 = vpack.c.bf16 %v3408, %v3406
    %v3457 = vpack.c.bf16 %v3409, %v3407
    %v3458 = vpack.c.bf16 %v3412, %v3410
    %v3459 = vpack.c.bf16 %v3413, %v3411
    %v3460 = vpack.c.bf16 %v3416, %v3414
    %v3461 = vpack.c.bf16 %v3417, %v3415
    %v3462 = vpack.c.bf16 %v3420, %v3418
    %v3463 = vpack.c.bf16 %v3421, %v3419
    %v3464 = vpack.c.bf16 %v3424, %v3422
    %v3465 = vpack.c.bf16 %v3425, %v3423
    %v3466 = vld [vmem:[%s15] sm:$0xff]
    %v3467 = vld [vmem:[%s15 + $0x8] sm:$0xff]
    %v3468 = vld [vmem:[%s15 + $0x10] sm:$0xff]
    %v3469 = vld [vmem:[%s15 + $0x18] sm:$0xff]
    %v3470 = vld [vmem:[%s15 + $0x20] sm:$0xff]
    %v3471 = vld [vmem:[%s15 + $0x28] sm:$0xff]
    %v3472 = vld [vmem:[%s15 + $0x30] sm:$0xff]
    %v3473 = vld [vmem:[%s15 + $0x38] sm:$0xff]
    %3475 = vset.pattern.permute.xlu0 0
    %3476 = vperm.xlu0 %3475, %v3466
    %v3477 = vpop.permute.xlu0 %3476
    %3480 = vset.pattern.permute.xlu0 0
    %3481 = vperm.xlu0 %3480, %v3467
    %v3482 = vpop.permute.xlu0 %3481
    %3485 = vset.pattern.permute.xlu0 0
    %3486 = vperm.xlu0 %3485, %v3468
    %v3487 = vpop.permute.xlu0 %3486
    %3490 = vset.pattern.permute.xlu0 0
    %3491 = vperm.xlu0 %3490, %v3469
    %v3492 = vpop.permute.xlu0 %3491
    %3495 = vset.pattern.permute.xlu0 0
    %3496 = vperm.xlu0 %3495, %v3470
    %v3497 = vpop.permute.xlu0 %3496
    %3500 = vset.pattern.permute.xlu0 0
    %3501 = vperm.xlu0 %3500, %v3471
    %v3502 = vpop.permute.xlu0 %3501
    %3505 = vset.pattern.permute.xlu0 0
    %3506 = vperm.xlu0 %3505, %v3472
    %v3507 = vpop.permute.xlu0 %3506
    %3510 = vset.pattern.permute.xlu0 0
    %3511 = vperm.xlu0 %3510, %v3473
    %v3512 = vpop.permute.xlu0 %3511
    %v3522 = vunpack.c.l.b16 %v3426
    %v3523 = vunpack.c.h.b16 %v3426
    %v3524 = vunpack.c.l.b16 %v3427
    %v3525 = vunpack.c.h.b16 %v3427
    %v3526 = vunpack.c.l.b16 %v3428
    %v3527 = vunpack.c.h.b16 %v3428
    %v3528 = vunpack.c.l.b16 %v3429
    %v3529 = vunpack.c.h.b16 %v3429
    %v3530 = vunpack.c.l.b16 %v3430
    %v3531 = vunpack.c.h.b16 %v3430
    %v3532 = vunpack.c.l.b16 %v3431
    %v3533 = vunpack.c.h.b16 %v3431
    %v3534 = vunpack.c.l.b16 %v3432
    %v3535 = vunpack.c.h.b16 %v3432
    %v3536 = vunpack.c.l.b16 %v3433
    %v3537 = vunpack.c.h.b16 %v3433
    %v3538 = vpack.c.b16 %v3524, %v3522
    %v3539 = vpack.c.b16 %v3525, %v3523
    %v3540 = vpack.c.b16 %v3528, %v3526
    %v3541 = vpack.c.b16 %v3529, %v3527
    %v3542 = vpack.c.b16 %v3532, %v3530
    %v3543 = vpack.c.b16 %v3533, %v3531
    %v3544 = vpack.c.b16 %v3536, %v3534
    %v3545 = vpack.c.b16 %v3537, %v3535
    %3554 = vmatprep.subr.bf16.mxu0 %v3435
    %3555 = vmatpush1.bf16.msra.mxu0 %v3434
    %3556 = vmatprep.subr.bf16.mxu0 %v3437
    %3557 = vmatpush1.bf16.msra.mxu0 %v3436
    %3558 = vmatprep.subr.bf16.mxu0 %v3439
    %3559 = vmatpush1.bf16.msra.mxu0 %v3438
    %3560 = vmatprep.subr.bf16.mxu0 %v3441
    %3561 = vmatpush1.bf16.msra.mxu0 %v3440
    %3562 = vmatprep.subr.bf16.mxu0 %v3443
    %3563 = vmatpush1.bf16.msra.mxu0 %v3442
    %3564 = vmatprep.subr.bf16.mxu0 %v3445
    %3565 = vmatpush1.bf16.msra.mxu0 %v3444
    %3566 = vmatprep.subr.bf16.mxu0 %v3447
    %3567 = vmatpush1.bf16.msra.mxu0 %v3446
    %3568 = vmatprep.subr.bf16.mxu0 %v3449
    %3569 = vmatpush1.bf16.msra.mxu0 %v3448
    %3570 = vmatprep.subr.bf16.mxu0 %v3451
    %3571 = vmatpush1.bf16.msra.mxu0 %v3450
    %3572 = vmatprep.subr.bf16.mxu0 %v3453
    %3573 = vmatpush1.bf16.msra.mxu0 %v3452
    %3574 = vmatprep.subr.bf16.mxu0 %v3455
    %3575 = vmatpush1.bf16.msra.mxu0 %v3454
    %3576 = vmatprep.subr.bf16.mxu0 %v3457
    %3577 = vmatpush1.bf16.msra.mxu0 %v3456
    %3578 = vmatprep.subr.bf16.mxu0 %v3459
    %3579 = vmatpush1.bf16.msra.mxu0 %v3458
    %3580 = vmatprep.subr.bf16.mxu0 %v3461
    %3581 = vmatpush1.bf16.msra.mxu0 %v3460
    %3582 = vmatprep.subr.bf16.mxu0 %v3463
    %3583 = vmatpush1.bf16.msra.mxu0 %v3462
    %3584 = vmatprep.subr.bf16.mxu0 %v3465
    %3585 = vmatpush1.bf16.msra.mxu0 %v3464
    %3586 = vmatprep.mubr.bf16.mxu0 %v3539
    %3587 = vmatmul.mubr.bf16.gmra.mrb[0].mxu0 %v3538
    %v3588 = vpop.f32.mrb[0].mxu0
    %v3589 = vadd.f32 %v3477, %v3588
    %v3590 = vpop.f32.mrb[0].mxu0
    %v3591 = vadd.f32 %v3477, %v3590
    %v3592 = vpop.f32.mrb[0].mxu0
    %v3593 = vadd.f32 %v3482, %v3592
    %v3594 = vpop.f32.mrb[0].mxu0
    %v3595 = vadd.f32 %v3482, %v3594
    %3596 = vmatprep.mubr.bf16.mxu0 %v3541
    %3597 = vmatmul.mubr.bf16.gmra.mrb[0].mxu0 %v3540
    %v3598 = vpop.f32.mrb[0].mxu0
    %v3599 = vadd.f32 %v3487, %v3598
    %v3600 = vpop.f32.mrb[0].mxu0
    %v3601 = vadd.f32 %v3487, %v3600
    %v3602 = vpop.f32.mrb[0].mxu0
    %v3603 = vadd.f32 %v3492, %v3602
    %v3604 = vpop.f32.mrb[0].mxu0
    %v3605 = vadd.f32 %v3492, %v3604
    %3606 = vmatprep.mubr.bf16.mxu0 %v3543
    %3607 = vmatmul.mubr.bf16.gmra.mrb[0].mxu0 %v3542
    %v3608 = vpop.f32.mrb[0].mxu0
    %v3609 = vadd.f32 %v3497, %v3608
    %v3610 = vpop.f32.mrb[0].mxu0
    %v3611 = vadd.f32 %v3497, %v3610
    %v3612 = vpop.f32.mrb[0].mxu0
    %v3613 = vadd.f32 %v3502, %v3612
    %v3614 = vpop.f32.mrb[0].mxu0
    %v3615 = vadd.f32 %v3502, %v3614
    %3616 = vmatprep.mubr.bf16.mxu0 %v3545
    %3617 = vmatmul.mubr.bf16.gmra.mrb[0].mxu0 %v3544
    %v3618 = vpop.f32.mrb[0].mxu0
    %v3619 = vadd.f32 %v3507, %v3618
    %v3620 = vpop.f32.mrb[0].mxu0
    %v3621 = vadd.f32 %v3507, %v3620
    %v3622 = vpop.f32.mrb[0].mxu0
    %v3623 = vadd.f32 %v3512, %v3622
    %v3624 = vpop.f32.mrb[0].mxu0
    %v3625 = vadd.f32 %v3512, %v3624
    %3626 = vdwg.mxu0
    %v3627 = vmax.f32 %v3589, 0.0
    %v3628 = vmax.f32 %v3591, 0.0
    %v3629 = vmax.f32 %v3593, 0.0
    %v3630 = vmax.f32 %v3595, 0.0
    %v3631 = vmax.f32 %v3599, 0.0
    %v3632 = vmax.f32 %v3601, 0.0
    %v3633 = vmax.f32 %v3603, 0.0
    %v3634 = vmax.f32 %v3605, 0.0
    %v3635 = vmax.f32 %v3609, 0.0
    %v3636 = vmax.f32 %v3611, 0.0
    %v3637 = vmax.f32 %v3613, 0.0
    %v3638 = vmax.f32 %v3615, 0.0
    %v3639 = vmax.f32 %v3619, 0.0
    %v3640 = vmax.f32 %v3621, 0.0
    %v3641 = vmax.f32 %v3623, 0.0
    %v3642 = vmax.f32 %v3625, 0.0
    %v3643 = vld [vmem:[%s16] sm:$0x1]
    %v3644 = vpack.c.bf16 %v3629, %v3627
    %v3645 = vpack.c.bf16 %v3630, %v3628
    %v3646 = vpack.c.bf16 %v3633, %v3631
    %v3647 = vpack.c.bf16 %v3634, %v3632
    %v3648 = vpack.c.bf16 %v3637, %v3635
    %v3649 = vpack.c.bf16 %v3638, %v3636
    %v3650 = vpack.c.bf16 %v3641, %v3639
    %v3651 = vpack.c.bf16 %v3642, %v3640
    %v3652 = vld [vmem:[%s17] sm:$0x3]
    %3654 = vset.pattern.permute.xlu0 0
    %3655 = vperm.xlu0 %3654, %v3652
    %v3656 = vpop.permute.xlu0 %3655
    %v3659 = vsel %vm1692, %v3643, 0
    %3661 = vmatprep.subr.bf16.mxu0 %v3645
    %3662 = vmatpush1.bf16.msra.mxu0 %v3644
    %3663 = vmatprep.subr.bf16.mxu0 %v3647
    %3664 = vmatpush1.bf16.msra.mxu0 %v3646
    %3665 = vmatprep.subr.bf16.mxu0 %v3649
    %3666 = vmatpush1.bf16.msra.mxu0 %v3648
    %3667 = vmatprep.subr.bf16.mxu0 %v3651
    %3668 = vmatpush1.bf16.msra.mxu0 %v3650
    %3669 = vmatprep.subr.bf16.mxu0 0
    %3670 = vmatpush1.bf16.msra.mxu0 0
    %3671 = vmatprep.subr.bf16.mxu0 0
    %3672 = vmatpush1.bf16.msra.mxu0 0
    %3673 = vmatprep.subr.bf16.mxu0 0
    %3674 = vmatpush1.bf16.msra.mxu0 0
    %3675 = vmatprep.subr.bf16.mxu0 0
    %3676 = vmatpush1.bf16.msra.mxu0 0
    %3677 = vmatprep.subr.bf16.mxu0 0
    %3678 = vmatpush1.bf16.msra.mxu0 0
    %3679 = vmatprep.subr.bf16.mxu0 0
    %3680 = vmatpush1.bf16.msra.mxu0 0
    %3681 = vmatprep.subr.bf16.mxu0 0
    %3682 = vmatpush1.bf16.msra.mxu0 0
    %3683 = vmatprep.subr.bf16.mxu0 0
    %3684 = vmatpush1.bf16.msra.mxu0 0
    %3685 = vmatprep.subr.bf16.mxu0 0
    %3686 = vmatpush1.bf16.msra.mxu0 0
    %3687 = vmatprep.subr.bf16.mxu0 0
    %3688 = vmatpush1.bf16.msra.mxu0 0
    %3689 = vmatprep.subr.bf16.mxu0 0
    %3690 = vmatpush1.bf16.msra.mxu0 0
    %3691 = vmatprep.subr.bf16.mxu0 0
    %3692 = vmatpush1.bf16.msra.mxu0 0
    %3693 = vmatprep.mubr.bf16.mxu0 0
    %3694 = vmatmul.mubr.bf16.gmra.mrb[0].mxu0 %v3659
    %v3695 = vpop.f32.mrb[0].mxu0
    %v3696 = vadd.f32 %v3656, %v3695
    %v3697 = vpop.f32.mrb[0].mxu0
    %v3698 = vadd.f32 %v3656, %v3697
    %v3699 = vpop.f32.mrb[0].mxu0
    %v3700 = vpop.f32.mrb[0].mxu0
    %3701 = vdwg.mxu0
    %v3704 = vcombine.low %v3696, %v3698
    %v3706 = vunpack.c.l.s4 1983009808
    %v3707 = vunpack.c.0.s8 %v3706
    %v3708 = vlaneseq
    %v3709 = vshrl.u32 %v3708, 7
    %v3710 = vsub.s32 %v3707, %v3709
    %v3711 = vrot.slane %v3704, %v3710
    %3713 = vst [vmem:[#allocation3] sm:$0xf] %v3711
    // Predicated region
    $region78: #{tpu_custom_call.1} parent=1 // pred_check
      _
    $region79: #{tpu_custom_call.1} parent=1 // pred_check_branch
      %3715 = sbr.rel (0) target = $region81
    $region80: #{tpu_custom_call.1} parent=1 // pred_region
      %s3717 = ssub.s32 64, 64
      %3718 = vsyncadd [#allocation4], %s3717
      %s3720 = sshll.u32 [#allocation3], 4
      %s3721 = int_to_ptr.vmem [resolvable:$true] %s3720
      %3723 = dma.vmem_to_hbm [thread:$0]  %s3721, 64, %s19, [#allocation4]
    $region81: #{tpu_custom_call.1} parent=1 // pred_fallthru
      _
    // Predicated region
    $region82: #{tpu_custom_call.1} parent=1 // pred_check
      _
    $region83: #{tpu_custom_call.1} parent=1 // pred_check_branch
      %3725 = sbr.rel (0) target = $region85
    $region84: #{tpu_custom_call.1} parent=1 // pred_region
      %3726 = dma.done [#allocation4], 64
    $region85: #{tpu_custom_call.1} parent=1 // pred_fallthru
      _
    %3727 = vsyncpa [#allocation4], 1

</llo_original>
